<compile_context>
chip_gen: v7x
topology: tpu7x:2x2x1
jax: 0.10.0
libtpu: 0.0.40
codegen_flags: <defaults>
</compile_context>

<pallas_src>
import math

import numpy as np
import jax
import jax.numpy as jnp
from jax.experimental import pallas as pl
from jax.experimental.pallas import tpu as pltpu

# ----------------------------- configuration --------------------------------
IN_DIM, OUT_DIM = 6, 14          # out_dim must be 14 for the calibration head
C0 = 16
C1 = 2 * C0
C2 = 2 * C1
KS = (3, 3, 3, 1)                # k3 unused by the torch module
DS = (2, 2, 1)                   # d2 unused by the torch module
K0, K1, K2, _ = KS
D0, D1, _ = DS
P0 = (K0 - 1) + D0 * (K1 - 1) + D0 * D1 * (K2 - 1)   # left replication pad = 14
B, T = 2, 16
LP = T + P0                       # 30
L0 = LP - (K0 - 1)                # 28
L1 = L0 - D0 * (K1 - 1)           # 24
L2 = L1 - D0 * D1 * (K2 - 1)      # 16
assert L2 == T
BN_EPS = 1e-5
LN10 = float(np.log(10.0))

# single packed parameter blob (row offsets 8-aligned, 128 lanes wide)
W0_OFF, W0_ROWS = 0, K0 * IN_DIM          # rows  0..17  : (18, C0) layer-0 im2col weight
W1_OFF = 24                                # rows 24..71  : 3 taps of (C0, C1)
W2_OFF = W1_OFF + K1 * C0                  # rows 72..167 : 3 taps of (C1, C2)
WH_OFF = W2_OFF + K2 * C1                  # rows 168..231: (C2, OUT_DIM) folded head
V_OFF = WH_OFF + C2                        # rows 232..239: bias / calibration rows
WROWS = V_OFF + 8                          # 240 (multiple of 8)
WCOLS = 128                                # lane-dense

# calibration constants:  cali[c] = base[c] * 10**(expf[c]*ys[c]) + linf[c]*ys[c]
CALI_BASE = jnp.array([1, 1, 1, 1, 1, 1, 0, 0, 0, 0, 0, 0, 2, 20], jnp.float32)
CALI_EXPF = jnp.array([0.01] * 6 + [0.0] * 6 + [1.0] * 2, jnp.float32)
CALI_LINF = jnp.array([0.0] * 6 + [1.0] * 6 + [0.0] * 2, jnp.float32)


# ------------------------------- kernel --------------------------------------
def _erf(x):
    # Abramowitz & Stegun 7.1.26 polynomial erf, |abs err| < 1.5e-7.
    # Exact divide (no approx reciprocal): the approx error was amplified by the
    # 10**(3*y) calibration columns and broke the 5e-3 tolerance.
    a1, a2, a3, a4, a5 = 0.254829592, -0.284496736, 1.421413741, -1.453152027, 1.061405429
    p = 0.3275911
    s = jnp.where(x < 0.0, -1.0, 1.0)
    ax = jnp.abs(x)
    t = 1.0 / (1.0 + p * ax)
    poly = ((((a5 * t + a4) * t + a3) * t + a2) * t + a1) * t
    return s * (1.0 - poly * jnp.exp(-ax * ax))


def _gelu(x):
    return 0.5 * x * (1.0 + _erf(x * (1.0 / math.sqrt(2.0))))


def _split_f32(x):
    hi = x.astype(jnp.bfloat16)
    lo = (x - hi.astype(jnp.float32)).astype(jnp.bfloat16)
    return hi, lo


def _ein(a, b):
    # batch-stacked matmul on the MXU (bf16 operands, f32 accumulation)
    return jnp.einsum('blc,co->blo', a, b, preferred_element_type=jnp.float32)


def _mm_f32(a_hi, a_lo, w):
    # ~f32-accurate matmul on the bf16 MXU: drops only the O(2^-16) a_lo@w_lo term.
    w_hi, w_lo = _split_f32(w)
    return (_ein(a_hi, w_hi) + _ein(a_lo, w_hi)) + _ein(a_hi, w_lo)


def gyronet_kernel(x0_ref, w_ref, out_ref):
    # x0_ref: (BB, L0, K0*IN_DIM) layer-0 im2col'd raw input (norm folded into w0)
    # w_ref : (WROWS, 128) consolidated parameter blob
    b0 = w_ref[V_OFF + 0:V_OFF + 1, 0:C0]
    b1 = w_ref[V_OFF + 1:V_OFF + 2, 0:C1]
    b2 = w_ref[V_OFF + 2:V_OFF + 3, 0:C2]
    bh = w_ref[V_OFF + 3:V_OFF + 4, 0:OUT_DIM]
    base = w_ref[V_OFF + 4:V_OFF + 5, 0:OUT_DIM]
    expf = w_ref[V_OFF + 5:V_OFF + 6, 0:OUT_DIM]   # already ln(10)-scaled
    linf = w_ref[V_OFF + 6:V_OFF + 7, 0:OUT_DIM]

    # layer 0: single K=18 matmul (im2col done in the wrapper)
    x_hi, x_lo = _split_f32(x0_ref[...])
    w0 = w_ref[W0_OFF:W0_OFF + W0_ROWS, 0:C0]
    h = _gelu(_mm_f32(x_hi, x_lo, w0) + b0)                      # (BB, L0, C0)

    # layers 1 & 2: k accumulating per-tap matmuls (no lane-axis concat im2col)
    def conv_gelu(h, w_off, c_in, c_out, k, d, l_out, bias):
        h_hi, h_lo = _split_f32(h)
        acc = None
        for j in range(k):
            wj = w_ref[w_off + j * c_in:w_off + (j + 1) * c_in, 0:c_out]
            t = _mm_f32(h_hi[:, j * d:j * d + l_out, :],
                        h_lo[:, j * d:j * d + l_out, :], wj)
            acc = t if acc is None else acc + t
        return _gelu(acc + bias)

    h = conv_gelu(h, W1_OFF, C0, C1, K1, D0, L1, b1)             # (BB, L1, C1)
    h = conv_gelu(h, W2_OFF, C1, C2, K2, D0 * D1, L2, b2)        # (BB, T,  C2)

    # folded (1x1 conv + Linear) head, Tanh, x3
    h_hi, h_lo = _split_f32(h)
    wh = w_ref[WH_OFF:WH_OFF + C2, 0:OUT_DIM]
    ys = 3.0 * jnp.tanh(_mm_f32(h_hi, h_lo, wh) + bh)            # (BB, T, OUT_DIM)

    # calibration: cols 0:6 -> 10**(0.01*ys), 6:12 -> ys, 12:14 -> [2,20]*10**ys
    out_ref[...] = base * jnp.exp(expf * ys) + linf * ys


# --------------------------- parameter folding --------------------------------
def fold_params(p):
    """Fold norm/BN/head constants; pack everything into one (WROWS, 128) blob."""
    hp = jax.lax.Precision.HIGHEST                    # folds must not be bf16
    w0s = p['w0'] * p['s0']                           # BN scale into conv0 weights
    w0f = w0s / p['std'][None, :, None]               # input normalization folded in
    b0 = p['t0'] - jnp.dot(p['mean'] / p['std'], jnp.sum(w0s, axis=0), precision=hp)
    w1f = p['w1'] * p['s1']
    w2f = p['w2'] * p['s2']
    wh = jnp.dot(p['w3'][0], p['wl'], precision=hp)   # 1x1 conv + Linear folded
    bh = jnp.dot(p['b3'], p['wl'], precision=hp) + p['bl']

    blob = jnp.zeros((WROWS, WCOLS), jnp.float32)
    blob = blob.at[W0_OFF:W0_OFF + W0_ROWS, 0:C0].set(w0f.reshape(W0_ROWS, C0))
    blob = blob.at[W1_OFF:W1_OFF + K1 * C0, 0:C1].set(w1f.reshape(K1 * C0, C1))
    blob = blob.at[W2_OFF:W2_OFF + K2 * C1, 0:C2].set(w2f.reshape(K2 * C1, C2))
    blob = blob.at[WH_OFF:WH_OFF + C2, 0:OUT_DIM].set(wh)
    blob = blob.at[V_OFF + 0, 0:C0].set(b0)
    blob = blob.at[V_OFF + 1, 0:C1].set(p['t1'])
    blob = blob.at[V_OFF + 2, 0:C2].set(p['t2'])
    blob = blob.at[V_OFF + 3, 0:OUT_DIM].set(bh)
    blob = blob.at[V_OFF + 4, 0:OUT_DIM].set(CALI_BASE)
    blob = blob.at[V_OFF + 5, 0:OUT_DIM].set(LN10 * CALI_EXPF)
    blob = blob.at[V_OFF + 6, 0:OUT_DIM].set(CALI_LINF)
    return blob


# ------------------------------- wrapper --------------------------------------
def _num_tensorcores():
    """Best-effort TensorCores per chip (v7x = 2); default 1 keeps a single block."""
    try:
        kind = jax.devices()[0].device_kind.lower()
    except Exception:
        return 1
    return 2 if ("v7" in kind or "7x" in kind) else 1


def gyronet_pallas(us, p):
    bsz = us.shape[0]
    wblob = fold_params(p)

    # replication-pad the raw sequence on the left (normalization is folded into
    # conv0 and commutes with the per-timestep replication pad)
    first = us[:, :1, :]
    xp = jnp.concatenate(
        [jnp.broadcast_to(first, (bsz, P0, IN_DIM)), us], axis=1)        # (B, LP, 6)

    # layer-0 im2col in XLA: channel order [tap0 | tap1 | tap2]
    x0 = jnp.concatenate([xp[:, j:j + L0, :] for j in range(K0)], axis=-1)  # (B, L0, 18)

    # batch block per grid step (tunable; VMEM use stays tiny even at BB=256 so no
    # vmem_limit override is needed). On dual-core parts split a tiny batch in two
    # so both TensorCores get a block.
    BB = min(bsz, 256)
    ncores = _num_tensorcores()
    if ncores > 1 and bsz > 1 and pl.cdiv(bsz, BB) < ncores:
        BB = pl.cdiv(bsz, ncores)
    pad_b = (-bsz) % BB
    if pad_b:
        x0 = jnp.concatenate(
            [x0, jnp.zeros((pad_b, L0, K0 * IN_DIM), x0.dtype)], axis=0)
    nblk = (bsz + pad_b) // BB

    out = pl.pallas_call(
        gyronet_kernel,
        out_shape=jax.ShapeDtypeStruct((bsz + pad_b, T, OUT_DIM), jnp.float32),
        grid=(nblk,),
        in_specs=[
            pl.BlockSpec((BB, L0, K0 * IN_DIM), lambda i: (i, 0, 0)),
            pl.BlockSpec((WROWS, WCOLS), lambda i: (0, 0)),
        ],
        out_specs=pl.BlockSpec((BB, T, OUT_DIM), lambda i: (i, 0, 0)),
        compiler_params=pltpu.CompilerParams(dimension_semantics=("parallel",)),
    )(x0, wblob)
    return out[:bsz]


# ----------------------- deterministic parameter init -------------------------
def init_params(key):
    keys = iter(jax.random.split(key, 24))

    def nrm(shape, scale):
        return scale * jax.random.normal(next(keys), shape, jnp.float32)

    def uni(shape, lo, hi):
        return jax.random.uniform(next(keys), shape, jnp.float32, lo, hi)

    p = {}
    p['mean'] = nrm((IN_DIM,), 0.1)
    p['std'] = uni((IN_DIM,), 0.5, 1.5)

    def conv_bn(cin, cout, k):
        # conv weight stored tap-major (k, C_in, C_out); BN folded to scale/shift
        w = nrm((k, cin, cout), 1.0 / math.sqrt(cin * k))
        b = nrm((cout,), 0.05)
        gamma = uni((cout,), 0.8, 1.2)
        beta = nrm((cout,), 0.05)
        rmean = nrm((cout,), 0.05)
        rvar = uni((cout,), 0.5, 1.5)
        s = gamma / jnp.sqrt(rvar + BN_EPS)
        t = (b - rmean) * s + beta
        return w, s, t

    p['w0'], p['s0'], p['t0'] = conv_bn(IN_DIM, C0, K0)
    p['w1'], p['s1'], p['t1'] = conv_bn(C0, C1, K1)
    p['w2'], p['s2'], p['t2'] = conv_bn(C1, C2, K2)
    p['w3'] = nrm((1, C2, OUT_DIM), 1.0 / math.sqrt(C2))         # 1x1 conv, tap-major
    p['b3'] = nrm((OUT_DIM,), 0.05)
    p['wl'] = nrm((OUT_DIM, OUT_DIM), 1.0 / math.sqrt(OUT_DIM))  # (in, out) layout
    p['bl'] = nrm((OUT_DIM,), 0.05)
    return p


# --------------------------- pure-JAX reference --------------------------------
def gyronet_reference(us, p):
    x = (us - p['mean']) / p['std']
    first = x[:, :1, :]
    xp = jnp.concatenate(
        [jnp.broadcast_to(first, (us.shape[0], P0, IN_DIM)), x], axis=1)

    hp = jax.lax.Precision.HIGHEST

    def dconv(h, w, k, d, l_out):
        out = 0.0
        for j in range(k):
            out = out + jnp.einsum('blc,co->blo', h[:, j * d: j * d + l_out, :],
                                   w[j], precision=hp)
        return out

    h = jax.nn.gelu(dconv(xp, p['w0'], K0, 1, L0) * p['s0'] + p['t0'], approximate=False)
    h = jax.nn.gelu(dconv(h, p['w1'], K1, D0, L1) * p['s1'] + p['t1'], approximate=False)
    h = jax.nn.gelu(dconv(h, p['w2'], K2, D0 * D1, L2) * p['s2'] + p['t2'], approximate=False)
    y_cov = jnp.einsum('blc,co->blo', h, p['w3'][0], precision=hp) + p['b3']
    y = jnp.tanh(jnp.einsum('blc,co->blo', y_cov, p['wl'], precision=hp) + p['bl'])
    ys = 3.0 * y
    return CALI_BASE * jnp.power(10.0, CALI_EXPF * ys) + CALI_LINF * ys


# ------------------------------------ main -------------------------------------
if __name__ == "__main__":
    key = jax.random.PRNGKey(0)
    k_param, k_x = jax.random.split(key)
    params = init_params(k_param)
    us = jax.random.normal(k_x, (B, T, IN_DIM), jnp.float32)   # (batch, seq, in_dim)

    out = jax.block_until_ready(gyronet_pallas(us, params))
    ref = jax.block_until_ready(gyronet_reference(us, params))
    np.testing.assert_allclose(np.asarray(out), np.asarray(ref), rtol=5e-3, atol=5e-3)

    print("KERNEL_OK")
</pallas_src>

<mosaic_0001>
module attributes {stable_mosaic.version = 11 : i64} {
  func.func @gyronet_kernel(%arg0: i32, %arg1: memref<2x28x18xf32, #tpu.memory_space<vmem>>, %arg2: memref<240x128xf32, #tpu.memory_space<vmem>>, %arg3: memref<2x16x14xf32, #tpu.memory_space<vmem>>) attributes {dimension_semantics = [#tpu.dimension_semantics<parallel>], iteration_bounds = array<i64: 1>, scalar_prefetch = 0 : i64, scratch_operands = 0 : i64, tpu.core_type = #tpu.core_type<tc>, window_params = [{transform_indices = @transform_0, window_bounds = array<i64: 2, 28, 18>}, {pipeline_mode = #tpu.pipeline_mode<synchronous>, transform_indices = @transform_1, window_bounds = array<i64: 240, 128>}, {transform_indices = @transform_2, window_bounds = array<i64: 2, 16, 14>}]} {
    %c232 = arith.constant 232 : index
    %c0 = arith.constant 0 : index
    %0 = vector.load %arg2[%c232, %c0] : memref<240x128xf32, #tpu.memory_space<vmem>>, vector<1x16xf32>
    %c233 = arith.constant 233 : index
    %c0_0 = arith.constant 0 : index
    %1 = vector.load %arg2[%c233, %c0_0] : memref<240x128xf32, #tpu.memory_space<vmem>>, vector<1x32xf32>
    %c234 = arith.constant 234 : index
    %c0_1 = arith.constant 0 : index
    %2 = vector.load %arg2[%c234, %c0_1] : memref<240x128xf32, #tpu.memory_space<vmem>>, vector<1x64xf32>
    %c235 = arith.constant 235 : index
    %c0_2 = arith.constant 0 : index
    %3 = vector.load %arg2[%c235, %c0_2] : memref<240x128xf32, #tpu.memory_space<vmem>>, vector<1x14xf32>
    %c236 = arith.constant 236 : index
    %c0_3 = arith.constant 0 : index
    %4 = vector.load %arg2[%c236, %c0_3] : memref<240x128xf32, #tpu.memory_space<vmem>>, vector<1x14xf32>
    %c237 = arith.constant 237 : index
    %c0_4 = arith.constant 0 : index
    %5 = vector.load %arg2[%c237, %c0_4] : memref<240x128xf32, #tpu.memory_space<vmem>>, vector<1x14xf32>
    %c238 = arith.constant 238 : index
    %c0_5 = arith.constant 0 : index
    %6 = vector.load %arg2[%c238, %c0_5] : memref<240x128xf32, #tpu.memory_space<vmem>>, vector<1x14xf32>
    %c0_6 = arith.constant 0 : index
    %c0_7 = arith.constant 0 : index
    %c0_8 = arith.constant 0 : index
    %7 = vector.load %arg1[%c0_6, %c0_7, %c0_8] : memref<2x28x18xf32, #tpu.memory_space<vmem>>, vector<2x28x18xf32>
    %8 = arith.truncf %7 : vector<2x28x18xf32> to vector<2x28x18xbf16>
    %9 = arith.extf %8 : vector<2x28x18xbf16> to vector<2x28x18xf32>
    %10 = arith.subf %7, %9 : vector<2x28x18xf32>
    %11 = arith.truncf %10 : vector<2x28x18xf32> to vector<2x28x18xbf16>
    %c0_9 = arith.constant 0 : index
    %c0_10 = arith.constant 0 : index
    %12 = vector.load %arg2[%c0_9, %c0_10] : memref<240x128xf32, #tpu.memory_space<vmem>>, vector<18x16xf32>
    %13 = arith.truncf %12 : vector<18x16xf32> to vector<18x16xbf16>
    %14 = arith.extf %13 : vector<18x16xbf16> to vector<18x16xf32>
    %15 = arith.subf %12, %14 : vector<18x16xf32>
    %16 = arith.truncf %15 : vector<18x16xf32> to vector<18x16xbf16>
    "tpu.trace_start"() <{level = 10 : i32, message = "blc,co->blo"}> : () -> ()
    %cst = arith.constant dense<0.000000e+00> : vector<2x28x16xf32>
    %17 = tpu.matmul %8, %13, %cst {dimension_numbers = #tpu.dot_dimension_numbers<[2], [0], [0, 1], [1], [0, 0, 0, 1, 1, 1], [], []>} : vector<2x28x18xbf16>, vector<18x16xbf16>, vector<2x28x16xf32> -> vector<2x28x16xf32>
    %cst_11 = arith.constant dense<0.000000e+00> : vector<2x28x16xf32>
    %18 = tpu.matmul %11, %13, %cst_11 {dimension_numbers = #tpu.dot_dimension_numbers<[2], [0], [0, 1], [1], [0, 0, 0, 1, 1, 1], [], []>} : vector<2x28x18xbf16>, vector<18x16xbf16>, vector<2x28x16xf32> -> vector<2x28x16xf32>
    "tpu.trace_stop"() : () -> ()
    %19 = arith.addf %17, %18 : vector<2x28x16xf32>
    "tpu.trace_start"() <{level = 10 : i32, message = "blc,co->blo"}> : () -> ()
    %cst_12 = arith.constant dense<0.000000e+00> : vector<2x28x16xf32>
    %20 = tpu.matmul %8, %16, %cst_12 {dimension_numbers = #tpu.dot_dimension_numbers<[2], [0], [0, 1], [1], [0, 0, 0, 1, 1, 1], [], []>} : vector<2x28x18xbf16>, vector<18x16xbf16>, vector<2x28x16xf32> -> vector<2x28x16xf32>
    "tpu.trace_stop"() : () -> ()
    %21 = arith.addf %19, %20 : vector<2x28x16xf32>
    %22 = vector.shape_cast %0 : vector<1x16xf32> to vector<1x1x16xf32>
    %23 = vector.broadcast %22 : vector<1x1x16xf32> to vector<2x28x16xf32>
    %24 = arith.addf %21, %23 : vector<2x28x16xf32>
    %cst_13 = arith.constant 5.000000e-01 : f32
    %25 = vector.broadcast %cst_13 : f32 to vector<2x28x16xf32>
    %26 = arith.mulf %25, %24 : vector<2x28x16xf32>
    %cst_14 = arith.constant 0.707106769 : f32
    %27 = vector.broadcast %cst_14 : f32 to vector<2x28x16xf32>
    %28 = arith.mulf %24, %27 : vector<2x28x16xf32>
    %cst_15 = arith.constant 0.000000e+00 : f32
    %29 = vector.broadcast %cst_15 : f32 to vector<2x28x16xf32>
    %30 = arith.cmpf olt, %28, %29 : vector<2x28x16xf32>
    %cst_16 = arith.constant -1.000000e+00 : f32
    %cst_17 = arith.constant 1.000000e+00 : f32
    %31 = vector.broadcast %cst_16 : f32 to vector<2x28x16xf32>
    %32 = vector.broadcast %cst_17 : f32 to vector<2x28x16xf32>
    %33 = arith.select %30, %31, %32 : vector<2x28x16xi1>, vector<2x28x16xf32>
    %34 = math.absf %28 : vector<2x28x16xf32>
    %cst_18 = arith.constant 0.327591091 : f32
    %35 = vector.broadcast %cst_18 : f32 to vector<2x28x16xf32>
    %36 = arith.mulf %35, %34 : vector<2x28x16xf32>
    %cst_19 = arith.constant 1.000000e+00 : f32
    %37 = vector.broadcast %cst_19 : f32 to vector<2x28x16xf32>
    %38 = arith.addf %37, %36 : vector<2x28x16xf32>
    %cst_20 = arith.constant 1.000000e+00 : f32
    %39 = vector.broadcast %cst_20 : f32 to vector<2x28x16xf32>
    %40 = arith.divf %39, %38 : vector<2x28x16xf32>
    %cst_21 = arith.constant 1.06140542 : f32
    %41 = vector.broadcast %cst_21 : f32 to vector<2x28x16xf32>
    %42 = arith.mulf %41, %40 : vector<2x28x16xf32>
    %cst_22 = arith.constant -1.45315206 : f32
    %43 = vector.broadcast %cst_22 : f32 to vector<2x28x16xf32>
    %44 = arith.addf %42, %43 : vector<2x28x16xf32>
    %45 = arith.mulf %44, %40 : vector<2x28x16xf32>
    %cst_23 = arith.constant 1.42141378 : f32
    %46 = vector.broadcast %cst_23 : f32 to vector<2x28x16xf32>
    %47 = arith.addf %45, %46 : vector<2x28x16xf32>
    %48 = arith.mulf %47, %40 : vector<2x28x16xf32>
    %cst_24 = arith.constant -0.284496725 : f32
    %49 = vector.broadcast %cst_24 : f32 to vector<2x28x16xf32>
    %50 = arith.addf %48, %49 : vector<2x28x16xf32>
    %51 = arith.mulf %50, %40 : vector<2x28x16xf32>
    %cst_25 = arith.constant 0.254829586 : f32
    %52 = vector.broadcast %cst_25 : f32 to vector<2x28x16xf32>
    %53 = arith.addf %51, %52 : vector<2x28x16xf32>
    %54 = arith.mulf %53, %40 : vector<2x28x16xf32>
    %cst_26 = arith.constant 0.000000e+00 : f32
    %55 = vector.broadcast %cst_26 : f32 to vector<2x28x16xf32>
    %56 = arith.subf %55, %34 : vector<2x28x16xf32>
    %57 = arith.mulf %56, %34 : vector<2x28x16xf32>
    %58 = math.exp %57 : vector<2x28x16xf32>
    %59 = arith.mulf %54, %58 : vector<2x28x16xf32>
    %cst_27 = arith.constant 1.000000e+00 : f32
    %60 = vector.broadcast %cst_27 : f32 to vector<2x28x16xf32>
    %61 = arith.subf %60, %59 : vector<2x28x16xf32>
    %62 = arith.mulf %33, %61 : vector<2x28x16xf32>
    %cst_28 = arith.constant 1.000000e+00 : f32
    %63 = vector.broadcast %cst_28 : f32 to vector<2x28x16xf32>
    %64 = arith.addf %63, %62 : vector<2x28x16xf32>
    %65 = arith.mulf %26, %64 : vector<2x28x16xf32>
    %66 = arith.truncf %65 : vector<2x28x16xf32> to vector<2x28x16xbf16>
    %67 = arith.extf %66 : vector<2x28x16xbf16> to vector<2x28x16xf32>
    %68 = arith.subf %65, %67 : vector<2x28x16xf32>
    %69 = arith.truncf %68 : vector<2x28x16xf32> to vector<2x28x16xbf16>
    %c24 = arith.constant 24 : index
    %c0_29 = arith.constant 0 : index
    %70 = vector.load %arg2[%c24, %c0_29] : memref<240x128xf32, #tpu.memory_space<vmem>>, vector<16x32xf32>
    %71 = vector.extract_strided_slice %66 {offsets = [0, 0, 0], sizes = [2, 24, 16], strides = [1, 1, 1]} : vector<2x28x16xbf16> to vector<2x24x16xbf16>
    %72 = vector.extract_strided_slice %69 {offsets = [0, 0, 0], sizes = [2, 24, 16], strides = [1, 1, 1]} : vector<2x28x16xbf16> to vector<2x24x16xbf16>
    %73 = arith.truncf %70 : vector<16x32xf32> to vector<16x32xbf16>
    %74 = arith.extf %73 : vector<16x32xbf16> to vector<16x32xf32>
    %75 = arith.subf %70, %74 : vector<16x32xf32>
    %76 = arith.truncf %75 : vector<16x32xf32> to vector<16x32xbf16>
    "tpu.trace_start"() <{level = 10 : i32, message = "blc,co->blo"}> : () -> ()
    %cst_30 = arith.constant dense<0.000000e+00> : vector<2x24x32xf32>
    %77 = tpu.matmul %71, %73, %cst_30 {dimension_numbers = #tpu.dot_dimension_numbers<[2], [0], [0, 1], [1], [0, 0, 0, 1, 1, 1], [], []>} : vector<2x24x16xbf16>, vector<16x32xbf16>, vector<2x24x32xf32> -> vector<2x24x32xf32>
    %cst_31 = arith.constant dense<0.000000e+00> : vector<2x24x32xf32>
    %78 = tpu.matmul %72, %73, %cst_31 {dimension_numbers = #tpu.dot_dimension_numbers<[2], [0], [0, 1], [1], [0, 0, 0, 1, 1, 1], [], []>} : vector<2x24x16xbf16>, vector<16x32xbf16>, vector<2x24x32xf32> -> vector<2x24x32xf32>
    "tpu.trace_stop"() : () -> ()
    %79 = arith.addf %77, %78 : vector<2x24x32xf32>
    "tpu.trace_start"() <{level = 10 : i32, message = "blc,co->blo"}> : () -> ()
    %cst_32 = arith.constant dense<0.000000e+00> : vector<2x24x32xf32>
    %80 = tpu.matmul %71, %76, %cst_32 {dimension_numbers = #tpu.dot_dimension_numbers<[2], [0], [0, 1], [1], [0, 0, 0, 1, 1, 1], [], []>} : vector<2x24x16xbf16>, vector<16x32xbf16>, vector<2x24x32xf32> -> vector<2x24x32xf32>
    "tpu.trace_stop"() : () -> ()
    %81 = arith.addf %79, %80 : vector<2x24x32xf32>
    %c40 = arith.constant 40 : index
    %c0_33 = arith.constant 0 : index
    %82 = vector.load %arg2[%c40, %c0_33] : memref<240x128xf32, #tpu.memory_space<vmem>>, vector<16x32xf32>
    %83 = vector.extract_strided_slice %66 {offsets = [0, 2, 0], sizes = [2, 24, 16], strides = [1, 1, 1]} : vector<2x28x16xbf16> to vector<2x24x16xbf16>
    %84 = vector.extract_strided_slice %69 {offsets = [0, 2, 0], sizes = [2, 24, 16], strides = [1, 1, 1]} : vector<2x28x16xbf16> to vector<2x24x16xbf16>
    %85 = arith.truncf %82 : vector<16x32xf32> to vector<16x32xbf16>
    %86 = arith.extf %85 : vector<16x32xbf16> to vector<16x32xf32>
    %87 = arith.subf %82, %86 : vector<16x32xf32>
    %88 = arith.truncf %87 : vector<16x32xf32> to vector<16x32xbf16>
    "tpu.trace_start"() <{level = 10 : i32, message = "blc,co->blo"}> : () -> ()
    %cst_34 = arith.constant dense<0.000000e+00> : vector<2x24x32xf32>
    %89 = tpu.matmul %83, %85, %cst_34 {dimension_numbers = #tpu.dot_dimension_numbers<[2], [0], [0, 1], [1], [0, 0, 0, 1, 1, 1], [], []>} : vector<2x24x16xbf16>, vector<16x32xbf16>, vector<2x24x32xf32> -> vector<2x24x32xf32>
    %cst_35 = arith.constant dense<0.000000e+00> : vector<2x24x32xf32>
    %90 = tpu.matmul %84, %85, %cst_35 {dimension_numbers = #tpu.dot_dimension_numbers<[2], [0], [0, 1], [1], [0, 0, 0, 1, 1, 1], [], []>} : vector<2x24x16xbf16>, vector<16x32xbf16>, vector<2x24x32xf32> -> vector<2x24x32xf32>
    "tpu.trace_stop"() : () -> ()
    %91 = arith.addf %89, %90 : vector<2x24x32xf32>
    "tpu.trace_start"() <{level = 10 : i32, message = "blc,co->blo"}> : () -> ()
    %cst_36 = arith.constant dense<0.000000e+00> : vector<2x24x32xf32>
    %92 = tpu.matmul %83, %88, %cst_36 {dimension_numbers = #tpu.dot_dimension_numbers<[2], [0], [0, 1], [1], [0, 0, 0, 1, 1, 1], [], []>} : vector<2x24x16xbf16>, vector<16x32xbf16>, vector<2x24x32xf32> -> vector<2x24x32xf32>
    "tpu.trace_stop"() : () -> ()
    %93 = arith.addf %91, %92 : vector<2x24x32xf32>
    %94 = arith.addf %81, %93 : vector<2x24x32xf32>
    %c56 = arith.constant 56 : index
    %c0_37 = arith.constant 0 : index
    %95 = vector.load %arg2[%c56, %c0_37] : memref<240x128xf32, #tpu.memory_space<vmem>>, vector<16x32xf32>
    %96 = vector.extract_strided_slice %66 {offsets = [0, 4, 0], sizes = [2, 24, 16], strides = [1, 1, 1]} : vector<2x28x16xbf16> to vector<2x24x16xbf16>
    %97 = vector.extract_strided_slice %69 {offsets = [0, 4, 0], sizes = [2, 24, 16], strides = [1, 1, 1]} : vector<2x28x16xbf16> to vector<2x24x16xbf16>
    %98 = arith.truncf %95 : vector<16x32xf32> to vector<16x32xbf16>
    %99 = arith.extf %98 : vector<16x32xbf16> to vector<16x32xf32>
    %100 = arith.subf %95, %99 : vector<16x32xf32>
    %101 = arith.truncf %100 : vector<16x32xf32> to vector<16x32xbf16>
    "tpu.trace_start"() <{level = 10 : i32, message = "blc,co->blo"}> : () -> ()
    %cst_38 = arith.constant dense<0.000000e+00> : vector<2x24x32xf32>
    %102 = tpu.matmul %96, %98, %cst_38 {dimension_numbers = #tpu.dot_dimension_numbers<[2], [0], [0, 1], [1], [0, 0, 0, 1, 1, 1], [], []>} : vector<2x24x16xbf16>, vector<16x32xbf16>, vector<2x24x32xf32> -> vector<2x24x32xf32>
    %cst_39 = arith.constant dense<0.000000e+00> : vector<2x24x32xf32>
    %103 = tpu.matmul %97, %98, %cst_39 {dimension_numbers = #tpu.dot_dimension_numbers<[2], [0], [0, 1], [1], [0, 0, 0, 1, 1, 1], [], []>} : vector<2x24x16xbf16>, vector<16x32xbf16>, vector<2x24x32xf32> -> vector<2x24x32xf32>
    "tpu.trace_stop"() : () -> ()
    %104 = arith.addf %102, %103 : vector<2x24x32xf32>
    "tpu.trace_start"() <{level = 10 : i32, message = "blc,co->blo"}> : () -> ()
    %cst_40 = arith.constant dense<0.000000e+00> : vector<2x24x32xf32>
    %105 = tpu.matmul %96, %101, %cst_40 {dimension_numbers = #tpu.dot_dimension_numbers<[2], [0], [0, 1], [1], [0, 0, 0, 1, 1, 1], [], []>} : vector<2x24x16xbf16>, vector<16x32xbf16>, vector<2x24x32xf32> -> vector<2x24x32xf32>
    "tpu.trace_stop"() : () -> ()
    %106 = arith.addf %104, %105 : vector<2x24x32xf32>
    %107 = arith.addf %94, %106 : vector<2x24x32xf32>
    %108 = vector.shape_cast %1 : vector<1x32xf32> to vector<1x1x32xf32>
    %109 = vector.broadcast %108 : vector<1x1x32xf32> to vector<2x24x32xf32>
    %110 = arith.addf %107, %109 : vector<2x24x32xf32>
    %cst_41 = arith.constant 5.000000e-01 : f32
    %111 = vector.broadcast %cst_41 : f32 to vector<2x24x32xf32>
    %112 = arith.mulf %111, %110 : vector<2x24x32xf32>
    %cst_42 = arith.constant 0.707106769 : f32
    %113 = vector.broadcast %cst_42 : f32 to vector<2x24x32xf32>
    %114 = arith.mulf %110, %113 : vector<2x24x32xf32>
    %cst_43 = arith.constant 0.000000e+00 : f32
    %115 = vector.broadcast %cst_43 : f32 to vector<2x24x32xf32>
    %116 = arith.cmpf olt, %114, %115 : vector<2x24x32xf32>
    %cst_44 = arith.constant -1.000000e+00 : f32
    %cst_45 = arith.constant 1.000000e+00 : f32
    %117 = vector.broadcast %cst_44 : f32 to vector<2x24x32xf32>
    %118 = vector.broadcast %cst_45 : f32 to vector<2x24x32xf32>
    %119 = arith.select %116, %117, %118 : vector<2x24x32xi1>, vector<2x24x32xf32>
    %120 = math.absf %114 : vector<2x24x32xf32>
    %cst_46 = arith.constant 0.327591091 : f32
    %121 = vector.broadcast %cst_46 : f32 to vector<2x24x32xf32>
    %122 = arith.mulf %121, %120 : vector<2x24x32xf32>
    %cst_47 = arith.constant 1.000000e+00 : f32
    %123 = vector.broadcast %cst_47 : f32 to vector<2x24x32xf32>
    %124 = arith.addf %123, %122 : vector<2x24x32xf32>
    %cst_48 = arith.constant 1.000000e+00 : f32
    %125 = vector.broadcast %cst_48 : f32 to vector<2x24x32xf32>
    %126 = arith.divf %125, %124 : vector<2x24x32xf32>
    %cst_49 = arith.constant 1.06140542 : f32
    %127 = vector.broadcast %cst_49 : f32 to vector<2x24x32xf32>
    %128 = arith.mulf %127, %126 : vector<2x24x32xf32>
    %cst_50 = arith.constant -1.45315206 : f32
    %129 = vector.broadcast %cst_50 : f32 to vector<2x24x32xf32>
    %130 = arith.addf %128, %129 : vector<2x24x32xf32>
    %131 = arith.mulf %130, %126 : vector<2x24x32xf32>
    %cst_51 = arith.constant 1.42141378 : f32
    %132 = vector.broadcast %cst_51 : f32 to vector<2x24x32xf32>
    %133 = arith.addf %131, %132 : vector<2x24x32xf32>
    %134 = arith.mulf %133, %126 : vector<2x24x32xf32>
    %cst_52 = arith.constant -0.284496725 : f32
    %135 = vector.broadcast %cst_52 : f32 to vector<2x24x32xf32>
    %136 = arith.addf %134, %135 : vector<2x24x32xf32>
    %137 = arith.mulf %136, %126 : vector<2x24x32xf32>
    %cst_53 = arith.constant 0.254829586 : f32
    %138 = vector.broadcast %cst_53 : f32 to vector<2x24x32xf32>
    %139 = arith.addf %137, %138 : vector<2x24x32xf32>
    %140 = arith.mulf %139, %126 : vector<2x24x32xf32>
    %cst_54 = arith.constant 0.000000e+00 : f32
    %141 = vector.broadcast %cst_54 : f32 to vector<2x24x32xf32>
    %142 = arith.subf %141, %120 : vector<2x24x32xf32>
    %143 = arith.mulf %142, %120 : vector<2x24x32xf32>
    %144 = math.exp %143 : vector<2x24x32xf32>
    %145 = arith.mulf %140, %144 : vector<2x24x32xf32>
    %cst_55 = arith.constant 1.000000e+00 : f32
    %146 = vector.broadcast %cst_55 : f32 to vector<2x24x32xf32>
    %147 = arith.subf %146, %145 : vector<2x24x32xf32>
    %148 = arith.mulf %119, %147 : vector<2x24x32xf32>
    %cst_56 = arith.constant 1.000000e+00 : f32
    %149 = vector.broadcast %cst_56 : f32 to vector<2x24x32xf32>
    %150 = arith.addf %149, %148 : vector<2x24x32xf32>
    %151 = arith.mulf %112, %150 : vector<2x24x32xf32>
    %152 = arith.truncf %151 : vector<2x24x32xf32> to vector<2x24x32xbf16>
    %153 = arith.extf %152 : vector<2x24x32xbf16> to vector<2x24x32xf32>
    %154 = arith.subf %151, %153 : vector<2x24x32xf32>
    %155 = arith.truncf %154 : vector<2x24x32xf32> to vector<2x24x32xbf16>
    %c72 = arith.constant 72 : index
    %c0_57 = arith.constant 0 : index
    %156 = vector.load %arg2[%c72, %c0_57] : memref<240x128xf32, #tpu.memory_space<vmem>>, vector<32x64xf32>
    %157 = vector.extract_strided_slice %152 {offsets = [0, 0, 0], sizes = [2, 16, 32], strides = [1, 1, 1]} : vector<2x24x32xbf16> to vector<2x16x32xbf16>
    %158 = vector.extract_strided_slice %155 {offsets = [0, 0, 0], sizes = [2, 16, 32], strides = [1, 1, 1]} : vector<2x24x32xbf16> to vector<2x16x32xbf16>
    %159 = arith.truncf %156 : vector<32x64xf32> to vector<32x64xbf16>
    %160 = arith.extf %159 : vector<32x64xbf16> to vector<32x64xf32>
    %161 = arith.subf %156, %160 : vector<32x64xf32>
    %162 = arith.truncf %161 : vector<32x64xf32> to vector<32x64xbf16>
    "tpu.trace_start"() <{level = 10 : i32, message = "blc,co->blo"}> : () -> ()
    %cst_58 = arith.constant dense<0.000000e+00> : vector<2x16x64xf32>
    %163 = tpu.matmul %157, %159, %cst_58 {dimension_numbers = #tpu.dot_dimension_numbers<[2], [0], [0, 1], [1], [0, 0, 0, 1, 1, 1], [], []>} : vector<2x16x32xbf16>, vector<32x64xbf16>, vector<2x16x64xf32> -> vector<2x16x64xf32>
    %cst_59 = arith.constant dense<0.000000e+00> : vector<2x16x64xf32>
    %164 = tpu.matmul %158, %159, %cst_59 {dimension_numbers = #tpu.dot_dimension_numbers<[2], [0], [0, 1], [1], [0, 0, 0, 1, 1, 1], [], []>} : vector<2x16x32xbf16>, vector<32x64xbf16>, vector<2x16x64xf32> -> vector<2x16x64xf32>
    "tpu.trace_stop"() : () -> ()
    %165 = arith.addf %163, %164 : vector<2x16x64xf32>
    "tpu.trace_start"() <{level = 10 : i32, message = "blc,co->blo"}> : () -> ()
    %cst_60 = arith.constant dense<0.000000e+00> : vector<2x16x64xf32>
    %166 = tpu.matmul %157, %162, %cst_60 {dimension_numbers = #tpu.dot_dimension_numbers<[2], [0], [0, 1], [1], [0, 0, 0, 1, 1, 1], [], []>} : vector<2x16x32xbf16>, vector<32x64xbf16>, vector<2x16x64xf32> -> vector<2x16x64xf32>
    "tpu.trace_stop"() : () -> ()
    %167 = arith.addf %165, %166 : vector<2x16x64xf32>
    %c104 = arith.constant 104 : index
    %c0_61 = arith.constant 0 : index
    %168 = vector.load %arg2[%c104, %c0_61] : memref<240x128xf32, #tpu.memory_space<vmem>>, vector<32x64xf32>
    %169 = vector.extract_strided_slice %152 {offsets = [0, 4, 0], sizes = [2, 16, 32], strides = [1, 1, 1]} : vector<2x24x32xbf16> to vector<2x16x32xbf16>
    %170 = vector.extract_strided_slice %155 {offsets = [0, 4, 0], sizes = [2, 16, 32], strides = [1, 1, 1]} : vector<2x24x32xbf16> to vector<2x16x32xbf16>
    %171 = arith.truncf %168 : vector<32x64xf32> to vector<32x64xbf16>
    %172 = arith.extf %171 : vector<32x64xbf16> to vector<32x64xf32>
    %173 = arith.subf %168, %172 : vector<32x64xf32>
    %174 = arith.truncf %173 : vector<32x64xf32> to vector<32x64xbf16>
    "tpu.trace_start"() <{level = 10 : i32, message = "blc,co->blo"}> : () -> ()
    %cst_62 = arith.constant dense<0.000000e+00> : vector<2x16x64xf32>
    %175 = tpu.matmul %169, %171, %cst_62 {dimension_numbers = #tpu.dot_dimension_numbers<[2], [0], [0, 1], [1], [0, 0, 0, 1, 1, 1], [], []>} : vector<2x16x32xbf16>, vector<32x64xbf16>, vector<2x16x64xf32> -> vector<2x16x64xf32>
    %cst_63 = arith.constant dense<0.000000e+00> : vector<2x16x64xf32>
    %176 = tpu.matmul %170, %171, %cst_63 {dimension_numbers = #tpu.dot_dimension_numbers<[2], [0], [0, 1], [1], [0, 0, 0, 1, 1, 1], [], []>} : vector<2x16x32xbf16>, vector<32x64xbf16>, vector<2x16x64xf32> -> vector<2x16x64xf32>
    "tpu.trace_stop"() : () -> ()
    %177 = arith.addf %175, %176 : vector<2x16x64xf32>
    "tpu.trace_start"() <{level = 10 : i32, message = "blc,co->blo"}> : () -> ()
    %cst_64 = arith.constant dense<0.000000e+00> : vector<2x16x64xf32>
    %178 = tpu.matmul %169, %174, %cst_64 {dimension_numbers = #tpu.dot_dimension_numbers<[2], [0], [0, 1], [1], [0, 0, 0, 1, 1, 1], [], []>} : vector<2x16x32xbf16>, vector<32x64xbf16>, vector<2x16x64xf32> -> vector<2x16x64xf32>
    "tpu.trace_stop"() : () -> ()
    %179 = arith.addf %177, %178 : vector<2x16x64xf32>
    %180 = arith.addf %167, %179 : vector<2x16x64xf32>
    %c136 = arith.constant 136 : index
    %c0_65 = arith.constant 0 : index
    %181 = vector.load %arg2[%c136, %c0_65] : memref<240x128xf32, #tpu.memory_space<vmem>>, vector<32x64xf32>
    %182 = vector.extract_strided_slice %152 {offsets = [0, 8, 0], sizes = [2, 16, 32], strides = [1, 1, 1]} : vector<2x24x32xbf16> to vector<2x16x32xbf16>
    %183 = vector.extract_strided_slice %155 {offsets = [0, 8, 0], sizes = [2, 16, 32], strides = [1, 1, 1]} : vector<2x24x32xbf16> to vector<2x16x32xbf16>
    %184 = arith.truncf %181 : vector<32x64xf32> to vector<32x64xbf16>
    %185 = arith.extf %184 : vector<32x64xbf16> to vector<32x64xf32>
    %186 = arith.subf %181, %185 : vector<32x64xf32>
    %187 = arith.truncf %186 : vector<32x64xf32> to vector<32x64xbf16>
    "tpu.trace_start"() <{level = 10 : i32, message = "blc,co->blo"}> : () -> ()
    %cst_66 = arith.constant dense<0.000000e+00> : vector<2x16x64xf32>
    %188 = tpu.matmul %182, %184, %cst_66 {dimension_numbers = #tpu.dot_dimension_numbers<[2], [0], [0, 1], [1], [0, 0, 0, 1, 1, 1], [], []>} : vector<2x16x32xbf16>, vector<32x64xbf16>, vector<2x16x64xf32> -> vector<2x16x64xf32>
    %cst_67 = arith.constant dense<0.000000e+00> : vector<2x16x64xf32>
    %189 = tpu.matmul %183, %184, %cst_67 {dimension_numbers = #tpu.dot_dimension_numbers<[2], [0], [0, 1], [1], [0, 0, 0, 1, 1, 1], [], []>} : vector<2x16x32xbf16>, vector<32x64xbf16>, vector<2x16x64xf32> -> vector<2x16x64xf32>
    "tpu.trace_stop"() : () -> ()
    %190 = arith.addf %188, %189 : vector<2x16x64xf32>
    "tpu.trace_start"() <{level = 10 : i32, message = "blc,co->blo"}> : () -> ()
    %cst_68 = arith.constant dense<0.000000e+00> : vector<2x16x64xf32>
    %191 = tpu.matmul %182, %187, %cst_68 {dimension_numbers = #tpu.dot_dimension_numbers<[2], [0], [0, 1], [1], [0, 0, 0, 1, 1, 1], [], []>} : vector<2x16x32xbf16>, vector<32x64xbf16>, vector<2x16x64xf32> -> vector<2x16x64xf32>
    "tpu.trace_stop"() : () -> ()
    %192 = arith.addf %190, %191 : vector<2x16x64xf32>
    %193 = arith.addf %180, %192 : vector<2x16x64xf32>
    %194 = vector.shape_cast %2 : vector<1x64xf32> to vector<1x1x64xf32>
    %195 = vector.broadcast %194 : vector<1x1x64xf32> to vector<2x16x64xf32>
    %196 = arith.addf %193, %195 : vector<2x16x64xf32>
    %cst_69 = arith.constant 5.000000e-01 : f32
    %197 = vector.broadcast %cst_69 : f32 to vector<2x16x64xf32>
    %198 = arith.mulf %197, %196 : vector<2x16x64xf32>
    %cst_70 = arith.constant 0.707106769 : f32
    %199 = vector.broadcast %cst_70 : f32 to vector<2x16x64xf32>
    %200 = arith.mulf %196, %199 : vector<2x16x64xf32>
    %cst_71 = arith.constant 0.000000e+00 : f32
    %201 = vector.broadcast %cst_71 : f32 to vector<2x16x64xf32>
    %202 = arith.cmpf olt, %200, %201 : vector<2x16x64xf32>
    %cst_72 = arith.constant -1.000000e+00 : f32
    %cst_73 = arith.constant 1.000000e+00 : f32
    %203 = vector.broadcast %cst_72 : f32 to vector<2x16x64xf32>
    %204 = vector.broadcast %cst_73 : f32 to vector<2x16x64xf32>
    %205 = arith.select %202, %203, %204 : vector<2x16x64xi1>, vector<2x16x64xf32>
    %206 = math.absf %200 : vector<2x16x64xf32>
    %cst_74 = arith.constant 0.327591091 : f32
    %207 = vector.broadcast %cst_74 : f32 to vector<2x16x64xf32>
    %208 = arith.mulf %207, %206 : vector<2x16x64xf32>
    %cst_75 = arith.constant 1.000000e+00 : f32
    %209 = vector.broadcast %cst_75 : f32 to vector<2x16x64xf32>
    %210 = arith.addf %209, %208 : vector<2x16x64xf32>
    %cst_76 = arith.constant 1.000000e+00 : f32
    %211 = vector.broadcast %cst_76 : f32 to vector<2x16x64xf32>
    %212 = arith.divf %211, %210 : vector<2x16x64xf32>
    %cst_77 = arith.constant 1.06140542 : f32
    %213 = vector.broadcast %cst_77 : f32 to vector<2x16x64xf32>
    %214 = arith.mulf %213, %212 : vector<2x16x64xf32>
    %cst_78 = arith.constant -1.45315206 : f32
    %215 = vector.broadcast %cst_78 : f32 to vector<2x16x64xf32>
    %216 = arith.addf %214, %215 : vector<2x16x64xf32>
    %217 = arith.mulf %216, %212 : vector<2x16x64xf32>
    %cst_79 = arith.constant 1.42141378 : f32
    %218 = vector.broadcast %cst_79 : f32 to vector<2x16x64xf32>
    %219 = arith.addf %217, %218 : vector<2x16x64xf32>
    %220 = arith.mulf %219, %212 : vector<2x16x64xf32>
    %cst_80 = arith.constant -0.284496725 : f32
    %221 = vector.broadcast %cst_80 : f32 to vector<2x16x64xf32>
    %222 = arith.addf %220, %221 : vector<2x16x64xf32>
    %223 = arith.mulf %222, %212 : vector<2x16x64xf32>
    %cst_81 = arith.constant 0.254829586 : f32
    %224 = vector.broadcast %cst_81 : f32 to vector<2x16x64xf32>
    %225 = arith.addf %223, %224 : vector<2x16x64xf32>
    %226 = arith.mulf %225, %212 : vector<2x16x64xf32>
    %cst_82 = arith.constant 0.000000e+00 : f32
    %227 = vector.broadcast %cst_82 : f32 to vector<2x16x64xf32>
    %228 = arith.subf %227, %206 : vector<2x16x64xf32>
    %229 = arith.mulf %228, %206 : vector<2x16x64xf32>
    %230 = math.exp %229 : vector<2x16x64xf32>
    %231 = arith.mulf %226, %230 : vector<2x16x64xf32>
    %cst_83 = arith.constant 1.000000e+00 : f32
    %232 = vector.broadcast %cst_83 : f32 to vector<2x16x64xf32>
    %233 = arith.subf %232, %231 : vector<2x16x64xf32>
    %234 = arith.mulf %205, %233 : vector<2x16x64xf32>
    %cst_84 = arith.constant 1.000000e+00 : f32
    %235 = vector.broadcast %cst_84 : f32 to vector<2x16x64xf32>
    %236 = arith.addf %235, %234 : vector<2x16x64xf32>
    %237 = arith.mulf %198, %236 : vector<2x16x64xf32>
    %238 = arith.truncf %237 : vector<2x16x64xf32> to vector<2x16x64xbf16>
    %239 = arith.extf %238 : vector<2x16x64xbf16> to vector<2x16x64xf32>
    %240 = arith.subf %237, %239 : vector<2x16x64xf32>
    %241 = arith.truncf %240 : vector<2x16x64xf32> to vector<2x16x64xbf16>
    %c168 = arith.constant 168 : index
    %c0_85 = arith.constant 0 : index
    %242 = vector.load %arg2[%c168, %c0_85] : memref<240x128xf32, #tpu.memory_space<vmem>>, vector<64x14xf32>
    %243 = arith.truncf %242 : vector<64x14xf32> to vector<64x14xbf16>
    %244 = arith.extf %243 : vector<64x14xbf16> to vector<64x14xf32>
    %245 = arith.subf %242, %244 : vector<64x14xf32>
    %246 = arith.truncf %245 : vector<64x14xf32> to vector<64x14xbf16>
    "tpu.trace_start"() <{level = 10 : i32, message = "blc,co->blo"}> : () -> ()
    %cst_86 = arith.constant dense<0.000000e+00> : vector<2x16x14xf32>
    %247 = tpu.matmul %238, %243, %cst_86 {dimension_numbers = #tpu.dot_dimension_numbers<[2], [0], [0, 1], [1], [0, 0, 0, 1, 1, 1], [], []>} : vector<2x16x64xbf16>, vector<64x14xbf16>, vector<2x16x14xf32> -> vector<2x16x14xf32>
    %cst_87 = arith.constant dense<0.000000e+00> : vector<2x16x14xf32>
    %248 = tpu.matmul %241, %243, %cst_87 {dimension_numbers = #tpu.dot_dimension_numbers<[2], [0], [0, 1], [1], [0, 0, 0, 1, 1, 1], [], []>} : vector<2x16x64xbf16>, vector<64x14xbf16>, vector<2x16x14xf32> -> vector<2x16x14xf32>
    "tpu.trace_stop"() : () -> ()
    %249 = arith.addf %247, %248 : vector<2x16x14xf32>
    "tpu.trace_start"() <{level = 10 : i32, message = "blc,co->blo"}> : () -> ()
    %cst_88 = arith.constant dense<0.000000e+00> : vector<2x16x14xf32>
    %250 = tpu.matmul %238, %246, %cst_88 {dimension_numbers = #tpu.dot_dimension_numbers<[2], [0], [0, 1], [1], [0, 0, 0, 1, 1, 1], [], []>} : vector<2x16x64xbf16>, vector<64x14xbf16>, vector<2x16x14xf32> -> vector<2x16x14xf32>
    "tpu.trace_stop"() : () -> ()
    %251 = arith.addf %249, %250 : vector<2x16x14xf32>
    %252 = vector.shape_cast %3 : vector<1x14xf32> to vector<1x1x14xf32>
    %253 = vector.broadcast %252 : vector<1x1x14xf32> to vector<2x16x14xf32>
    %254 = arith.addf %251, %253 : vector<2x16x14xf32>
    %255 = math.tanh %254 : vector<2x16x14xf32>
    %cst_89 = arith.constant 3.000000e+00 : f32
    %256 = vector.broadcast %cst_89 : f32 to vector<2x16x14xf32>
    %257 = arith.mulf %256, %255 : vector<2x16x14xf32>
    %258 = vector.shape_cast %5 : vector<1x14xf32> to vector<1x1x14xf32>
    %259 = vector.broadcast %258 : vector<1x1x14xf32> to vector<2x16x14xf32>
    %260 = arith.mulf %259, %257 : vector<2x16x14xf32>
    %261 = math.exp %260 : vector<2x16x14xf32>
    %262 = vector.shape_cast %4 : vector<1x14xf32> to vector<1x1x14xf32>
    %263 = vector.broadcast %262 : vector<1x1x14xf32> to vector<2x16x14xf32>
    %264 = arith.mulf %263, %261 : vector<2x16x14xf32>
    %265 = vector.shape_cast %6 : vector<1x14xf32> to vector<1x1x14xf32>
    %266 = vector.broadcast %265 : vector<1x1x14xf32> to vector<2x16x14xf32>
    %267 = arith.mulf %266, %257 : vector<2x16x14xf32>
    %268 = arith.addf %264, %267 : vector<2x16x14xf32>
    %c0_90 = arith.constant 0 : index
    %c0_91 = arith.constant 0 : index
    %c0_92 = arith.constant 0 : index
    %269 = vector.load %arg3[%c0_90, %c0_91, %c0_92] : memref<2x16x14xf32, #tpu.memory_space<vmem>>, vector<2x16x14xf32>
    tpu.vector_store %arg3[%c0_90, %c0_91, %c0_92], %268 {strides = array<i32>} : memref<2x16x14xf32, #tpu.memory_space<vmem>>, vector<2x16x14xf32>,
    return
  }
  func.func @transform_0(%arg0: i32) -> (i32, i32, i32) {
    %c0_i32 = arith.constant 0 : i32
    %c0_i32_0 = arith.constant 0 : i32
    %c0_i32_1 = arith.constant 0 : i32
    return %arg0, %c0_i32, %c0_i32_0 : i32, i32, i32
  }
  func.func @transform_1(%arg0: i32) -> (i32, i32) {
    %c0_i32 = arith.constant 0 : i32
    %c0_i32_0 = arith.constant 0 : i32
    %c0_i32_1 = arith.constant 0 : i32
    return %c0_i32, %c0_i32_0 : i32, i32
  }
  func.func @transform_2(%arg0: i32) -> (i32, i32, i32) {
    %c0_i32 = arith.constant 0 : i32
    %c0_i32_0 = arith.constant 0 : i32
    %c0_i32_1 = arith.constant 0 : i32
    return %arg0, %c0_i32, %c0_i32_0 : i32, i32, i32
  }
}

</mosaic_0001>

<llo_original>
// kernel: tpu_custom_call.1
$region0: #{tpu_custom_call.1}
  #allocation0 [shape = 'u32[]', space=smem, size = 0x4, offset = 0x4, fixed_abs, tag = 'smem constant byte address 0x4 - core index']
  #allocation1 [shape = 'u32[144,128]{1,0:T(1,128)}', space=vmem, size = 0x12000, scoped, tag = 'internal scratch']
  %s0 = inlined_call_operand.vmem [shape: f32[2,28,18], index: 0, kind: input, shape index: {}]
  %s1 = inlined_call_operand.hbm [shape: f32[240,128], index: 1, kind: input, shape index: {}]
  %s2 = inlined_call_operand.vmem [shape: f32[2,16,14], index: 2, kind: output, shape index: {}]
  %s3 = sld [smem:[#allocation0]]
  $region22: #{tpu_custom_call.1} parent=0
    _
  %s5 = ssub.s32 1, %s3
  %s6 = scalar_select 0, %s5, %s3
  $region1: #{tpu_custom_call.1} parent=0
    #allocation2 [shape = 'u8[122880]{0}', space=vmem, size = 0x1e000, scoped, tag = 'input window, operand 1, single buffered']
    #allocation3 [shape = 's32[1]{0}', space=sflag, size = 0x4, scoped, tag = 'scoped memory for tpu_custom_call.1']
    %7 = vsyncpa [#allocation3], 0
    // Predicated region
    $region2: #{tpu_custom_call.1} parent=1 // pred_check
      _
    $region3: #{tpu_custom_call.1} parent=1 // pred_check_branch
      %9 = sbr.rel (0) target = $region5
    $region4: #{tpu_custom_call.1} parent=1 // pred_region
      _
    $region5: #{tpu_custom_call.1} parent=1 // pred_fallthru
      _
    // Predicated region
    $region6: #{tpu_custom_call.1} parent=1 // pred_check
      _
    $region7: #{tpu_custom_call.1} parent=1 // pred_check_branch
      %11 = sbr.rel (0) target = $region9
    $region8: #{tpu_custom_call.1} parent=1 // pred_region
      %s13 = ssub.s32 3840, 3840
      %14 = vsyncadd [#allocation3], %s13
      %s15 = sshll.u32 [#allocation2], 4
      %s16 = int_to_ptr.vmem [resolvable:$true] %s15
      %21 = dma.hbm_to_vmem [thread:$0]  %s1, 3840, %s16, [#allocation3], 128, 128, 8
    $region9: #{tpu_custom_call.1} parent=1 // pred_fallthru
      _
    // Predicated region
    $region10: #{tpu_custom_call.1} parent=1 // pred_check
      _
    $region11: #{tpu_custom_call.1} parent=1 // pred_check_branch
      %23 = sbr.rel (0) target = $region13
    $region12: #{tpu_custom_call.1} parent=1 // pred_region
      %24 = dma.done [#allocation3], 3840
    $region13: #{tpu_custom_call.1} parent=1 // pred_fallthru
      _
    %v26 = vld [vmem:[#allocation2 + $0xe8] sm:$0x1]
    %v27 = vld [vmem:[#allocation2 + $0xe9] sm:$0x1]
    %v28 = vld [vmem:[#allocation2 + $0xea] sm:$0x1]
    %v29 = vld [vmem:[#allocation2 + $0xeb] sm:$0x1]
    %v30 = vld [vmem:[#allocation2 + $0xec] sm:$0x1]
    %v31 = vld [vmem:[#allocation2 + $0xed] sm:$0x1]
    %v32 = vld [vmem:[#allocation2 + $0xee] sm:$0x1]
    %v33 = vld [vmem:[%s0] sm:$0xff]
    %v34 = vld [vmem:[%s0 + $0x8] sm:$0xff]
    %v35 = vld [vmem:[%s0 + $0x10] sm:$0xff]
    %v36 = vld [vmem:[%s0 + $0x18] sm:$0xf]
    %v37 = vld [vmem:[%s0 + $0x20] sm:$0xff]
    %v38 = vld [vmem:[%s0 + $0x28] sm:$0xff]
    %v39 = vld [vmem:[%s0 + $0x30] sm:$0xff]
    %v40 = vld [vmem:[%s0 + $0x38] sm:$0xf]
    %v41 = vpack.c.bf16 %v34, %v33
    %v42 = vpack.c.bf16 %v36, %v35
    %v43 = vpack.c.bf16 %v38, %v37
    %v44 = vpack.c.bf16 %v40, %v39
    %v45 = vunpack.c.l.bf16 %v41
    %v46 = vunpack.c.h.bf16 %v41
    %v47 = vunpack.c.l.bf16 %v42
    %v48 = vunpack.c.h.bf16 %v42
    %v49 = vunpack.c.l.bf16 %v43
    %v50 = vunpack.c.h.bf16 %v43
    %v51 = vunpack.c.l.bf16 %v44
    %v52 = vunpack.c.h.bf16 %v44
    %v53 = vsub.f32 %v33, %v45
    %v54 = vsub.f32 %v34, %v46
    %v55 = vsub.f32 %v35, %v47
    %v56 = vsub.f32 %v36, %v48
    %v57 = vsub.f32 %v37, %v49
    %v58 = vsub.f32 %v38, %v50
    %v59 = vsub.f32 %v39, %v51
    %v60 = vsub.f32 %v40, %v52
    %v61 = vpack.c.bf16 %v54, %v53
    %v62 = vpack.c.bf16 %v56, %v55
    %v63 = vpack.c.bf16 %v58, %v57
    %v64 = vpack.c.bf16 %v60, %v59
    %v65 = vld [vmem:[#allocation2] sm:$0xff]
    %v66 = vld [vmem:[#allocation2 + $0x8] sm:$0xff]
    %v67 = vld [vmem:[#allocation2 + $0x10] sm:$0x3]
    %v68 = vpack.c.bf16 %v66, %v65
    %v69 = vpack.c.bf16 %v67, %v67
    %v70 = vunpack.c.l.bf16 %v68
    %v71 = vunpack.c.h.bf16 %v68
    %v72 = vunpack.c.l.bf16 %v69
    %v73 = vsub.f32 %v65, %v70
    %v74 = vsub.f32 %v66, %v71
    %v75 = vsub.f32 %v67, %v72
    %v76 = vpack.c.bf16 %v74, %v73
    %v77 = vpack.c.bf16 %v75, %v75
    %v82 = vcombine.high %v61, %v61
    %v84 = vunpack.c.l.s4 1983009808
    %v85 = vunpack.c.0.s8 %v84
    %v86 = vlaneseq
    %v87 = vshrl.u32 %v86, 7
    %v88 = vsub.s32 %v85, %v87
    %v89 = vrot.slane %v61, %v88
    %v91 = vunpack.c.l.s4 1983009808
    %v92 = vunpack.c.0.s8 %v91
    %v93 = vlaneseq
    %v94 = vshrl.u32 %v93, 7
    %v95 = vsub.s32 %v92, %v94
    %v96 = vrot.slane %v82, %v95
    %v97 = vcombine.high %v89, %v89
    %v98 = vcombine.high %v96, %v96
    %v99 = vcombine.high %v62, %v62
    %v101 = vunpack.c.l.s4 1983009808
    %v102 = vunpack.c.0.s8 %v101
    %v103 = vlaneseq
    %v104 = vshrl.u32 %v103, 7
    %v105 = vsub.s32 %v102, %v104
    %v106 = vrot.slane %v62, %v105
    %v108 = vunpack.c.l.s4 1983009808
    %v109 = vunpack.c.0.s8 %v108
    %v110 = vlaneseq
    %v111 = vshrl.u32 %v110, 7
    %v112 = vsub.s32 %v109, %v111
    %v113 = vrot.slane %v99, %v112
    %v114 = vcombine.high %v106, %v106
    %v115 = vcombine.high %v63, %v63
    %v117 = vunpack.c.l.s4 1983009808
    %v118 = vunpack.c.0.s8 %v117
    %v119 = vlaneseq
    %v120 = vshrl.u32 %v119, 7
    %v121 = vsub.s32 %v118, %v120
    %v122 = vrot.slane %v63, %v121
    %v124 = vunpack.c.l.s4 1983009808
    %v125 = vunpack.c.0.s8 %v124
    %v126 = vlaneseq
    %v127 = vshrl.u32 %v126, 7
    %v128 = vsub.s32 %v125, %v127
    %v129 = vrot.slane %v115, %v128
    %v130 = vcombine.high %v122, %v122
    %v131 = vcombine.high %v129, %v129
    %v132 = vcombine.high %v64, %v64
    %v134 = vunpack.c.l.s4 1983009808
    %v135 = vunpack.c.0.s8 %v134
    %v136 = vlaneseq
    %v137 = vshrl.u32 %v136, 7
    %v138 = vsub.s32 %v135, %v137
    %v139 = vrot.slane %v64, %v138
    %v141 = vunpack.c.l.s4 1983009808
    %v142 = vunpack.c.0.s8 %v141
    %v143 = vlaneseq
    %v144 = vshrl.u32 %v143, 7
    %v145 = vsub.s32 %v142, %v144
    %v146 = vrot.slane %v132, %v145
    %v147 = vcombine.high %v139, %v139
    %v148 = vcombine.low %v89, %v97
    %v149 = vcombine.low %v96, %v98
    %v151 = vunpack.c.l.s4 1983009808
    %v152 = vunpack.c.0.s8 %v151
    %v153 = vlaneseq
    %v154 = vshrl.u32 %v153, 7
    %v155 = vsub.s32 %v152, %v154
    %v156 = vrot.slane %v148, %v155
    %v158 = vunpack.c.l.s4 1983009808
    %v159 = vunpack.c.0.s8 %v158
    %v160 = vlaneseq
    %v161 = vshrl.u32 %v160, 7
    %v162 = vsub.s32 %v159, %v161
    %v163 = vrot.slane %v149, %v162
    %v164 = vcombine.low %v156, %v163
    %v165 = vcombine.low %v106, %v114
    %v166 = vcombine.low %v113, %v122
    %v168 = vunpack.c.l.s4 1983009808
    %v169 = vunpack.c.0.s8 %v168
    %v170 = vlaneseq
    %v171 = vshrl.u32 %v170, 7
    %v172 = vsub.s32 %v169, %v171
    %v173 = vrot.slane %v165, %v172
    %v175 = vunpack.c.l.s4 1983009808
    %v176 = vunpack.c.0.s8 %v175
    %v177 = vlaneseq
    %v178 = vshrl.u32 %v177, 7
    %v179 = vsub.s32 %v176, %v178
    %v180 = vrot.slane %v166, %v179
    %v181 = vcombine.low %v173, %v180
    %v182 = vcombine.low %v130, %v129
    %v183 = vcombine.low %v131, %v139
    %v185 = vunpack.c.l.s4 1983009808
    %v186 = vunpack.c.0.s8 %v185
    %v187 = vlaneseq
    %v188 = vshrl.u32 %v187, 7
    %v189 = vsub.s32 %v186, %v188
    %v190 = vrot.slane %v182, %v189
    %v192 = vunpack.c.l.s4 1983009808
    %v193 = vunpack.c.0.s8 %v192
    %v194 = vlaneseq
    %v195 = vshrl.u32 %v194, 7
    %v196 = vsub.s32 %v193, %v195
    %v197 = vrot.slane %v183, %v196
    %v198 = vcombine.low %v190, %v197
    %v199 = vcombine.low %v147, %v146
    %v201 = vunpack.c.l.s4 1983009808
    %v202 = vunpack.c.0.s8 %v201
    %v203 = vlaneseq
    %v204 = vshrl.u32 %v203, 7
    %v205 = vsub.s32 %v202, %v204
    %v206 = vrot.slane %v199, %v205
    %vm207 = vcmask 146432
    %v209 = vsel %vm207, %v164, 0
    %v212 = vsel %vm207, %v181, 0
    %v215 = vsel %vm207, %v198, 0
    %v218 = vsel %vm207, %v206, 0
    %vm220 = vcmask 1040384
    %v222 = vsel %vm220, %v69, 0
    %224 = vmatprep.subr.bf16.mxu0 0
    %225 = vmatpush1.bf16.msra.mxu0 %v68
    %226 = vmatprep.subr.bf16.mxu0 0
    %227 = vmatpush1.bf16.msra.mxu0 %v222
    %228 = vmatprep.subr.bf16.mxu0 0
    %229 = vmatpush1.bf16.msra.mxu0 0
    %230 = vmatprep.subr.bf16.mxu0 0
    %231 = vmatpush1.bf16.msra.mxu0 0
    %232 = vmatprep.subr.bf16.mxu0 0
    %233 = vmatpush1.bf16.msra.mxu0 0
    %234 = vmatprep.subr.bf16.mxu0 0
    %235 = vmatpush1.bf16.msra.mxu0 0
    %236 = vmatprep.subr.bf16.mxu0 0
    %237 = vmatpush1.bf16.msra.mxu0 0
    %238 = vmatprep.subr.bf16.mxu0 0
    %239 = vmatpush1.bf16.msra.mxu0 0
    %240 = vmatprep.subr.bf16.mxu0 0
    %241 = vmatpush1.bf16.msra.mxu0 0
    %242 = vmatprep.subr.bf16.mxu0 0
    %243 = vmatpush1.bf16.msra.mxu0 0
    %244 = vmatprep.subr.bf16.mxu0 0
    %245 = vmatpush1.bf16.msra.mxu0 0
    %246 = vmatprep.subr.bf16.mxu0 0
    %247 = vmatpush1.bf16.msra.mxu0 0
    %248 = vmatprep.subr.bf16.mxu0 0
    %249 = vmatpush1.bf16.msra.mxu0 0
    %250 = vmatprep.subr.bf16.mxu0 0
    %251 = vmatpush1.bf16.msra.mxu0 0
    %252 = vmatprep.subr.bf16.mxu0 0
    %253 = vmatpush1.bf16.msra.mxu0 0
    %254 = vmatprep.subr.bf16.mxu0 0
    %255 = vmatpush1.bf16.msra.mxu0 0
    %256 = vmatprep.mubr.bf16.mxu0 0
    %257 = vmatmul.mubr.bf16.gmra.mrb[0].mxu0 %v209
    %v258 = vpop.f32.mrb[0].mxu0
    %v259 = vadd.f32 0.0, %v258
    %v260 = vpop.f32.mrb[0].mxu0
    %v261 = vpop.f32.mrb[0].mxu0
    %v262 = vadd.f32 0.0, %v261
    %v263 = vpop.f32.mrb[0].mxu0
    %264 = vmatprep.mubr.bf16.mxu0 0
    %265 = vmatmul.mubr.bf16.gmra.mrb[0].mxu0 %v212
    %v266 = vpop.f32.mrb[0].mxu0
    %v267 = vadd.f32 0.0, %v266
    %v268 = vpop.f32.mrb[0].mxu0
    %v269 = vpop.f32.mrb[0].mxu0
    %v270 = vadd.f32 0.0, %v269
    %v271 = vpop.f32.mrb[0].mxu0
    %272 = vmatprep.mubr.bf16.mxu0 0
    %273 = vmatmul.mubr.bf16.gmra.mrb[0].mxu0 %v215
    %v274 = vpop.f32.mrb[0].mxu0
    %v275 = vadd.f32 0.0, %v274
    %v276 = vpop.f32.mrb[0].mxu0
    %v277 = vpop.f32.mrb[0].mxu0
    %v278 = vadd.f32 0.0, %v277
    %v279 = vpop.f32.mrb[0].mxu0
    %280 = vmatprep.mubr.bf16.mxu0 0
    %281 = vmatmul.mubr.bf16.gmra.mrb[0].mxu0 %v218
    %v282 = vpop.f32.mrb[0].mxu0
    %v283 = vadd.f32 0.0, %v282
    %v284 = vpop.f32.mrb[0].mxu0
    %v285 = vpop.f32.mrb[0].mxu0
    %v286 = vpop.f32.mrb[0].mxu0
    %287 = vdwg.mxu0
    %v292 = vcombine.high %v41, %v41
    %v294 = vunpack.c.l.s4 1983009808
    %v295 = vunpack.c.0.s8 %v294
    %v296 = vlaneseq
    %v297 = vshrl.u32 %v296, 7
    %v298 = vsub.s32 %v295, %v297
    %v299 = vrot.slane %v41, %v298
    %v301 = vunpack.c.l.s4 1983009808
    %v302 = vunpack.c.0.s8 %v301
    %v303 = vlaneseq
    %v304 = vshrl.u32 %v303, 7
    %v305 = vsub.s32 %v302, %v304
    %v306 = vrot.slane %v292, %v305
    %v307 = vcombine.high %v299, %v299
    %v308 = vcombine.high %v306, %v306
    %v309 = vcombine.high %v42, %v42
    %v311 = vunpack.c.l.s4 1983009808
    %v312 = vunpack.c.0.s8 %v311
    %v313 = vlaneseq
    %v314 = vshrl.u32 %v313, 7
    %v315 = vsub.s32 %v312, %v314
    %v316 = vrot.slane %v42, %v315
    %v318 = vunpack.c.l.s4 1983009808
    %v319 = vunpack.c.0.s8 %v318
    %v320 = vlaneseq
    %v321 = vshrl.u32 %v320, 7
    %v322 = vsub.s32 %v319, %v321
    %v323 = vrot.slane %v309, %v322
    %v324 = vcombine.high %v316, %v316
    %v325 = vcombine.high %v43, %v43
    %v327 = vunpack.c.l.s4 1983009808
    %v328 = vunpack.c.0.s8 %v327
    %v329 = vlaneseq
    %v330 = vshrl.u32 %v329, 7
    %v331 = vsub.s32 %v328, %v330
    %v332 = vrot.slane %v43, %v331
    %v334 = vunpack.c.l.s4 1983009808
    %v335 = vunpack.c.0.s8 %v334
    %v336 = vlaneseq
    %v337 = vshrl.u32 %v336, 7
    %v338 = vsub.s32 %v335, %v337
    %v339 = vrot.slane %v325, %v338
    %v340 = vcombine.high %v332, %v332
    %v341 = vcombine.high %v339, %v339
    %v342 = vcombine.high %v44, %v44
    %v344 = vunpack.c.l.s4 1983009808
    %v345 = vunpack.c.0.s8 %v344
    %v346 = vlaneseq
    %v347 = vshrl.u32 %v346, 7
    %v348 = vsub.s32 %v345, %v347
    %v349 = vrot.slane %v44, %v348
    %v351 = vunpack.c.l.s4 1983009808
    %v352 = vunpack.c.0.s8 %v351
    %v353 = vlaneseq
    %v354 = vshrl.u32 %v353, 7
    %v355 = vsub.s32 %v352, %v354
    %v356 = vrot.slane %v342, %v355
    %v357 = vcombine.high %v349, %v349
    %v358 = vcombine.low %v299, %v307
    %v359 = vcombine.low %v306, %v308
    %v361 = vunpack.c.l.s4 1983009808
    %v362 = vunpack.c.0.s8 %v361
    %v363 = vlaneseq
    %v364 = vshrl.u32 %v363, 7
    %v365 = vsub.s32 %v362, %v364
    %v366 = vrot.slane %v358, %v365
    %v368 = vunpack.c.l.s4 1983009808
    %v369 = vunpack.c.0.s8 %v368
    %v370 = vlaneseq
    %v371 = vshrl.u32 %v370, 7
    %v372 = vsub.s32 %v369, %v371
    %v373 = vrot.slane %v359, %v372
    %v374 = vcombine.low %v366, %v373
    %v375 = vcombine.low %v316, %v324
    %v376 = vcombine.low %v323, %v332
    %v378 = vunpack.c.l.s4 1983009808
    %v379 = vunpack.c.0.s8 %v378
    %v380 = vlaneseq
    %v381 = vshrl.u32 %v380, 7
    %v382 = vsub.s32 %v379, %v381
    %v383 = vrot.slane %v375, %v382
    %v385 = vunpack.c.l.s4 1983009808
    %v386 = vunpack.c.0.s8 %v385
    %v387 = vlaneseq
    %v388 = vshrl.u32 %v387, 7
    %v389 = vsub.s32 %v386, %v388
    %v390 = vrot.slane %v376, %v389
    %v391 = vcombine.low %v383, %v390
    %v392 = vcombine.low %v340, %v339
    %v393 = vcombine.low %v341, %v349
    %v395 = vunpack.c.l.s4 1983009808
    %v396 = vunpack.c.0.s8 %v395
    %v397 = vlaneseq
    %v398 = vshrl.u32 %v397, 7
    %v399 = vsub.s32 %v396, %v398
    %v400 = vrot.slane %v392, %v399
    %v402 = vunpack.c.l.s4 1983009808
    %v403 = vunpack.c.0.s8 %v402
    %v404 = vlaneseq
    %v405 = vshrl.u32 %v404, 7
    %v406 = vsub.s32 %v403, %v405
    %v407 = vrot.slane %v393, %v406
    %v408 = vcombine.low %v400, %v407
    %v409 = vcombine.low %v357, %v356
    %v411 = vunpack.c.l.s4 1983009808
    %v412 = vunpack.c.0.s8 %v411
    %v413 = vlaneseq
    %v414 = vshrl.u32 %v413, 7
    %v415 = vsub.s32 %v412, %v414
    %v416 = vrot.slane %v409, %v415
    %v418 = vsel %vm207, %v374, 0
    %v421 = vsel %vm207, %v391, 0
    %v424 = vsel %vm207, %v408, 0
    %v427 = vsel %vm207, %v416, 0
    %429 = vmatprep.subr.bf16.mxu0 0
    %430 = vmatpush1.bf16.msra.mxu0 %v68
    %431 = vmatprep.subr.bf16.mxu0 0
    %432 = vmatpush1.bf16.msra.mxu0 %v222
    %433 = vmatprep.subr.bf16.mxu0 0
    %434 = vmatpush1.bf16.msra.mxu0 0
    %435 = vmatprep.subr.bf16.mxu0 0
    %436 = vmatpush1.bf16.msra.mxu0 0
    %437 = vmatprep.subr.bf16.mxu0 0
    %438 = vmatpush1.bf16.msra.mxu0 0
    %439 = vmatprep.subr.bf16.mxu0 0
    %440 = vmatpush1.bf16.msra.mxu0 0
    %441 = vmatprep.subr.bf16.mxu0 0
    %442 = vmatpush1.bf16.msra.mxu0 0
    %443 = vmatprep.subr.bf16.mxu0 0
    %444 = vmatpush1.bf16.msra.mxu0 0
    %445 = vmatprep.subr.bf16.mxu0 0
    %446 = vmatpush1.bf16.msra.mxu0 0
    %447 = vmatprep.subr.bf16.mxu0 0
    %448 = vmatpush1.bf16.msra.mxu0 0
    %449 = vmatprep.subr.bf16.mxu0 0
    %450 = vmatpush1.bf16.msra.mxu0 0
    %451 = vmatprep.subr.bf16.mxu0 0
    %452 = vmatpush1.bf16.msra.mxu0 0
    %453 = vmatprep.subr.bf16.mxu0 0
    %454 = vmatpush1.bf16.msra.mxu0 0
    %455 = vmatprep.subr.bf16.mxu0 0
    %456 = vmatpush1.bf16.msra.mxu0 0
    %457 = vmatprep.subr.bf16.mxu0 0
    %458 = vmatpush1.bf16.msra.mxu0 0
    %459 = vmatprep.subr.bf16.mxu0 0
    %460 = vmatpush1.bf16.msra.mxu0 0
    %461 = vmatprep.mubr.bf16.mxu0 0
    %462 = vmatmul.mubr.bf16.gmra.mrb[0].mxu0 %v418
    %v463 = vpop.f32.mrb[0].mxu0
    %v464 = vadd.f32 %v259, %v463
    %v465 = vpop.f32.mrb[0].mxu0
    %v466 = vpop.f32.mrb[0].mxu0
    %v467 = vadd.f32 %v262, %v466
    %v468 = vpop.f32.mrb[0].mxu0
    %469 = vmatprep.mubr.bf16.mxu0 0
    %470 = vmatmul.mubr.bf16.gmra.mrb[0].mxu0 %v421
    %v471 = vpop.f32.mrb[0].mxu0
    %v472 = vadd.f32 %v267, %v471
    %v473 = vpop.f32.mrb[0].mxu0
    %v474 = vpop.f32.mrb[0].mxu0
    %v475 = vadd.f32 %v270, %v474
    %v476 = vpop.f32.mrb[0].mxu0
    %477 = vmatprep.mubr.bf16.mxu0 0
    %478 = vmatmul.mubr.bf16.gmra.mrb[0].mxu0 %v424
    %v479 = vpop.f32.mrb[0].mxu0
    %v480 = vadd.f32 %v275, %v479
    %v481 = vpop.f32.mrb[0].mxu0
    %v482 = vpop.f32.mrb[0].mxu0
    %v483 = vadd.f32 %v278, %v482
    %v484 = vpop.f32.mrb[0].mxu0
    %485 = vmatprep.mubr.bf16.mxu0 0
    %486 = vmatmul.mubr.bf16.gmra.mrb[0].mxu0 %v427
    %v487 = vpop.f32.mrb[0].mxu0
    %v488 = vadd.f32 %v283, %v487
    %v489 = vpop.f32.mrb[0].mxu0
    %v490 = vpop.f32.mrb[0].mxu0
    %v491 = vpop.f32.mrb[0].mxu0
    %492 = vdwg.mxu0
    %v500 = vcombine.high %v464, %v464
    %v501 = vcombine.high %v467, %v467
    %v502 = vcombine.high %v472, %v472
    %v503 = vcombine.high %v475, %v475
    %v504 = vcombine.high %v480, %v480
    %v505 = vcombine.high %v483, %v483
    %v506 = vcombine.high %v488, %v488
    %v515 = vsel %vm220, %v77, 0
    %517 = vmatprep.subr.bf16.mxu0 0
    %518 = vmatpush1.bf16.msra.mxu0 %v76
    %519 = vmatprep.subr.bf16.mxu0 0
    %520 = vmatpush1.bf16.msra.mxu0 %v515
    %521 = vmatprep.subr.bf16.mxu0 0
    %522 = vmatpush1.bf16.msra.mxu0 0
    %523 = vmatprep.subr.bf16.mxu0 0
    %524 = vmatpush1.bf16.msra.mxu0 0
    %525 = vmatprep.subr.bf16.mxu0 0
    %526 = vmatpush1.bf16.msra.mxu0 0
    %527 = vmatprep.subr.bf16.mxu0 0
    %528 = vmatpush1.bf16.msra.mxu0 0
    %529 = vmatprep.subr.bf16.mxu0 0
    %530 = vmatpush1.bf16.msra.mxu0 0
    %531 = vmatprep.subr.bf16.mxu0 0
    %532 = vmatpush1.bf16.msra.mxu0 0
    %533 = vmatprep.subr.bf16.mxu0 0
    %534 = vmatpush1.bf16.msra.mxu0 0
    %535 = vmatprep.subr.bf16.mxu0 0
    %536 = vmatpush1.bf16.msra.mxu0 0
    %537 = vmatprep.subr.bf16.mxu0 0
    %538 = vmatpush1.bf16.msra.mxu0 0
    %539 = vmatprep.subr.bf16.mxu0 0
    %540 = vmatpush1.bf16.msra.mxu0 0
    %541 = vmatprep.subr.bf16.mxu0 0
    %542 = vmatpush1.bf16.msra.mxu0 0
    %543 = vmatprep.subr.bf16.mxu0 0
    %544 = vmatpush1.bf16.msra.mxu0 0
    %545 = vmatprep.subr.bf16.mxu0 0
    %546 = vmatpush1.bf16.msra.mxu0 0
    %547 = vmatprep.subr.bf16.mxu0 0
    %548 = vmatpush1.bf16.msra.mxu0 0
    %549 = vmatprep.mubr.bf16.mxu0 0
    %550 = vmatmul.mubr.bf16.gmra.mrb[0].mxu0 %v418
    %v551 = vpop.f32.mrb[0].mxu0
    %v552 = vadd.f32 0.0, %v551
    %v553 = vpop.f32.mrb[0].mxu0
    %v554 = vpop.f32.mrb[0].mxu0
    %v555 = vadd.f32 0.0, %v554
    %v556 = vpop.f32.mrb[0].mxu0
    %557 = vmatprep.mubr.bf16.mxu0 0
    %558 = vmatmul.mubr.bf16.gmra.mrb[0].mxu0 %v421
    %v559 = vpop.f32.mrb[0].mxu0
    %v560 = vadd.f32 0.0, %v559
    %v561 = vpop.f32.mrb[0].mxu0
    %v562 = vpop.f32.mrb[0].mxu0
    %v563 = vadd.f32 0.0, %v562
    %v564 = vpop.f32.mrb[0].mxu0
    %565 = vmatprep.mubr.bf16.mxu0 0
    %566 = vmatmul.mubr.bf16.gmra.mrb[0].mxu0 %v424
    %v567 = vpop.f32.mrb[0].mxu0
    %v568 = vadd.f32 0.0, %v567
    %v569 = vpop.f32.mrb[0].mxu0
    %v570 = vpop.f32.mrb[0].mxu0
    %v571 = vadd.f32 0.0, %v570
    %v572 = vpop.f32.mrb[0].mxu0
    %573 = vmatprep.mubr.bf16.mxu0 0
    %574 = vmatmul.mubr.bf16.gmra.mrb[0].mxu0 %v427
    %v575 = vpop.f32.mrb[0].mxu0
    %v576 = vadd.f32 0.0, %v575
    %v577 = vpop.f32.mrb[0].mxu0
    %v578 = vpop.f32.mrb[0].mxu0
    %v579 = vpop.f32.mrb[0].mxu0
    %580 = vdwg.mxu0
    %v588 = vcombine.high %v552, %v552
    %v589 = vcombine.high %v555, %v555
    %v590 = vcombine.high %v560, %v560
    %v591 = vcombine.high %v563, %v563
    %v592 = vcombine.high %v568, %v568
    %v593 = vcombine.high %v571, %v571
    %v594 = vcombine.high %v576, %v576
    %v602 = vadd.f32 %v464, %v552
    %v603 = vadd.f32 %v500, %v588
    %v604 = vadd.f32 %v467, %v555
    %v605 = vadd.f32 %v501, %v589
    %v606 = vadd.f32 %v472, %v560
    %v607 = vadd.f32 %v502, %v590
    %v608 = vadd.f32 %v475, %v563
    %v609 = vadd.f32 %v503, %v591
    %v610 = vadd.f32 %v480, %v568
    %v611 = vadd.f32 %v504, %v592
    %v612 = vadd.f32 %v483, %v571
    %v613 = vadd.f32 %v505, %v593
    %v614 = vadd.f32 %v488, %v576
    %v615 = vadd.f32 %v506, %v594
    %v616 = vlaneseq
    %v617 = vshrl.u32 %v616, 7
    %v618 = vsub.s32 0, %v617
    %v619 = vrot.slane %v26, %v618
    %v621 = vcombine.high %v619, %v619
    %v623 = vadd.f32 %v602, %v619
    %v624 = vadd.f32 %v603, %v621
    %v625 = vadd.f32 %v604, %v619
    %v626 = vadd.f32 %v605, %v621
    %v627 = vadd.f32 %v606, %v619
    %v628 = vadd.f32 %v607, %v621
    %v629 = vadd.f32 %v608, %v619
    %v630 = vadd.f32 %v609, %v619
    %v631 = vadd.f32 %v610, %v621
    %v632 = vadd.f32 %v611, %v619
    %v633 = vadd.f32 %v612, %v621
    %v634 = vadd.f32 %v613, %v619
    %v635 = vadd.f32 %v614, %v621
    %v636 = vadd.f32 %v615, %v619
    %v637 = vmul.f32 %v623, 0.5
    %v638 = vmul.f32 %v624, 0.5
    %v639 = vmul.f32 %v625, 0.5
    %v640 = vmul.f32 %v626, 0.5
    %v641 = vmul.f32 %v627, 0.5
    %v642 = vmul.f32 %v628, 0.5
    %v643 = vmul.f32 %v629, 0.5
    %v644 = vmul.f32 %v630, 0.5
    %v645 = vmul.f32 %v631, 0.5
    %v646 = vmul.f32 %v632, 0.5
    %v647 = vmul.f32 %v633, 0.5
    %v648 = vmul.f32 %v634, 0.5
    %v649 = vmul.f32 %v635, 0.5
    %v650 = vmul.f32 %v636, 0.5
    %v651 = vmul.f32 %v623, 0.70710677
    %v652 = vmul.f32 %v624, 0.70710677
    %v653 = vmul.f32 %v625, 0.70710677
    %v654 = vmul.f32 %v626, 0.70710677
    %v655 = vmul.f32 %v627, 0.70710677
    %v656 = vmul.f32 %v628, 0.70710677
    %v657 = vmul.f32 %v629, 0.70710677
    %v658 = vmul.f32 %v630, 0.70710677
    %v659 = vmul.f32 %v631, 0.70710677
    %v660 = vmul.f32 %v632, 0.70710677
    %v661 = vmul.f32 %v633, 0.70710677
    %v662 = vmul.f32 %v634, 0.70710677
    %v663 = vmul.f32 %v635, 0.70710677
    %v664 = vmul.f32 %v636, 0.70710677
    %vm665 = vcmp.lt.f32.partialorder %v651, 0.0
    %vm666 = vcmp.lt.f32.partialorder %v652, 0.0
    %vm667 = vcmp.lt.f32.partialorder %v653, 0.0
    %vm668 = vcmp.lt.f32.partialorder %v654, 0.0
    %vm669 = vcmp.lt.f32.partialorder %v655, 0.0
    %vm670 = vcmp.lt.f32.partialorder %v656, 0.0
    %vm671 = vcmp.lt.f32.partialorder %v657, 0.0
    %vm672 = vcmp.lt.f32.partialorder %v658, 0.0
    %vm673 = vcmp.lt.f32.partialorder %v659, 0.0
    %vm674 = vcmp.lt.f32.partialorder %v660, 0.0
    %vm675 = vcmp.lt.f32.partialorder %v661, 0.0
    %vm676 = vcmp.lt.f32.partialorder %v662, 0.0
    %vm677 = vcmp.lt.f32.partialorder %v663, 0.0
    %vm678 = vcmp.lt.f32.partialorder %v664, 0.0
    %v679 = vsel %vm665, -1.0, 1.0
    %v680 = vsel %vm666, -1.0, 1.0
    %v681 = vsel %vm667, -1.0, 1.0
    %v682 = vsel %vm668, -1.0, 1.0
    %v683 = vsel %vm669, -1.0, 1.0
    %v684 = vsel %vm670, -1.0, 1.0
    %v685 = vsel %vm671, -1.0, 1.0
    %v686 = vsel %vm672, -1.0, 1.0
    %v687 = vsel %vm673, -1.0, 1.0
    %v688 = vsel %vm674, -1.0, 1.0
    %v689 = vsel %vm675, -1.0, 1.0
    %v690 = vsel %vm676, -1.0, 1.0
    %v691 = vsel %vm677, -1.0, 1.0
    %v692 = vsel %vm678, -1.0, 1.0
    %v693 = vand.u32 2147483647, %v651
    %v694 = vand.u32 2147483647, %v652
    %v695 = vand.u32 2147483647, %v653
    %v696 = vand.u32 2147483647, %v654
    %v697 = vand.u32 2147483647, %v655
    %v698 = vand.u32 2147483647, %v656
    %v699 = vand.u32 2147483647, %v657
    %v700 = vand.u32 2147483647, %v658
    %v701 = vand.u32 2147483647, %v659
    %v702 = vand.u32 2147483647, %v660
    %v703 = vand.u32 2147483647, %v661
    %v704 = vand.u32 2147483647, %v662
    %v705 = vand.u32 2147483647, %v663
    %v706 = vand.u32 2147483647, %v664
    %v707 = vmul.f32 %v693, 0.3275911
    %v708 = vmul.f32 %v694, 0.3275911
    %v709 = vmul.f32 %v695, 0.3275911
    %v710 = vmul.f32 %v696, 0.3275911
    %v711 = vmul.f32 %v697, 0.3275911
    %v712 = vmul.f32 %v698, 0.3275911
    %v713 = vmul.f32 %v699, 0.3275911
    %v714 = vmul.f32 %v700, 0.3275911
    %v715 = vmul.f32 %v701, 0.3275911
    %v716 = vmul.f32 %v702, 0.3275911
    %v717 = vmul.f32 %v703, 0.3275911
    %v718 = vmul.f32 %v704, 0.3275911
    %v719 = vmul.f32 %v705, 0.3275911
    %v720 = vmul.f32 %v706, 0.3275911
    %v721 = vadd.f32 %v707, 1.0
    %v722 = vadd.f32 %v708, 1.0
    %v723 = vadd.f32 %v709, 1.0
    %v724 = vadd.f32 %v710, 1.0
    %v725 = vadd.f32 %v711, 1.0
    %v726 = vadd.f32 %v712, 1.0
    %v727 = vadd.f32 %v713, 1.0
    %v728 = vadd.f32 %v714, 1.0
    %v729 = vadd.f32 %v715, 1.0
    %v730 = vadd.f32 %v716, 1.0
    %v731 = vadd.f32 %v717, 1.0
    %v732 = vadd.f32 %v718, 1.0
    %v733 = vadd.f32 %v719, 1.0
    %v734 = vadd.f32 %v720, 1.0
    %v735 = vrcp.pop %v721
    %v736 = vmul.f32 1.0, %v735
    %v737 = vrcp.pop %v722
    %v738 = vmul.f32 1.0, %v737
    %v739 = vrcp.pop %v723
    %v740 = vmul.f32 1.0, %v739
    %v741 = vrcp.pop %v724
    %v742 = vmul.f32 1.0, %v741
    %v743 = vrcp.pop %v725
    %v744 = vmul.f32 1.0, %v743
    %v745 = vrcp.pop %v726
    %v746 = vmul.f32 1.0, %v745
    %v747 = vrcp.pop %v727
    %v748 = vmul.f32 1.0, %v747
    %v749 = vrcp.pop %v728
    %v750 = vmul.f32 1.0, %v749
    %v751 = vrcp.pop %v729
    %v752 = vmul.f32 1.0, %v751
    %v753 = vrcp.pop %v730
    %v754 = vmul.f32 1.0, %v753
    %v755 = vrcp.pop %v731
    %v756 = vmul.f32 1.0, %v755
    %v757 = vrcp.pop %v732
    %v758 = vmul.f32 1.0, %v757
    %v759 = vrcp.pop %v733
    %v760 = vmul.f32 1.0, %v759
    %v761 = vrcp.pop %v734
    %v762 = vmul.f32 1.0, %v761
    %v763 = vmul.f32 %v736, 1.0614054
    %v764 = vmul.f32 %v738, 1.0614054
    %v765 = vmul.f32 %v740, 1.0614054
    %v766 = vmul.f32 %v742, 1.0614054
    %v767 = vmul.f32 %v744, 1.0614054
    %v768 = vmul.f32 %v746, 1.0614054
    %v769 = vmul.f32 %v748, 1.0614054
    %v770 = vmul.f32 %v750, 1.0614054
    %v771 = vmul.f32 %v752, 1.0614054
    %v772 = vmul.f32 %v754, 1.0614054
    %v773 = vmul.f32 %v756, 1.0614054
    %v774 = vmul.f32 %v758, 1.0614054
    %v775 = vmul.f32 %v760, 1.0614054
    %v776 = vmul.f32 %v762, 1.0614054
    %v777 = vadd.f32 %v763, -1.4531521
    %v778 = vadd.f32 %v764, -1.4531521
    %v779 = vadd.f32 %v765, -1.4531521
    %v780 = vadd.f32 %v766, -1.4531521
    %v781 = vadd.f32 %v767, -1.4531521
    %v782 = vadd.f32 %v768, -1.4531521
    %v783 = vadd.f32 %v769, -1.4531521
    %v784 = vadd.f32 %v770, -1.4531521
    %v785 = vadd.f32 %v771, -1.4531521
    %v786 = vadd.f32 %v772, -1.4531521
    %v787 = vadd.f32 %v773, -1.4531521
    %v788 = vadd.f32 %v774, -1.4531521
    %v789 = vadd.f32 %v775, -1.4531521
    %v790 = vadd.f32 %v776, -1.4531521
    %v791 = vmul.f32 %v777, %v736
    %v792 = vmul.f32 %v778, %v738
    %v793 = vmul.f32 %v779, %v740
    %v794 = vmul.f32 %v780, %v742
    %v795 = vmul.f32 %v781, %v744
    %v796 = vmul.f32 %v782, %v746
    %v797 = vmul.f32 %v783, %v748
    %v798 = vmul.f32 %v784, %v750
    %v799 = vmul.f32 %v785, %v752
    %v800 = vmul.f32 %v786, %v754
    %v801 = vmul.f32 %v787, %v756
    %v802 = vmul.f32 %v788, %v758
    %v803 = vmul.f32 %v789, %v760
    %v804 = vmul.f32 %v790, %v762
    %v805 = vadd.f32 %v791, 1.4214138
    %v806 = vadd.f32 %v792, 1.4214138
    %v807 = vadd.f32 %v793, 1.4214138
    %v808 = vadd.f32 %v794, 1.4214138
    %v809 = vadd.f32 %v795, 1.4214138
    %v810 = vadd.f32 %v796, 1.4214138
    %v811 = vadd.f32 %v797, 1.4214138
    %v812 = vadd.f32 %v798, 1.4214138
    %v813 = vadd.f32 %v799, 1.4214138
    %v814 = vadd.f32 %v800, 1.4214138
    %v815 = vadd.f32 %v801, 1.4214138
    %v816 = vadd.f32 %v802, 1.4214138
    %v817 = vadd.f32 %v803, 1.4214138
    %v818 = vadd.f32 %v804, 1.4214138
    %v819 = vmul.f32 %v805, %v736
    %v820 = vmul.f32 %v806, %v738
    %v821 = vmul.f32 %v807, %v740
    %v822 = vmul.f32 %v808, %v742
    %v823 = vmul.f32 %v809, %v744
    %v824 = vmul.f32 %v810, %v746
    %v825 = vmul.f32 %v811, %v748
    %v826 = vmul.f32 %v812, %v750
    %v827 = vmul.f32 %v813, %v752
    %v828 = vmul.f32 %v814, %v754
    %v829 = vmul.f32 %v815, %v756
    %v830 = vmul.f32 %v816, %v758
    %v831 = vmul.f32 %v817, %v760
    %v832 = vmul.f32 %v818, %v762
    %v833 = vadd.f32 %v819, -0.28449672
    %v834 = vadd.f32 %v820, -0.28449672
    %v835 = vadd.f32 %v821, -0.28449672
    %v836 = vadd.f32 %v822, -0.28449672
    %v837 = vadd.f32 %v823, -0.28449672
    %v838 = vadd.f32 %v824, -0.28449672
    %v839 = vadd.f32 %v825, -0.28449672
    %v840 = vadd.f32 %v826, -0.28449672
    %v841 = vadd.f32 %v827, -0.28449672
    %v842 = vadd.f32 %v828, -0.28449672
    %v843 = vadd.f32 %v829, -0.28449672
    %v844 = vadd.f32 %v830, -0.28449672
    %v845 = vadd.f32 %v831, -0.28449672
    %v846 = vadd.f32 %v832, -0.28449672
    %v847 = vmul.f32 %v833, %v736
    %v848 = vmul.f32 %v834, %v738
    %v849 = vmul.f32 %v835, %v740
    %v850 = vmul.f32 %v836, %v742
    %v851 = vmul.f32 %v837, %v744
    %v852 = vmul.f32 %v838, %v746
    %v853 = vmul.f32 %v839, %v748
    %v854 = vmul.f32 %v840, %v750
    %v855 = vmul.f32 %v841, %v752
    %v856 = vmul.f32 %v842, %v754
    %v857 = vmul.f32 %v843, %v756
    %v858 = vmul.f32 %v844, %v758
    %v859 = vmul.f32 %v845, %v760
    %v860 = vmul.f32 %v846, %v762
    %v861 = vadd.f32 %v847, 0.2548296
    %v862 = vadd.f32 %v848, 0.2548296
    %v863 = vadd.f32 %v849, 0.2548296
    %v864 = vadd.f32 %v850, 0.2548296
    %v865 = vadd.f32 %v851, 0.2548296
    %v866 = vadd.f32 %v852, 0.2548296
    %v867 = vadd.f32 %v853, 0.2548296
    %v868 = vadd.f32 %v854, 0.2548296
    %v869 = vadd.f32 %v855, 0.2548296
    %v870 = vadd.f32 %v856, 0.2548296
    %v871 = vadd.f32 %v857, 0.2548296
    %v872 = vadd.f32 %v858, 0.2548296
    %v873 = vadd.f32 %v859, 0.2548296
    %v874 = vadd.f32 %v860, 0.2548296
    %v875 = vmul.f32 %v861, %v736
    %v876 = vmul.f32 %v862, %v738
    %v877 = vmul.f32 %v863, %v740
    %v878 = vmul.f32 %v864, %v742
    %v879 = vmul.f32 %v865, %v744
    %v880 = vmul.f32 %v866, %v746
    %v881 = vmul.f32 %v867, %v748
    %v882 = vmul.f32 %v868, %v750
    %v883 = vmul.f32 %v869, %v752
    %v884 = vmul.f32 %v870, %v754
    %v885 = vmul.f32 %v871, %v756
    %v886 = vmul.f32 %v872, %v758
    %v887 = vmul.f32 %v873, %v760
    %v888 = vmul.f32 %v874, %v762
    %v889 = vsub.f32 0.0, %v693
    %v890 = vsub.f32 0.0, %v694
    %v891 = vsub.f32 0.0, %v695
    %v892 = vsub.f32 0.0, %v696
    %v893 = vsub.f32 0.0, %v697
    %v894 = vsub.f32 0.0, %v698
    %v895 = vsub.f32 0.0, %v699
    %v896 = vsub.f32 0.0, %v700
    %v897 = vsub.f32 0.0, %v701
    %v898 = vsub.f32 0.0, %v702
    %v899 = vsub.f32 0.0, %v703
    %v900 = vsub.f32 0.0, %v704
    %v901 = vsub.f32 0.0, %v705
    %v902 = vsub.f32 0.0, %v706
    %v903 = vmul.f32 %v889, %v693
    %v904 = vmul.f32 %v890, %v694
    %v905 = vmul.f32 %v891, %v695
    %v906 = vmul.f32 %v892, %v696
    %v907 = vmul.f32 %v893, %v697
    %v908 = vmul.f32 %v894, %v698
    %v909 = vmul.f32 %v895, %v699
    %v910 = vmul.f32 %v896, %v700
    %v911 = vmul.f32 %v897, %v701
    %v912 = vmul.f32 %v898, %v702
    %v913 = vmul.f32 %v899, %v703
    %v914 = vmul.f32 %v900, %v704
    %v915 = vmul.f32 %v901, %v705
    %v916 = vmul.f32 %v902, %v706
    %v917 = vmul.f32 %v903, 1.442695
    %v918 = vpow.pop %v917
    %v919 = vmul.f32 %v904, 1.442695
    %v920 = vpow.pop %v919
    %v921 = vmul.f32 %v905, 1.442695
    %v922 = vpow.pop %v921
    %v923 = vmul.f32 %v906, 1.442695
    %v924 = vpow.pop %v923
    %v925 = vmul.f32 %v907, 1.442695
    %v926 = vpow.pop %v925
    %v927 = vmul.f32 %v908, 1.442695
    %v928 = vpow.pop %v927
    %v929 = vmul.f32 %v909, 1.442695
    %v930 = vpow.pop %v929
    %v931 = vmul.f32 %v910, 1.442695
    %v932 = vpow.pop %v931
    %v933 = vmul.f32 %v911, 1.442695
    %v934 = vpow.pop %v933
    %v935 = vmul.f32 %v912, 1.442695
    %v936 = vpow.pop %v935
    %v937 = vmul.f32 %v913, 1.442695
    %v938 = vpow.pop %v937
    %v939 = vmul.f32 %v914, 1.442695
    %v940 = vpow.pop %v939
    %v941 = vmul.f32 %v915, 1.442695
    %v942 = vpow.pop %v941
    %v943 = vmul.f32 %v916, 1.442695
    %v944 = vpow.pop %v943
    %v945 = vmul.f32 %v875, %v918
    %v946 = vmul.f32 %v876, %v920
    %v947 = vmul.f32 %v877, %v922
    %v948 = vmul.f32 %v878, %v924
    %v949 = vmul.f32 %v879, %v926
    %v950 = vmul.f32 %v880, %v928
    %v951 = vmul.f32 %v881, %v930
    %v952 = vmul.f32 %v882, %v932
    %v953 = vmul.f32 %v883, %v934
    %v954 = vmul.f32 %v884, %v936
    %v955 = vmul.f32 %v885, %v938
    %v956 = vmul.f32 %v886, %v940
    %v957 = vmul.f32 %v887, %v942
    %v958 = vmul.f32 %v888, %v944
    %v959 = vsub.f32 1.0, %v945
    %v960 = vsub.f32 1.0, %v946
    %v961 = vsub.f32 1.0, %v947
    %v962 = vsub.f32 1.0, %v948
    %v963 = vsub.f32 1.0, %v949
    %v964 = vsub.f32 1.0, %v950
    %v965 = vsub.f32 1.0, %v951
    %v966 = vsub.f32 1.0, %v952
    %v967 = vsub.f32 1.0, %v953
    %v968 = vsub.f32 1.0, %v954
    %v969 = vsub.f32 1.0, %v955
    %v970 = vsub.f32 1.0, %v956
    %v971 = vsub.f32 1.0, %v957
    %v972 = vsub.f32 1.0, %v958
    %v973 = vmul.f32 %v679, %v959
    %v974 = vmul.f32 %v680, %v960
    %v975 = vmul.f32 %v681, %v961
    %v976 = vmul.f32 %v682, %v962
    %v977 = vmul.f32 %v683, %v963
    %v978 = vmul.f32 %v684, %v964
    %v979 = vmul.f32 %v685, %v965
    %v980 = vmul.f32 %v686, %v966
    %v981 = vmul.f32 %v687, %v967
    %v982 = vmul.f32 %v688, %v968
    %v983 = vmul.f32 %v689, %v969
    %v984 = vmul.f32 %v690, %v970
    %v985 = vmul.f32 %v691, %v971
    %v986 = vmul.f32 %v692, %v972
    %v987 = vadd.f32 %v973, 1.0
    %v988 = vadd.f32 %v974, 1.0
    %v989 = vadd.f32 %v975, 1.0
    %v990 = vadd.f32 %v976, 1.0
    %v991 = vadd.f32 %v977, 1.0
    %v992 = vadd.f32 %v978, 1.0
    %v993 = vadd.f32 %v979, 1.0
    %v994 = vadd.f32 %v980, 1.0
    %v995 = vadd.f32 %v981, 1.0
    %v996 = vadd.f32 %v982, 1.0
    %v997 = vadd.f32 %v983, 1.0
    %v998 = vadd.f32 %v984, 1.0
    %v999 = vadd.f32 %v985, 1.0
    %v1000 = vadd.f32 %v986, 1.0
    %v1001 = vmul.f32 %v637, %v987
    %v1002 = vmul.f32 %v638, %v988
    %v1003 = vmul.f32 %v639, %v989
    %v1004 = vmul.f32 %v640, %v990
    %v1005 = vmul.f32 %v641, %v991
    %v1006 = vmul.f32 %v642, %v992
    %v1007 = vmul.f32 %v643, %v993
    %v1008 = vmul.f32 %v644, %v994
    %v1009 = vmul.f32 %v645, %v995
    %v1010 = vmul.f32 %v646, %v996
    %v1011 = vmul.f32 %v647, %v997
    %v1012 = vmul.f32 %v648, %v998
    %v1013 = vmul.f32 %v649, %v999
    %v1014 = vmul.f32 %v650, %v1000
    %v1027 = vcombine.low %v1001, %v1002
    %v1028 = vcombine.low %v1003, %v1004
    %v1029 = vcombine.low %v1005, %v1006
    %v1030 = vcombine.low %v1008, %v1009
    %v1031 = vcombine.low %v1010, %v1011
    %v1032 = vcombine.low %v1012, %v1013
    %v1039 = vpack.c.bf16 %v1028, %v1027
    %v1040 = vpack.c.bf16 %v1007, %v1029
    %v1041 = vpack.c.bf16 %v1031, %v1030
    %v1042 = vpack.c.bf16 %v1014, %v1032
    %v1043 = vunpack.c.l.bf16 %v1039
    %v1044 = vunpack.c.h.bf16 %v1039
    %v1045 = vunpack.c.l.bf16 %v1040
    %v1046 = vunpack.c.h.bf16 %v1040
    %v1047 = vunpack.c.l.bf16 %v1041
    %v1048 = vunpack.c.h.bf16 %v1041
    %v1049 = vunpack.c.l.bf16 %v1042
    %v1050 = vunpack.c.h.bf16 %v1042
    %v1057 = vcombine.high %v1043, %v1043
    %v1058 = vcombine.high %v1044, %v1044
    %v1059 = vcombine.high %v1045, %v1045
    %v1060 = vcombine.high %v1047, %v1047
    %v1061 = vcombine.high %v1048, %v1048
    %v1062 = vcombine.high %v1049, %v1049
    %v1069 = vsub.f32 %v1001, %v1043
    %v1070 = vsub.f32 %v1002, %v1057
    %v1071 = vsub.f32 %v1003, %v1044
    %v1072 = vsub.f32 %v1004, %v1058
    %v1073 = vsub.f32 %v1005, %v1045
    %v1074 = vsub.f32 %v1006, %v1059
    %v1075 = vsub.f32 %v1007, %v1046
    %v1076 = vsub.f32 %v1008, %v1047
    %v1077 = vsub.f32 %v1009, %v1060
    %v1078 = vsub.f32 %v1010, %v1048
    %v1079 = vsub.f32 %v1011, %v1061
    %v1080 = vsub.f32 %v1012, %v1049
    %v1081 = vsub.f32 %v1013, %v1062
    %v1082 = vsub.f32 %v1014, %v1050
    %v1095 = vcombine.low %v1069, %v1070
    %v1096 = vcombine.low %v1071, %v1072
    %v1097 = vcombine.low %v1073, %v1074
    %v1098 = vcombine.low %v1076, %v1077
    %v1099 = vcombine.low %v1078, %v1079
    %v1100 = vcombine.low %v1080, %v1081
    %v1107 = vpack.c.bf16 %v1096, %v1095
    %v1108 = vpack.c.bf16 %v1075, %v1097
    %v1109 = vpack.c.bf16 %v1099, %v1098
    %v1110 = vpack.c.bf16 %v1082, %v1100
    %v1111 = vld [vmem:[#allocation2 + $0x18] sm:$0xff]
    %v1112 = vld [vmem:[#allocation2 + $0x20] sm:$0xff]
    %v1113 = vpack.c.bf16 %v1112, %v1111
    %v1114 = vunpack.c.l.bf16 %v1113
    %v1115 = vunpack.c.h.bf16 %v1113
    %v1116 = vsub.f32 %v1111, %v1114
    %v1117 = vsub.f32 %v1112, %v1115
    %v1118 = vpack.c.bf16 %v1117, %v1116
    %v1123 = vunpack.c.l.b16 %v1107
    %v1124 = vunpack.c.h.b16 %v1107
    %v1125 = vunpack.c.l.b16 %v1108
    %v1126 = vunpack.c.l.b16 %v1109
    %v1127 = vunpack.c.h.b16 %v1109
    %v1128 = vunpack.c.l.b16 %v1110
    %v1129 = vpack.c.b16 %v1124, %v1123
    %v1130 = vpack.c.b16 %v1126, %v1125
    %v1131 = vpack.c.b16 %v1128, %v1127
    %vm1132 = vcmask 130048
    %v1134 = vsel %vm1132, %v1129, 0
    %v1137 = vsel %vm1132, %v1130, 0
    %v1140 = vsel %vm1132, %v1131, 0
    %1142 = vmatprep.subr.bf16.mxu0 0
    %1143 = vmatpush1.bf16.msra.mxu0 %v1113
    %1144 = vmatprep.subr.bf16.mxu0 0
    %1145 = vmatpush1.bf16.msra.mxu0 0
    %1146 = vmatprep.subr.bf16.mxu0 0
    %1147 = vmatpush1.bf16.msra.mxu0 0
    %1148 = vmatprep.subr.bf16.mxu0 0
    %1149 = vmatpush1.bf16.msra.mxu0 0
    %1150 = vmatprep.subr.bf16.mxu0 0
    %1151 = vmatpush1.bf16.msra.mxu0 0
    %1152 = vmatprep.subr.bf16.mxu0 0
    %1153 = vmatpush1.bf16.msra.mxu0 0
    %1154 = vmatprep.subr.bf16.mxu0 0
    %1155 = vmatpush1.bf16.msra.mxu0 0
    %1156 = vmatprep.subr.bf16.mxu0 0
    %1157 = vmatpush1.bf16.msra.mxu0 0
    %1158 = vmatprep.subr.bf16.mxu0 0
    %1159 = vmatpush1.bf16.msra.mxu0 0
    %1160 = vmatprep.subr.bf16.mxu0 0
    %1161 = vmatpush1.bf16.msra.mxu0 0
    %1162 = vmatprep.subr.bf16.mxu0 0
    %1163 = vmatpush1.bf16.msra.mxu0 0
    %1164 = vmatprep.subr.bf16.mxu0 0
    %1165 = vmatpush1.bf16.msra.mxu0 0
    %1166 = vmatprep.subr.bf16.mxu0 0
    %1167 = vmatpush1.bf16.msra.mxu0 0
    %1168 = vmatprep.subr.bf16.mxu0 0
    %1169 = vmatpush1.bf16.msra.mxu0 0
    %1170 = vmatprep.subr.bf16.mxu0 0
    %1171 = vmatpush1.bf16.msra.mxu0 0
    %1172 = vmatprep.subr.bf16.mxu0 0
    %1173 = vmatpush1.bf16.msra.mxu0 0
    %1174 = vmatprep.mubr.bf16.mxu0 0
    %1175 = vmatmul.mubr.bf16.gmra.mrb[0].mxu0 %v1134
    %v1176 = vpop.f32.mrb[0].mxu0
    %v1177 = vadd.f32 0.0, %v1176
    %v1178 = vpop.f32.mrb[0].mxu0
    %v1179 = vpop.f32.mrb[0].mxu0
    %v1180 = vadd.f32 0.0, %v1179
    %v1181 = vpop.f32.mrb[0].mxu0
    %1182 = vmatprep.mubr.bf16.mxu0 0
    %1183 = vmatmul.mubr.bf16.gmra.mrb[0].mxu0 %v1137
    %v1184 = vpop.f32.mrb[0].mxu0
    %v1185 = vadd.f32 0.0, %v1184
    %v1186 = vpop.f32.mrb[0].mxu0
    %v1187 = vpop.f32.mrb[0].mxu0
    %v1188 = vadd.f32 0.0, %v1187
    %v1189 = vpop.f32.mrb[0].mxu0
    %1190 = vmatprep.mubr.bf16.mxu0 0
    %1191 = vmatmul.mubr.bf16.gmra.mrb[0].mxu0 %v1140
    %v1192 = vpop.f32.mrb[0].mxu0
    %v1193 = vadd.f32 0.0, %v1192
    %v1194 = vpop.f32.mrb[0].mxu0
    %v1195 = vpop.f32.mrb[0].mxu0
    %v1196 = vadd.f32 0.0, %v1195
    %v1197 = vpop.f32.mrb[0].mxu0
    %1198 = vdwg.mxu0
    %v1203 = vunpack.c.l.b16 %v1039
    %v1204 = vunpack.c.h.b16 %v1039
    %v1205 = vunpack.c.l.b16 %v1040
    %v1206 = vunpack.c.l.b16 %v1041
    %v1207 = vunpack.c.h.b16 %v1041
    %v1208 = vunpack.c.l.b16 %v1042
    %v1209 = vpack.c.b16 %v1204, %v1203
    %v1210 = vpack.c.b16 %v1206, %v1205
    %v1211 = vpack.c.b16 %v1208, %v1207
    %v1213 = vsel %vm1132, %v1209, 0
    %v1216 = vsel %vm1132, %v1210, 0
    %v1219 = vsel %vm1132, %v1211, 0
    %1221 = vmatprep.subr.bf16.mxu0 0
    %1222 = vmatpush1.bf16.msra.mxu0 %v1113
    %1223 = vmatprep.subr.bf16.mxu0 0
    %1224 = vmatpush1.bf16.msra.mxu0 0
    %1225 = vmatprep.subr.bf16.mxu0 0
    %1226 = vmatpush1.bf16.msra.mxu0 0
    %1227 = vmatprep.subr.bf16.mxu0 0
    %1228 = vmatpush1.bf16.msra.mxu0 0
    %1229 = vmatprep.subr.bf16.mxu0 0
    %1230 = vmatpush1.bf16.msra.mxu0 0
    %1231 = vmatprep.subr.bf16.mxu0 0
    %1232 = vmatpush1.bf16.msra.mxu0 0
    %1233 = vmatprep.subr.bf16.mxu0 0
    %1234 = vmatpush1.bf16.msra.mxu0 0
    %1235 = vmatprep.subr.bf16.mxu0 0
    %1236 = vmatpush1.bf16.msra.mxu0 0
    %1237 = vmatprep.subr.bf16.mxu0 0
    %1238 = vmatpush1.bf16.msra.mxu0 0
    %1239 = vmatprep.subr.bf16.mxu0 0
    %1240 = vmatpush1.bf16.msra.mxu0 0
    %1241 = vmatprep.subr.bf16.mxu0 0
    %1242 = vmatpush1.bf16.msra.mxu0 0
    %1243 = vmatprep.subr.bf16.mxu0 0
    %1244 = vmatpush1.bf16.msra.mxu0 0
    %1245 = vmatprep.subr.bf16.mxu0 0
    %1246 = vmatpush1.bf16.msra.mxu0 0
    %1247 = vmatprep.subr.bf16.mxu0 0
    %1248 = vmatpush1.bf16.msra.mxu0 0
    %1249 = vmatprep.subr.bf16.mxu0 0
    %1250 = vmatpush1.bf16.msra.mxu0 0
    %1251 = vmatprep.subr.bf16.mxu0 0
    %1252 = vmatpush1.bf16.msra.mxu0 0
    %1253 = vmatprep.mubr.bf16.mxu0 0
    %1254 = vmatmul.mubr.bf16.gmra.mrb[0].mxu0 %v1213
    %v1255 = vpop.f32.mrb[0].mxu0
    %v1256 = vadd.f32 %v1177, %v1255
    %v1257 = vpop.f32.mrb[0].mxu0
    %v1258 = vpop.f32.mrb[0].mxu0
    %v1259 = vadd.f32 %v1180, %v1258
    %v1260 = vpop.f32.mrb[0].mxu0
    %1261 = vmatprep.mubr.bf16.mxu0 0
    %1262 = vmatmul.mubr.bf16.gmra.mrb[0].mxu0 %v1216
    %v1263 = vpop.f32.mrb[0].mxu0
    %v1264 = vadd.f32 %v1185, %v1263
    %v1265 = vpop.f32.mrb[0].mxu0
    %v1266 = vpop.f32.mrb[0].mxu0
    %v1267 = vadd.f32 %v1188, %v1266
    %v1268 = vpop.f32.mrb[0].mxu0
    %1269 = vmatprep.mubr.bf16.mxu0 0
    %1270 = vmatmul.mubr.bf16.gmra.mrb[0].mxu0 %v1219
    %v1271 = vpop.f32.mrb[0].mxu0
    %v1272 = vadd.f32 %v1193, %v1271
    %v1273 = vpop.f32.mrb[0].mxu0
    %v1274 = vpop.f32.mrb[0].mxu0
    %v1275 = vadd.f32 %v1196, %v1274
    %v1276 = vpop.f32.mrb[0].mxu0
    %1277 = vdwg.mxu0
    %1278 = vmatprep.subr.bf16.mxu0 0
    %1279 = vmatpush1.bf16.msra.mxu0 %v1118
    %1280 = vmatprep.subr.bf16.mxu0 0
    %1281 = vmatpush1.bf16.msra.mxu0 0
    %1282 = vmatprep.subr.bf16.mxu0 0
    %1283 = vmatpush1.bf16.msra.mxu0 0
    %1284 = vmatprep.subr.bf16.mxu0 0
    %1285 = vmatpush1.bf16.msra.mxu0 0
    %1286 = vmatprep.subr.bf16.mxu0 0
    %1287 = vmatpush1.bf16.msra.mxu0 0
    %1288 = vmatprep.subr.bf16.mxu0 0
    %1289 = vmatpush1.bf16.msra.mxu0 0
    %1290 = vmatprep.subr.bf16.mxu0 0
    %1291 = vmatpush1.bf16.msra.mxu0 0
    %1292 = vmatprep.subr.bf16.mxu0 0
    %1293 = vmatpush1.bf16.msra.mxu0 0
    %1294 = vmatprep.subr.bf16.mxu0 0
    %1295 = vmatpush1.bf16.msra.mxu0 0
    %1296 = vmatprep.subr.bf16.mxu0 0
    %1297 = vmatpush1.bf16.msra.mxu0 0
    %1298 = vmatprep.subr.bf16.mxu0 0
    %1299 = vmatpush1.bf16.msra.mxu0 0
    %1300 = vmatprep.subr.bf16.mxu0 0
    %1301 = vmatpush1.bf16.msra.mxu0 0
    %1302 = vmatprep.subr.bf16.mxu0 0
    %1303 = vmatpush1.bf16.msra.mxu0 0
    %1304 = vmatprep.subr.bf16.mxu0 0
    %1305 = vmatpush1.bf16.msra.mxu0 0
    %1306 = vmatprep.subr.bf16.mxu0 0
    %1307 = vmatpush1.bf16.msra.mxu0 0
    %1308 = vmatprep.subr.bf16.mxu0 0
    %1309 = vmatpush1.bf16.msra.mxu0 0
    %1310 = vmatprep.mubr.bf16.mxu0 0
    %1311 = vmatmul.mubr.bf16.gmra.mrb[0].mxu0 %v1213
    %v1312 = vpop.f32.mrb[0].mxu0
    %v1313 = vadd.f32 0.0, %v1312
    %v1314 = vpop.f32.mrb[0].mxu0
    %v1315 = vpop.f32.mrb[0].mxu0
    %v1316 = vadd.f32 0.0, %v1315
    %v1317 = vpop.f32.mrb[0].mxu0
    %1318 = vmatprep.mubr.bf16.mxu0 0
    %1319 = vmatmul.mubr.bf16.gmra.mrb[0].mxu0 %v1216
    %v1320 = vpop.f32.mrb[0].mxu0
    %v1321 = vadd.f32 0.0, %v1320
    %v1322 = vpop.f32.mrb[0].mxu0
    %v1323 = vpop.f32.mrb[0].mxu0
    %v1324 = vadd.f32 0.0, %v1323
    %v1325 = vpop.f32.mrb[0].mxu0
    %1326 = vmatprep.mubr.bf16.mxu0 0
    %1327 = vmatmul.mubr.bf16.gmra.mrb[0].mxu0 %v1219
    %v1328 = vpop.f32.mrb[0].mxu0
    %v1329 = vadd.f32 0.0, %v1328
    %v1330 = vpop.f32.mrb[0].mxu0
    %v1331 = vpop.f32.mrb[0].mxu0
    %v1332 = vadd.f32 0.0, %v1331
    %v1333 = vpop.f32.mrb[0].mxu0
    %1334 = vdwg.mxu0
    %v1335 = vadd.f32 %v1256, %v1313
    %v1336 = vadd.f32 %v1259, %v1316
    %v1337 = vadd.f32 %v1264, %v1321
    %v1338 = vadd.f32 %v1267, %v1324
    %v1339 = vadd.f32 %v1272, %v1329
    %v1340 = vadd.f32 %v1275, %v1332
    %v1341 = vld [vmem:[#allocation2 + $0x28] sm:$0xff]
    %v1342 = vld [vmem:[#allocation2 + $0x30] sm:$0xff]
    %v1343 = vpack.c.bf16 %v1342, %v1341
    %v1344 = vunpack.c.l.bf16 %v1343
    %v1345 = vunpack.c.h.bf16 %v1343
    %v1346 = vsub.f32 %v1341, %v1344
    %v1347 = vsub.f32 %v1342, %v1345
    %v1348 = vpack.c.bf16 %v1347, %v1346
    %v1349 = vunpack.c.h.b16 %v1108
    %v1350 = vunpack.c.h.b16 %v1110
    %v1351 = vpack.c.b16 %v1123, %v1123
    %v1352 = vpack.c.b16 %v1124, %v1124
    %v1353 = vpack.c.b16 %v1125, %v1125
    %v1354 = vpack.c.b16 %v1349, %v1349
    %v1355 = vpack.c.b16 %v1126, %v1126
    %v1356 = vpack.c.b16 %v1127, %v1127
    %v1357 = vpack.c.b16 %v1128, %v1128
    %v1358 = vpack.c.b16 %v1350, %v1350
    %vm1359 = vcmask 1042432
    %vm1360 = vcmask 1046532
    %vm1361 = vmor %vm1359, %vm1360
    %v1362 = vrot.slane %v1351, 5
    %v1363 = vrot.slane %v1362, 4
    %v1364 = vrot.slane %v1352, 5
    %v1365 = vsel %vm1361, %v1363, %v1364
    %v1366 = vrot.slane %v1364, 4
    %v1367 = vrot.slane %v1353, 5
    %v1368 = vsel %vm1361, %v1366, %v1367
    %v1369 = vrot.slane %v1367, 4
    %v1370 = vrot.slane %v1354, 5
    %v1371 = vsel %vm1361, %v1369, %v1370
    %v1372 = vrot.slane %v1355, 5
    %v1373 = vrot.slane %v1372, 4
    %v1374 = vrot.slane %v1356, 5
    %v1375 = vsel %vm1361, %v1373, %v1374
    %v1376 = vrot.slane %v1374, 4
    %v1377 = vrot.slane %v1357, 5
    %v1378 = vsel %vm1361, %v1376, %v1377
    %v1379 = vrot.slane %v1377, 4
    %v1380 = vrot.slane %v1358, 5
    %v1381 = vsel %vm1361, %v1379, %v1380
    %v1382 = vunpack.c.l.b16 %v1365
    %v1383 = vunpack.c.l.b16 %v1368
    %v1384 = vunpack.c.l.b16 %v1371
    %v1385 = vunpack.c.l.b16 %v1375
    %v1386 = vunpack.c.l.b16 %v1378
    %v1387 = vunpack.c.l.b16 %v1381
    %v1388 = vpack.c.b16 %v1383, %v1382
    %v1389 = vpack.c.b16 %v1385, %v1384
    %v1390 = vpack.c.b16 %v1387, %v1386
    %v1392 = vsel %vm1132, %v1388, 0
    %v1395 = vsel %vm1132, %v1389, 0
    %v1398 = vsel %vm1132, %v1390, 0
    %1400 = vmatprep.subr.bf16.mxu0 0
    %1401 = vmatpush1.bf16.msra.mxu0 %v1343
    %1402 = vmatprep.subr.bf16.mxu0 0
    %1403 = vmatpush1.bf16.msra.mxu0 0
    %1404 = vmatprep.subr.bf16.mxu0 0
    %1405 = vmatpush1.bf16.msra.mxu0 0
    %1406 = vmatprep.subr.bf16.mxu0 0
    %1407 = vmatpush1.bf16.msra.mxu0 0
    %1408 = vmatprep.subr.bf16.mxu0 0
    %1409 = vmatpush1.bf16.msra.mxu0 0
    %1410 = vmatprep.subr.bf16.mxu0 0
    %1411 = vmatpush1.bf16.msra.mxu0 0
    %1412 = vmatprep.subr.bf16.mxu0 0
    %1413 = vmatpush1.bf16.msra.mxu0 0
    %1414 = vmatprep.subr.bf16.mxu0 0
    %1415 = vmatpush1.bf16.msra.mxu0 0
    %1416 = vmatprep.subr.bf16.mxu0 0
    %1417 = vmatpush1.bf16.msra.mxu0 0
    %1418 = vmatprep.subr.bf16.mxu0 0
    %1419 = vmatpush1.bf16.msra.mxu0 0
    %1420 = vmatprep.subr.bf16.mxu0 0
    %1421 = vmatpush1.bf16.msra.mxu0 0
    %1422 = vmatprep.subr.bf16.mxu0 0
    %1423 = vmatpush1.bf16.msra.mxu0 0
    %1424 = vmatprep.subr.bf16.mxu0 0
    %1425 = vmatpush1.bf16.msra.mxu0 0
    %1426 = vmatprep.subr.bf16.mxu0 0
    %1427 = vmatpush1.bf16.msra.mxu0 0
    %1428 = vmatprep.subr.bf16.mxu0 0
    %1429 = vmatpush1.bf16.msra.mxu0 0
    %1430 = vmatprep.subr.bf16.mxu0 0
    %1431 = vmatpush1.bf16.msra.mxu0 0
    %1432 = vmatprep.mubr.bf16.mxu0 0
    %1433 = vmatmul.mubr.bf16.gmra.mrb[0].mxu0 %v1392
    %v1434 = vpop.f32.mrb[0].mxu0
    %v1435 = vadd.f32 0.0, %v1434
    %v1436 = vpop.f32.mrb[0].mxu0
    %v1437 = vpop.f32.mrb[0].mxu0
    %v1438 = vadd.f32 0.0, %v1437
    %v1439 = vpop.f32.mrb[0].mxu0
    %1440 = vmatprep.mubr.bf16.mxu0 0
    %1441 = vmatmul.mubr.bf16.gmra.mrb[0].mxu0 %v1395
    %v1442 = vpop.f32.mrb[0].mxu0
    %v1443 = vadd.f32 0.0, %v1442
    %v1444 = vpop.f32.mrb[0].mxu0
    %v1445 = vpop.f32.mrb[0].mxu0
    %v1446 = vadd.f32 0.0, %v1445
    %v1447 = vpop.f32.mrb[0].mxu0
    %1448 = vmatprep.mubr.bf16.mxu0 0
    %1449 = vmatmul.mubr.bf16.gmra.mrb[0].mxu0 %v1398
    %v1450 = vpop.f32.mrb[0].mxu0
    %v1451 = vadd.f32 0.0, %v1450
    %v1452 = vpop.f32.mrb[0].mxu0
    %v1453 = vpop.f32.mrb[0].mxu0
    %v1454 = vadd.f32 0.0, %v1453
    %v1455 = vpop.f32.mrb[0].mxu0
    %1456 = vdwg.mxu0
    %v1457 = vunpack.c.h.b16 %v1040
    %v1458 = vunpack.c.h.b16 %v1042
    %v1459 = vpack.c.b16 %v1203, %v1203
    %v1460 = vpack.c.b16 %v1204, %v1204
    %v1461 = vpack.c.b16 %v1205, %v1205
    %v1462 = vpack.c.b16 %v1457, %v1457
    %v1463 = vpack.c.b16 %v1206, %v1206
    %v1464 = vpack.c.b16 %v1207, %v1207
    %v1465 = vpack.c.b16 %v1208, %v1208
    %v1466 = vpack.c.b16 %v1458, %v1458
    %v1467 = vrot.slane %v1459, 5
    %v1468 = vrot.slane %v1467, 4
    %v1469 = vrot.slane %v1460, 5
    %v1470 = vsel %vm1361, %v1468, %v1469
    %v1471 = vrot.slane %v1469, 4
    %v1472 = vrot.slane %v1461, 5
    %v1473 = vsel %vm1361, %v1471, %v1472
    %v1474 = vrot.slane %v1472, 4
    %v1475 = vrot.slane %v1462, 5
    %v1476 = vsel %vm1361, %v1474, %v1475
    %v1477 = vrot.slane %v1463, 5
    %v1478 = vrot.slane %v1477, 4
    %v1479 = vrot.slane %v1464, 5
    %v1480 = vsel %vm1361, %v1478, %v1479
    %v1481 = vrot.slane %v1479, 4
    %v1482 = vrot.slane %v1465, 5
    %v1483 = vsel %vm1361, %v1481, %v1482
    %v1484 = vrot.slane %v1482, 4
    %v1485 = vrot.slane %v1466, 5
    %v1486 = vsel %vm1361, %v1484, %v1485
    %v1487 = vunpack.c.l.b16 %v1470
    %v1488 = vunpack.c.l.b16 %v1473
    %v1489 = vunpack.c.l.b16 %v1476
    %v1490 = vunpack.c.l.b16 %v1480
    %v1491 = vunpack.c.l.b16 %v1483
    %v1492 = vunpack.c.l.b16 %v1486
    %v1493 = vpack.c.b16 %v1488, %v1487
    %v1494 = vpack.c.b16 %v1490, %v1489
    %v1495 = vpack.c.b16 %v1492, %v1491
    %v1497 = vsel %vm1132, %v1493, 0
    %v1500 = vsel %vm1132, %v1494, 0
    %v1503 = vsel %vm1132, %v1495, 0
    %1505 = vmatprep.subr.bf16.mxu0 0
    %1506 = vmatpush1.bf16.msra.mxu0 %v1343
    %1507 = vmatprep.subr.bf16.mxu0 0
    %1508 = vmatpush1.bf16.msra.mxu0 0
    %1509 = vmatprep.subr.bf16.mxu0 0
    %1510 = vmatpush1.bf16.msra.mxu0 0
    %1511 = vmatprep.subr.bf16.mxu0 0
    %1512 = vmatpush1.bf16.msra.mxu0 0
    %1513 = vmatprep.subr.bf16.mxu0 0
    %1514 = vmatpush1.bf16.msra.mxu0 0
    %1515 = vmatprep.subr.bf16.mxu0 0
    %1516 = vmatpush1.bf16.msra.mxu0 0
    %1517 = vmatprep.subr.bf16.mxu0 0
    %1518 = vmatpush1.bf16.msra.mxu0 0
    %1519 = vmatprep.subr.bf16.mxu0 0
    %1520 = vmatpush1.bf16.msra.mxu0 0
    %1521 = vmatprep.subr.bf16.mxu0 0
    %1522 = vmatpush1.bf16.msra.mxu0 0
    %1523 = vmatprep.subr.bf16.mxu0 0
    %1524 = vmatpush1.bf16.msra.mxu0 0
    %1525 = vmatprep.subr.bf16.mxu0 0
    %1526 = vmatpush1.bf16.msra.mxu0 0
    %1527 = vmatprep.subr.bf16.mxu0 0
    %1528 = vmatpush1.bf16.msra.mxu0 0
    %1529 = vmatprep.subr.bf16.mxu0 0
    %1530 = vmatpush1.bf16.msra.mxu0 0
    %1531 = vmatprep.subr.bf16.mxu0 0
    %1532 = vmatpush1.bf16.msra.mxu0 0
    %1533 = vmatprep.subr.bf16.mxu0 0
    %1534 = vmatpush1.bf16.msra.mxu0 0
    %1535 = vmatprep.subr.bf16.mxu0 0
    %1536 = vmatpush1.bf16.msra.mxu0 0
    %1537 = vmatprep.mubr.bf16.mxu0 0
    %1538 = vmatmul.mubr.bf16.gmra.mrb[0].mxu0 %v1497
    %v1539 = vpop.f32.mrb[0].mxu0
    %v1540 = vadd.f32 %v1435, %v1539
    %v1541 = vpop.f32.mrb[0].mxu0
    %v1542 = vpop.f32.mrb[0].mxu0
    %v1543 = vadd.f32 %v1438, %v1542
    %v1544 = vpop.f32.mrb[0].mxu0
    %1545 = vmatprep.mubr.bf16.mxu0 0
    %1546 = vmatmul.mubr.bf16.gmra.mrb[0].mxu0 %v1500
    %v1547 = vpop.f32.mrb[0].mxu0
    %v1548 = vadd.f32 %v1443, %v1547
    %v1549 = vpop.f32.mrb[0].mxu0
    %v1550 = vpop.f32.mrb[0].mxu0
    %v1551 = vadd.f32 %v1446, %v1550
    %v1552 = vpop.f32.mrb[0].mxu0
    %1553 = vmatprep.mubr.bf16.mxu0 0
    %1554 = vmatmul.mubr.bf16.gmra.mrb[0].mxu0 %v1503
    %v1555 = vpop.f32.mrb[0].mxu0
    %v1556 = vadd.f32 %v1451, %v1555
    %v1557 = vpop.f32.mrb[0].mxu0
    %v1558 = vpop.f32.mrb[0].mxu0
    %v1559 = vadd.f32 %v1454, %v1558
    %v1560 = vpop.f32.mrb[0].mxu0
    %1561 = vdwg.mxu0
    %1562 = vmatprep.subr.bf16.mxu0 0
    %1563 = vmatpush1.bf16.msra.mxu0 %v1348
    %1564 = vmatprep.subr.bf16.mxu0 0
    %1565 = vmatpush1.bf16.msra.mxu0 0
    %1566 = vmatprep.subr.bf16.mxu0 0
    %1567 = vmatpush1.bf16.msra.mxu0 0
    %1568 = vmatprep.subr.bf16.mxu0 0
    %1569 = vmatpush1.bf16.msra.mxu0 0
    %1570 = vmatprep.subr.bf16.mxu0 0
    %1571 = vmatpush1.bf16.msra.mxu0 0
    %1572 = vmatprep.subr.bf16.mxu0 0
    %1573 = vmatpush1.bf16.msra.mxu0 0
    %1574 = vmatprep.subr.bf16.mxu0 0
    %1575 = vmatpush1.bf16.msra.mxu0 0
    %1576 = vmatprep.subr.bf16.mxu0 0
    %1577 = vmatpush1.bf16.msra.mxu0 0
    %1578 = vmatprep.subr.bf16.mxu0 0
    %1579 = vmatpush1.bf16.msra.mxu0 0
    %1580 = vmatprep.subr.bf16.mxu0 0
    %1581 = vmatpush1.bf16.msra.mxu0 0
    %1582 = vmatprep.subr.bf16.mxu0 0
    %1583 = vmatpush1.bf16.msra.mxu0 0
    %1584 = vmatprep.subr.bf16.mxu0 0
    %1585 = vmatpush1.bf16.msra.mxu0 0
    %1586 = vmatprep.subr.bf16.mxu0 0
    %1587 = vmatpush1.bf16.msra.mxu0 0
    %1588 = vmatprep.subr.bf16.mxu0 0
    %1589 = vmatpush1.bf16.msra.mxu0 0
    %1590 = vmatprep.subr.bf16.mxu0 0
    %1591 = vmatpush1.bf16.msra.mxu0 0
    %1592 = vmatprep.subr.bf16.mxu0 0
    %1593 = vmatpush1.bf16.msra.mxu0 0
    %1594 = vmatprep.mubr.bf16.mxu0 0
    %1595 = vmatmul.mubr.bf16.gmra.mrb[0].mxu0 %v1497
    %v1596 = vpop.f32.mrb[0].mxu0
    %v1597 = vadd.f32 0.0, %v1596
    %v1598 = vpop.f32.mrb[0].mxu0
    %v1599 = vpop.f32.mrb[0].mxu0
    %v1600 = vadd.f32 0.0, %v1599
    %v1601 = vpop.f32.mrb[0].mxu0
    %1602 = vmatprep.mubr.bf16.mxu0 0
    %1603 = vmatmul.mubr.bf16.gmra.mrb[0].mxu0 %v1500
    %v1604 = vpop.f32.mrb[0].mxu0
    %v1605 = vadd.f32 0.0, %v1604
    %v1606 = vpop.f32.mrb[0].mxu0
    %v1607 = vpop.f32.mrb[0].mxu0
    %v1608 = vadd.f32 0.0, %v1607
    %v1609 = vpop.f32.mrb[0].mxu0
    %1610 = vmatprep.mubr.bf16.mxu0 0
    %1611 = vmatmul.mubr.bf16.gmra.mrb[0].mxu0 %v1503
    %v1612 = vpop.f32.mrb[0].mxu0
    %v1613 = vadd.f32 0.0, %v1612
    %v1614 = vpop.f32.mrb[0].mxu0
    %v1615 = vpop.f32.mrb[0].mxu0
    %v1616 = vadd.f32 0.0, %v1615
    %v1617 = vpop.f32.mrb[0].mxu0
    %1618 = vdwg.mxu0
    %v1619 = vadd.f32 %v1540, %v1597
    %v1620 = vadd.f32 %v1543, %v1600
    %v1621 = vadd.f32 %v1548, %v1605
    %v1622 = vadd.f32 %v1551, %v1608
    %v1623 = vadd.f32 %v1556, %v1613
    %v1624 = vadd.f32 %v1559, %v1616
    %v1625 = vadd.f32 %v1335, %v1619
    %v1626 = vadd.f32 %v1336, %v1620
    %v1627 = vadd.f32 %v1337, %v1621
    %v1628 = vadd.f32 %v1338, %v1622
    %v1629 = vadd.f32 %v1339, %v1623
    %v1630 = vadd.f32 %v1340, %v1624
    %v1631 = vld [vmem:[#allocation2 + $0x38] sm:$0xff]
    %v1632 = vld [vmem:[#allocation2 + $0x40] sm:$0xff]
    %v1633 = vpack.c.bf16 %v1632, %v1631
    %v1634 = vunpack.c.l.bf16 %v1633
    %v1635 = vunpack.c.h.bf16 %v1633
    %v1636 = vsub.f32 %v1631, %v1634
    %v1637 = vsub.f32 %v1632, %v1635
    %v1638 = vpack.c.bf16 %v1637, %v1636
    %vm1639 = vcmask 1041408
    %vm1640 = vcmask 1045508
    %vm1641 = vmor %vm1639, %vm1640
    %v1642 = vrot.slane %v1351, 6
    %v1643 = vrot.slane %v1642, 4
    %v1644 = vrot.slane %v1352, 6
    %v1645 = vsel %vm1641, %v1643, %v1644
    %v1646 = vrot.slane %v1644, 4
    %v1647 = vrot.slane %v1353, 6
    %v1648 = vsel %vm1641, %v1646, %v1647
    %v1649 = vrot.slane %v1647, 4
    %v1650 = vrot.slane %v1354, 6
    %v1651 = vsel %vm1641, %v1649, %v1650
    %v1652 = vrot.slane %v1355, 6
    %v1653 = vrot.slane %v1652, 4
    %v1654 = vrot.slane %v1356, 6
    %v1655 = vsel %vm1641, %v1653, %v1654
    %v1656 = vrot.slane %v1654, 4
    %v1657 = vrot.slane %v1357, 6
    %v1658 = vsel %vm1641, %v1656, %v1657
    %v1659 = vrot.slane %v1657, 4
    %v1660 = vrot.slane %v1358, 6
    %v1661 = vsel %vm1641, %v1659, %v1660
    %v1662 = vunpack.c.l.b16 %v1645
    %v1663 = vunpack.c.l.b16 %v1648
    %v1664 = vunpack.c.l.b16 %v1651
    %v1665 = vunpack.c.l.b16 %v1655
    %v1666 = vunpack.c.l.b16 %v1658
    %v1667 = vunpack.c.l.b16 %v1661
    %v1668 = vpack.c.b16 %v1663, %v1662
    %v1669 = vpack.c.b16 %v1665, %v1664
    %v1670 = vpack.c.b16 %v1667, %v1666
    %v1672 = vsel %vm1132, %v1668, 0
    %v1675 = vsel %vm1132, %v1669, 0
    %v1678 = vsel %vm1132, %v1670, 0
    %1680 = vmatprep.subr.bf16.mxu0 0
    %1681 = vmatpush1.bf16.msra.mxu0 %v1633
    %1682 = vmatprep.subr.bf16.mxu0 0
    %1683 = vmatpush1.bf16.msra.mxu0 0
    %1684 = vmatprep.subr.bf16.mxu0 0
    %1685 = vmatpush1.bf16.msra.mxu0 0
    %1686 = vmatprep.subr.bf16.mxu0 0
    %1687 = vmatpush1.bf16.msra.mxu0 0
    %1688 = vmatprep.subr.bf16.mxu0 0
    %1689 = vmatpush1.bf16.msra.mxu0 0
    %1690 = vmatprep.subr.bf16.mxu0 0
    %1691 = vmatpush1.bf16.msra.mxu0 0
    %1692 = vmatprep.subr.bf16.mxu0 0
    %1693 = vmatpush1.bf16.msra.mxu0 0
    %1694 = vmatprep.subr.bf16.mxu0 0
    %1695 = vmatpush1.bf16.msra.mxu0 0
    %1696 = vmatprep.subr.bf16.mxu0 0
    %1697 = vmatpush1.bf16.msra.mxu0 0
    %1698 = vmatprep.subr.bf16.mxu0 0
    %1699 = vmatpush1.bf16.msra.mxu0 0
    %1700 = vmatprep.subr.bf16.mxu0 0
    %1701 = vmatpush1.bf16.msra.mxu0 0
    %1702 = vmatprep.subr.bf16.mxu0 0
    %1703 = vmatpush1.bf16.msra.mxu0 0
    %1704 = vmatprep.subr.bf16.mxu0 0
    %1705 = vmatpush1.bf16.msra.mxu0 0
    %1706 = vmatprep.subr.bf16.mxu0 0
    %1707 = vmatpush1.bf16.msra.mxu0 0
    %1708 = vmatprep.subr.bf16.mxu0 0
    %1709 = vmatpush1.bf16.msra.mxu0 0
    %1710 = vmatprep.subr.bf16.mxu0 0
    %1711 = vmatpush1.bf16.msra.mxu0 0
    %1712 = vmatprep.mubr.bf16.mxu0 0
    %1713 = vmatmul.mubr.bf16.gmra.mrb[0].mxu0 %v1672
    %v1714 = vpop.f32.mrb[0].mxu0
    %v1715 = vadd.f32 0.0, %v1714
    %v1716 = vpop.f32.mrb[0].mxu0
    %v1717 = vpop.f32.mrb[0].mxu0
    %v1718 = vadd.f32 0.0, %v1717
    %v1719 = vpop.f32.mrb[0].mxu0
    %1720 = vmatprep.mubr.bf16.mxu0 0
    %1721 = vmatmul.mubr.bf16.gmra.mrb[0].mxu0 %v1675
    %v1722 = vpop.f32.mrb[0].mxu0
    %v1723 = vadd.f32 0.0, %v1722
    %v1724 = vpop.f32.mrb[0].mxu0
    %v1725 = vpop.f32.mrb[0].mxu0
    %v1726 = vadd.f32 0.0, %v1725
    %v1727 = vpop.f32.mrb[0].mxu0
    %1728 = vmatprep.mubr.bf16.mxu0 0
    %1729 = vmatmul.mubr.bf16.gmra.mrb[0].mxu0 %v1678
    %v1730 = vpop.f32.mrb[0].mxu0
    %v1731 = vadd.f32 0.0, %v1730
    %v1732 = vpop.f32.mrb[0].mxu0
    %v1733 = vpop.f32.mrb[0].mxu0
    %v1734 = vadd.f32 0.0, %v1733
    %v1735 = vpop.f32.mrb[0].mxu0
    %1736 = vdwg.mxu0
    %v1737 = vrot.slane %v1459, 6
    %v1738 = vrot.slane %v1737, 4
    %v1739 = vrot.slane %v1460, 6
    %v1740 = vsel %vm1641, %v1738, %v1739
    %v1741 = vrot.slane %v1739, 4
    %v1742 = vrot.slane %v1461, 6
    %v1743 = vsel %vm1641, %v1741, %v1742
    %v1744 = vrot.slane %v1742, 4
    %v1745 = vrot.slane %v1462, 6
    %v1746 = vsel %vm1641, %v1744, %v1745
    %v1747 = vrot.slane %v1463, 6
    %v1748 = vrot.slane %v1747, 4
    %v1749 = vrot.slane %v1464, 6
    %v1750 = vsel %vm1641, %v1748, %v1749
    %v1751 = vrot.slane %v1749, 4
    %v1752 = vrot.slane %v1465, 6
    %v1753 = vsel %vm1641, %v1751, %v1752
    %v1754 = vrot.slane %v1752, 4
    %v1755 = vrot.slane %v1466, 6
    %v1756 = vsel %vm1641, %v1754, %v1755
    %v1757 = vunpack.c.l.b16 %v1740
    %v1758 = vunpack.c.l.b16 %v1743
    %v1759 = vunpack.c.l.b16 %v1746
    %v1760 = vunpack.c.l.b16 %v1750
    %v1761 = vunpack.c.l.b16 %v1753
    %v1762 = vunpack.c.l.b16 %v1756
    %v1763 = vpack.c.b16 %v1758, %v1757
    %v1764 = vpack.c.b16 %v1760, %v1759
    %v1765 = vpack.c.b16 %v1762, %v1761
    %v1767 = vsel %vm1132, %v1763, 0
    %v1770 = vsel %vm1132, %v1764, 0
    %v1773 = vsel %vm1132, %v1765, 0
    %1775 = vmatprep.subr.bf16.mxu0 0
    %1776 = vmatpush1.bf16.msra.mxu0 %v1633
    %1777 = vmatprep.subr.bf16.mxu0 0
    %1778 = vmatpush1.bf16.msra.mxu0 0
    %1779 = vmatprep.subr.bf16.mxu0 0
    %1780 = vmatpush1.bf16.msra.mxu0 0
    %1781 = vmatprep.subr.bf16.mxu0 0
    %1782 = vmatpush1.bf16.msra.mxu0 0
    %1783 = vmatprep.subr.bf16.mxu0 0
    %1784 = vmatpush1.bf16.msra.mxu0 0
    %1785 = vmatprep.subr.bf16.mxu0 0
    %1786 = vmatpush1.bf16.msra.mxu0 0
    %1787 = vmatprep.subr.bf16.mxu0 0
    %1788 = vmatpush1.bf16.msra.mxu0 0
    %1789 = vmatprep.subr.bf16.mxu0 0
    %1790 = vmatpush1.bf16.msra.mxu0 0
    %1791 = vmatprep.subr.bf16.mxu0 0
    %1792 = vmatpush1.bf16.msra.mxu0 0
    %1793 = vmatprep.subr.bf16.mxu0 0
    %1794 = vmatpush1.bf16.msra.mxu0 0
    %1795 = vmatprep.subr.bf16.mxu0 0
    %1796 = vmatpush1.bf16.msra.mxu0 0
    %1797 = vmatprep.subr.bf16.mxu0 0
    %1798 = vmatpush1.bf16.msra.mxu0 0
    %1799 = vmatprep.subr.bf16.mxu0 0
    %1800 = vmatpush1.bf16.msra.mxu0 0
    %1801 = vmatprep.subr.bf16.mxu0 0
    %1802 = vmatpush1.bf16.msra.mxu0 0
    %1803 = vmatprep.subr.bf16.mxu0 0
    %1804 = vmatpush1.bf16.msra.mxu0 0
    %1805 = vmatprep.subr.bf16.mxu0 0
    %1806 = vmatpush1.bf16.msra.mxu0 0
    %1807 = vmatprep.mubr.bf16.mxu0 0
    %1808 = vmatmul.mubr.bf16.gmra.mrb[0].mxu0 %v1767
    %v1809 = vpop.f32.mrb[0].mxu0
    %v1810 = vadd.f32 %v1715, %v1809
    %v1811 = vpop.f32.mrb[0].mxu0
    %v1812 = vpop.f32.mrb[0].mxu0
    %v1813 = vadd.f32 %v1718, %v1812
    %v1814 = vpop.f32.mrb[0].mxu0
    %1815 = vmatprep.mubr.bf16.mxu0 0
    %1816 = vmatmul.mubr.bf16.gmra.mrb[0].mxu0 %v1770
    %v1817 = vpop.f32.mrb[0].mxu0
    %v1818 = vadd.f32 %v1723, %v1817
    %v1819 = vpop.f32.mrb[0].mxu0
    %v1820 = vpop.f32.mrb[0].mxu0
    %v1821 = vadd.f32 %v1726, %v1820
    %v1822 = vpop.f32.mrb[0].mxu0
    %1823 = vmatprep.mubr.bf16.mxu0 0
    %1824 = vmatmul.mubr.bf16.gmra.mrb[0].mxu0 %v1773
    %v1825 = vpop.f32.mrb[0].mxu0
    %v1826 = vadd.f32 %v1731, %v1825
    %v1827 = vpop.f32.mrb[0].mxu0
    %v1828 = vpop.f32.mrb[0].mxu0
    %v1829 = vadd.f32 %v1734, %v1828
    %v1830 = vpop.f32.mrb[0].mxu0
    %1831 = vdwg.mxu0
    %1832 = vmatprep.subr.bf16.mxu0 0
    %1833 = vmatpush1.bf16.msra.mxu0 %v1638
    %1834 = vmatprep.subr.bf16.mxu0 0
    %1835 = vmatpush1.bf16.msra.mxu0 0
    %1836 = vmatprep.subr.bf16.mxu0 0
    %1837 = vmatpush1.bf16.msra.mxu0 0
    %1838 = vmatprep.subr.bf16.mxu0 0
    %1839 = vmatpush1.bf16.msra.mxu0 0
    %1840 = vmatprep.subr.bf16.mxu0 0
    %1841 = vmatpush1.bf16.msra.mxu0 0
    %1842 = vmatprep.subr.bf16.mxu0 0
    %1843 = vmatpush1.bf16.msra.mxu0 0
    %1844 = vmatprep.subr.bf16.mxu0 0
    %1845 = vmatpush1.bf16.msra.mxu0 0
    %1846 = vmatprep.subr.bf16.mxu0 0
    %1847 = vmatpush1.bf16.msra.mxu0 0
    %1848 = vmatprep.subr.bf16.mxu0 0
    %1849 = vmatpush1.bf16.msra.mxu0 0
    %1850 = vmatprep.subr.bf16.mxu0 0
    %1851 = vmatpush1.bf16.msra.mxu0 0
    %1852 = vmatprep.subr.bf16.mxu0 0
    %1853 = vmatpush1.bf16.msra.mxu0 0
    %1854 = vmatprep.subr.bf16.mxu0 0
    %1855 = vmatpush1.bf16.msra.mxu0 0
    %1856 = vmatprep.subr.bf16.mxu0 0
    %1857 = vmatpush1.bf16.msra.mxu0 0
    %1858 = vmatprep.subr.bf16.mxu0 0
    %1859 = vmatpush1.bf16.msra.mxu0 0
    %1860 = vmatprep.subr.bf16.mxu0 0
    %1861 = vmatpush1.bf16.msra.mxu0 0
    %1862 = vmatprep.subr.bf16.mxu0 0
    %1863 = vmatpush1.bf16.msra.mxu0 0
    %1864 = vmatprep.mubr.bf16.mxu0 0
    %1865 = vmatmul.mubr.bf16.gmra.mrb[0].mxu0 %v1767
    %v1866 = vpop.f32.mrb[0].mxu0
    %v1867 = vadd.f32 0.0, %v1866
    %v1868 = vpop.f32.mrb[0].mxu0
    %v1869 = vpop.f32.mrb[0].mxu0
    %v1870 = vadd.f32 0.0, %v1869
    %v1871 = vpop.f32.mrb[0].mxu0
    %1872 = vmatprep.mubr.bf16.mxu0 0
    %1873 = vmatmul.mubr.bf16.gmra.mrb[0].mxu0 %v1770
    %v1874 = vpop.f32.mrb[0].mxu0
    %v1875 = vadd.f32 0.0, %v1874
    %v1876 = vpop.f32.mrb[0].mxu0
    %v1877 = vpop.f32.mrb[0].mxu0
    %v1878 = vadd.f32 0.0, %v1877
    %v1879 = vpop.f32.mrb[0].mxu0
    %1880 = vmatprep.mubr.bf16.mxu0 0
    %1881 = vmatmul.mubr.bf16.gmra.mrb[0].mxu0 %v1773
    %v1882 = vpop.f32.mrb[0].mxu0
    %v1883 = vadd.f32 0.0, %v1882
    %v1884 = vpop.f32.mrb[0].mxu0
    %v1885 = vpop.f32.mrb[0].mxu0
    %v1886 = vadd.f32 0.0, %v1885
    %v1887 = vpop.f32.mrb[0].mxu0
    %1888 = vdwg.mxu0
    %v1889 = vadd.f32 %v1810, %v1867
    %v1890 = vadd.f32 %v1813, %v1870
    %v1891 = vadd.f32 %v1818, %v1875
    %v1892 = vadd.f32 %v1821, %v1878
    %v1893 = vadd.f32 %v1826, %v1883
    %v1894 = vadd.f32 %v1829, %v1886
    %v1895 = vadd.f32 %v1625, %v1889
    %v1896 = vadd.f32 %v1626, %v1890
    %v1897 = vadd.f32 %v1627, %v1891
    %v1898 = vadd.f32 %v1628, %v1892
    %v1899 = vadd.f32 %v1629, %v1893
    %v1900 = vadd.f32 %v1630, %v1894
    %v1901 = vlaneseq
    %v1902 = vshrl.u32 %v1901, 7
    %v1903 = vsub.s32 0, %v1902
    %v1904 = vrot.slane %v27, %v1903
    %v1905 = vadd.f32 %v1895, %v1904
    %v1906 = vadd.f32 %v1896, %v1904
    %v1907 = vadd.f32 %v1897, %v1904
    %v1908 = vadd.f32 %v1898, %v1904
    %v1909 = vadd.f32 %v1899, %v1904
    %v1910 = vadd.f32 %v1900, %v1904
    %v1911 = vmul.f32 %v1905, 0.5
    %v1912 = vmul.f32 %v1906, 0.5
    %v1913 = vmul.f32 %v1907, 0.5
    %v1914 = vmul.f32 %v1908, 0.5
    %v1915 = vmul.f32 %v1909, 0.5
    %v1916 = vmul.f32 %v1910, 0.5
    %v1917 = vmul.f32 %v1905, 0.70710677
    %v1918 = vmul.f32 %v1906, 0.70710677
    %v1919 = vmul.f32 %v1907, 0.70710677
    %v1920 = vmul.f32 %v1908, 0.70710677
    %v1921 = vmul.f32 %v1909, 0.70710677
    %v1922 = vmul.f32 %v1910, 0.70710677
    %vm1923 = vcmp.lt.f32.partialorder %v1917, 0.0
    %vm1924 = vcmp.lt.f32.partialorder %v1918, 0.0
    %vm1925 = vcmp.lt.f32.partialorder %v1919, 0.0
    %vm1926 = vcmp.lt.f32.partialorder %v1920, 0.0
    %vm1927 = vcmp.lt.f32.partialorder %v1921, 0.0
    %vm1928 = vcmp.lt.f32.partialorder %v1922, 0.0
    %v1929 = vsel %vm1923, -1.0, 1.0
    %v1930 = vsel %vm1924, -1.0, 1.0
    %v1931 = vsel %vm1925, -1.0, 1.0
    %v1932 = vsel %vm1926, -1.0, 1.0
    %v1933 = vsel %vm1927, -1.0, 1.0
    %v1934 = vsel %vm1928, -1.0, 1.0
    %v1935 = vand.u32 2147483647, %v1917
    %v1936 = vand.u32 2147483647, %v1918
    %v1937 = vand.u32 2147483647, %v1919
    %v1938 = vand.u32 2147483647, %v1920
    %v1939 = vand.u32 2147483647, %v1921
    %v1940 = vand.u32 2147483647, %v1922
    %v1941 = vmul.f32 %v1935, 0.3275911
    %v1942 = vmul.f32 %v1936, 0.3275911
    %v1943 = vmul.f32 %v1937, 0.3275911
    %v1944 = vmul.f32 %v1938, 0.3275911
    %v1945 = vmul.f32 %v1939, 0.3275911
    %v1946 = vmul.f32 %v1940, 0.3275911
    %v1947 = vadd.f32 %v1941, 1.0
    %v1948 = vadd.f32 %v1942, 1.0
    %v1949 = vadd.f32 %v1943, 1.0
    %v1950 = vadd.f32 %v1944, 1.0
    %v1951 = vadd.f32 %v1945, 1.0
    %v1952 = vadd.f32 %v1946, 1.0
    %v1953 = vrcp.pop %v1947
    %v1954 = vmul.f32 1.0, %v1953
    %v1955 = vrcp.pop %v1948
    %v1956 = vmul.f32 1.0, %v1955
    %v1957 = vrcp.pop %v1949
    %v1958 = vmul.f32 1.0, %v1957
    %v1959 = vrcp.pop %v1950
    %v1960 = vmul.f32 1.0, %v1959
    %v1961 = vrcp.pop %v1951
    %v1962 = vmul.f32 1.0, %v1961
    %v1963 = vrcp.pop %v1952
    %v1964 = vmul.f32 1.0, %v1963
    %v1965 = vmul.f32 %v1954, 1.0614054
    %v1966 = vmul.f32 %v1956, 1.0614054
    %v1967 = vmul.f32 %v1958, 1.0614054
    %v1968 = vmul.f32 %v1960, 1.0614054
    %v1969 = vmul.f32 %v1962, 1.0614054
    %v1970 = vmul.f32 %v1964, 1.0614054
    %v1971 = vadd.f32 %v1965, -1.4531521
    %v1972 = vadd.f32 %v1966, -1.4531521
    %v1973 = vadd.f32 %v1967, -1.4531521
    %v1974 = vadd.f32 %v1968, -1.4531521
    %v1975 = vadd.f32 %v1969, -1.4531521
    %v1976 = vadd.f32 %v1970, -1.4531521
    %v1977 = vmul.f32 %v1971, %v1954
    %v1978 = vmul.f32 %v1972, %v1956
    %v1979 = vmul.f32 %v1973, %v1958
    %v1980 = vmul.f32 %v1974, %v1960
    %v1981 = vmul.f32 %v1975, %v1962
    %v1982 = vmul.f32 %v1976, %v1964
    %v1983 = vadd.f32 %v1977, 1.4214138
    %v1984 = vadd.f32 %v1978, 1.4214138
    %v1985 = vadd.f32 %v1979, 1.4214138
    %v1986 = vadd.f32 %v1980, 1.4214138
    %v1987 = vadd.f32 %v1981, 1.4214138
    %v1988 = vadd.f32 %v1982, 1.4214138
    %v1989 = vmul.f32 %v1983, %v1954
    %v1990 = vmul.f32 %v1984, %v1956
    %v1991 = vmul.f32 %v1985, %v1958
    %v1992 = vmul.f32 %v1986, %v1960
    %v1993 = vmul.f32 %v1987, %v1962
    %v1994 = vmul.f32 %v1988, %v1964
    %v1995 = vadd.f32 %v1989, -0.28449672
    %v1996 = vadd.f32 %v1990, -0.28449672
    %v1997 = vadd.f32 %v1991, -0.28449672
    %v1998 = vadd.f32 %v1992, -0.28449672
    %v1999 = vadd.f32 %v1993, -0.28449672
    %v2000 = vadd.f32 %v1994, -0.28449672
    %v2001 = vmul.f32 %v1995, %v1954
    %v2002 = vmul.f32 %v1996, %v1956
    %v2003 = vmul.f32 %v1997, %v1958
    %v2004 = vmul.f32 %v1998, %v1960
    %v2005 = vmul.f32 %v1999, %v1962
    %v2006 = vmul.f32 %v2000, %v1964
    %v2007 = vadd.f32 %v2001, 0.2548296
    %v2008 = vadd.f32 %v2002, 0.2548296
    %v2009 = vadd.f32 %v2003, 0.2548296
    %v2010 = vadd.f32 %v2004, 0.2548296
    %v2011 = vadd.f32 %v2005, 0.2548296
    %v2012 = vadd.f32 %v2006, 0.2548296
    %v2013 = vmul.f32 %v2007, %v1954
    %v2014 = vmul.f32 %v2008, %v1956
    %v2015 = vmul.f32 %v2009, %v1958
    %v2016 = vmul.f32 %v2010, %v1960
    %v2017 = vmul.f32 %v2011, %v1962
    %v2018 = vmul.f32 %v2012, %v1964
    %v2019 = vsub.f32 0.0, %v1935
    %v2020 = vsub.f32 0.0, %v1936
    %v2021 = vsub.f32 0.0, %v1937
    %v2022 = vsub.f32 0.0, %v1938
    %v2023 = vsub.f32 0.0, %v1939
    %v2024 = vsub.f32 0.0, %v1940
    %v2025 = vmul.f32 %v2019, %v1935
    %v2026 = vmul.f32 %v2020, %v1936
    %v2027 = vmul.f32 %v2021, %v1937
    %v2028 = vmul.f32 %v2022, %v1938
    %v2029 = vmul.f32 %v2023, %v1939
    %v2030 = vmul.f32 %v2024, %v1940
    %v2031 = vmul.f32 %v2025, 1.442695
    %v2032 = vpow.pop %v2031
    %v2033 = vmul.f32 %v2026, 1.442695
    %v2034 = vpow.pop %v2033
    %v2035 = vmul.f32 %v2027, 1.442695
    %v2036 = vpow.pop %v2035
    %v2037 = vmul.f32 %v2028, 1.442695
    %v2038 = vpow.pop %v2037
    %v2039 = vmul.f32 %v2029, 1.442695
    %v2040 = vpow.pop %v2039
    %v2041 = vmul.f32 %v2030, 1.442695
    %v2042 = vpow.pop %v2041
    %v2043 = vmul.f32 %v2013, %v2032
    %v2044 = vmul.f32 %v2014, %v2034
    %v2045 = vmul.f32 %v2015, %v2036
    %v2046 = vmul.f32 %v2016, %v2038
    %v2047 = vmul.f32 %v2017, %v2040
    %v2048 = vmul.f32 %v2018, %v2042
    %v2049 = vsub.f32 1.0, %v2043
    %v2050 = vsub.f32 1.0, %v2044
    %v2051 = vsub.f32 1.0, %v2045
    %v2052 = vsub.f32 1.0, %v2046
    %v2053 = vsub.f32 1.0, %v2047
    %v2054 = vsub.f32 1.0, %v2048
    %v2055 = vmul.f32 %v1929, %v2049
    %v2056 = vmul.f32 %v1930, %v2050
    %v2057 = vmul.f32 %v1931, %v2051
    %v2058 = vmul.f32 %v1932, %v2052
    %v2059 = vmul.f32 %v1933, %v2053
    %v2060 = vmul.f32 %v1934, %v2054
    %v2061 = vadd.f32 %v2055, 1.0
    %v2062 = vadd.f32 %v2056, 1.0
    %v2063 = vadd.f32 %v2057, 1.0
    %v2064 = vadd.f32 %v2058, 1.0
    %v2065 = vadd.f32 %v2059, 1.0
    %v2066 = vadd.f32 %v2060, 1.0
    %v2067 = vmul.f32 %v1911, %v2061
    %v2068 = vmul.f32 %v1912, %v2062
    %v2069 = vmul.f32 %v1913, %v2063
    %v2070 = vmul.f32 %v1914, %v2064
    %v2071 = vmul.f32 %v1915, %v2065
    %v2072 = vmul.f32 %v1916, %v2066
    %v2073 = vpack.c.bf16 %v2068, %v2067
    %v2074 = vpack.c.bf16 %v2069, %v2069
    %v2075 = vpack.c.bf16 %v2071, %v2070
    %v2076 = vpack.c.bf16 %v2072, %v2072
    %v2077 = vunpack.c.l.bf16 %v2073
    %v2078 = vunpack.c.h.bf16 %v2073
    %v2079 = vunpack.c.l.bf16 %v2074
    %v2080 = vunpack.c.l.bf16 %v2075
    %v2081 = vunpack.c.h.bf16 %v2075
    %v2082 = vunpack.c.l.bf16 %v2076
    %v2083 = vsub.f32 %v2067, %v2077
    %v2084 = vsub.f32 %v2068, %v2078
    %v2085 = vsub.f32 %v2069, %v2079
    %v2086 = vsub.f32 %v2070, %v2080
    %v2087 = vsub.f32 %v2071, %v2081
    %v2088 = vsub.f32 %v2072, %v2082
    %v2089 = vpack.c.bf16 %v2084, %v2083
    %v2090 = vpack.c.bf16 %v2085, %v2085
    %v2091 = vpack.c.bf16 %v2087, %v2086
    %v2092 = vpack.c.bf16 %v2088, %v2088
    %v2093 = vld [vmem:[#allocation2 + $0x48] sm:$0xff]
    %v2094 = vld [vmem:[#allocation2 + $0x50] sm:$0xff]
    %v2095 = vld [vmem:[#allocation2 + $0x58] sm:$0xff]
    %v2096 = vld [vmem:[#allocation2 + $0x60] sm:$0xff]
    %v2097 = vpack.c.bf16 %v2094, %v2093
    %v2098 = vpack.c.bf16 %v2096, %v2095
    %v2099 = vunpack.c.l.bf16 %v2097
    %v2100 = vunpack.c.h.bf16 %v2097
    %v2101 = vunpack.c.l.bf16 %v2098
    %v2102 = vunpack.c.h.bf16 %v2098
    %v2103 = vsub.f32 %v2093, %v2099
    %v2104 = vsub.f32 %v2094, %v2100
    %v2105 = vsub.f32 %v2095, %v2101
    %v2106 = vsub.f32 %v2096, %v2102
    %v2107 = vpack.c.bf16 %v2104, %v2103
    %v2108 = vpack.c.bf16 %v2106, %v2105
    %vm2109 = vcmask 261120
    %v2111 = vsel %vm2109, %v2089, 0
    %v2114 = vsel %vm2109, %v2091, 0
    %2116 = vmatprep.subr.bf16.mxu0 0
    %2117 = vmatpush1.bf16.msra.mxu0 %v2097
    %2118 = vmatprep.subr.bf16.mxu0 0
    %2119 = vmatpush1.bf16.msra.mxu0 %v2098
    %2120 = vmatprep.subr.bf16.mxu0 0
    %2121 = vmatpush1.bf16.msra.mxu0 0
    %2122 = vmatprep.subr.bf16.mxu0 0
    %2123 = vmatpush1.bf16.msra.mxu0 0
    %2124 = vmatprep.subr.bf16.mxu0 0
    %2125 = vmatpush1.bf16.msra.mxu0 0
    %2126 = vmatprep.subr.bf16.mxu0 0
    %2127 = vmatpush1.bf16.msra.mxu0 0
    %2128 = vmatprep.subr.bf16.mxu0 0
    %2129 = vmatpush1.bf16.msra.mxu0 0
    %2130 = vmatprep.subr.bf16.mxu0 0
    %2131 = vmatpush1.bf16.msra.mxu0 0
    %2132 = vmatprep.subr.bf16.mxu0 0
    %2133 = vmatpush1.bf16.msra.mxu0 0
    %2134 = vmatprep.subr.bf16.mxu0 0
    %2135 = vmatpush1.bf16.msra.mxu0 0
    %2136 = vmatprep.subr.bf16.mxu0 0
    %2137 = vmatpush1.bf16.msra.mxu0 0
    %2138 = vmatprep.subr.bf16.mxu0 0
    %2139 = vmatpush1.bf16.msra.mxu0 0
    %2140 = vmatprep.subr.bf16.mxu0 0
    %2141 = vmatpush1.bf16.msra.mxu0 0
    %2142 = vmatprep.subr.bf16.mxu0 0
    %2143 = vmatpush1.bf16.msra.mxu0 0
    %2144 = vmatprep.subr.bf16.mxu0 0
    %2145 = vmatpush1.bf16.msra.mxu0 0
    %2146 = vmatprep.subr.bf16.mxu0 0
    %2147 = vmatpush1.bf16.msra.mxu0 0
    %2148 = vmatprep.mubr.bf16.mxu0 0
    %2149 = vmatmul.mubr.bf16.gmra.mrb[0].mxu0 %v2111
    %v2150 = vpop.f32.mrb[0].mxu0
    %v2151 = vadd.f32 0.0, %v2150
    %v2152 = vpop.f32.mrb[0].mxu0
    %v2153 = vpop.f32.mrb[0].mxu0
    %v2154 = vadd.f32 0.0, %v2153
    %v2155 = vpop.f32.mrb[0].mxu0
    %2156 = vmatprep.mubr.bf16.mxu0 0
    %2157 = vmatmul.mubr.bf16.gmra.mrb[0].mxu0 %v2114
    %v2158 = vpop.f32.mrb[0].mxu0
    %v2159 = vadd.f32 0.0, %v2158
    %v2160 = vpop.f32.mrb[0].mxu0
    %v2161 = vpop.f32.mrb[0].mxu0
    %v2162 = vadd.f32 0.0, %v2161
    %v2163 = vpop.f32.mrb[0].mxu0
    %2164 = vdwg.mxu0
    %v2166 = vsel %vm2109, %v2073, 0
    %v2169 = vsel %vm2109, %v2075, 0
    %2171 = vmatprep.subr.bf16.mxu0 0
    %2172 = vmatpush1.bf16.msra.mxu0 %v2097
    %2173 = vmatprep.subr.bf16.mxu0 0
    %2174 = vmatpush1.bf16.msra.mxu0 %v2098
    %2175 = vmatprep.subr.bf16.mxu0 0
    %2176 = vmatpush1.bf16.msra.mxu0 0
    %2177 = vmatprep.subr.bf16.mxu0 0
    %2178 = vmatpush1.bf16.msra.mxu0 0
    %2179 = vmatprep.subr.bf16.mxu0 0
    %2180 = vmatpush1.bf16.msra.mxu0 0
    %2181 = vmatprep.subr.bf16.mxu0 0
    %2182 = vmatpush1.bf16.msra.mxu0 0
    %2183 = vmatprep.subr.bf16.mxu0 0
    %2184 = vmatpush1.bf16.msra.mxu0 0
    %2185 = vmatprep.subr.bf16.mxu0 0
    %2186 = vmatpush1.bf16.msra.mxu0 0
    %2187 = vmatprep.subr.bf16.mxu0 0
    %2188 = vmatpush1.bf16.msra.mxu0 0
    %2189 = vmatprep.subr.bf16.mxu0 0
    %2190 = vmatpush1.bf16.msra.mxu0 0
    %2191 = vmatprep.subr.bf16.mxu0 0
    %2192 = vmatpush1.bf16.msra.mxu0 0
    %2193 = vmatprep.subr.bf16.mxu0 0
    %2194 = vmatpush1.bf16.msra.mxu0 0
    %2195 = vmatprep.subr.bf16.mxu0 0
    %2196 = vmatpush1.bf16.msra.mxu0 0
    %2197 = vmatprep.subr.bf16.mxu0 0
    %2198 = vmatpush1.bf16.msra.mxu0 0
    %2199 = vmatprep.subr.bf16.mxu0 0
    %2200 = vmatpush1.bf16.msra.mxu0 0
    %2201 = vmatprep.subr.bf16.mxu0 0
    %2202 = vmatpush1.bf16.msra.mxu0 0
    %2203 = vmatprep.mubr.bf16.mxu0 0
    %2204 = vmatmul.mubr.bf16.gmra.mrb[0].mxu0 %v2166
    %v2205 = vpop.f32.mrb[0].mxu0
    %v2206 = vadd.f32 %v2151, %v2205
    %v2207 = vpop.f32.mrb[0].mxu0
    %v2208 = vpop.f32.mrb[0].mxu0
    %v2209 = vadd.f32 %v2154, %v2208
    %v2210 = vpop.f32.mrb[0].mxu0
    %2211 = vmatprep.mubr.bf16.mxu0 0
    %2212 = vmatmul.mubr.bf16.gmra.mrb[0].mxu0 %v2169
    %v2213 = vpop.f32.mrb[0].mxu0
    %v2214 = vadd.f32 %v2159, %v2213
    %v2215 = vpop.f32.mrb[0].mxu0
    %v2216 = vpop.f32.mrb[0].mxu0
    %v2217 = vadd.f32 %v2162, %v2216
    %v2218 = vpop.f32.mrb[0].mxu0
    %2219 = vdwg.mxu0
    %2220 = vmatprep.subr.bf16.mxu0 0
    %2221 = vmatpush1.bf16.msra.mxu0 %v2107
    %2222 = vmatprep.subr.bf16.mxu0 0
    %2223 = vmatpush1.bf16.msra.mxu0 %v2108
    %2224 = vmatprep.subr.bf16.mxu0 0
    %2225 = vmatpush1.bf16.msra.mxu0 0
    %2226 = vmatprep.subr.bf16.mxu0 0
    %2227 = vmatpush1.bf16.msra.mxu0 0
    %2228 = vmatprep.subr.bf16.mxu0 0
    %2229 = vmatpush1.bf16.msra.mxu0 0
    %2230 = vmatprep.subr.bf16.mxu0 0
    %2231 = vmatpush1.bf16.msra.mxu0 0
    %2232 = vmatprep.subr.bf16.mxu0 0
    %2233 = vmatpush1.bf16.msra.mxu0 0
    %2234 = vmatprep.subr.bf16.mxu0 0
    %2235 = vmatpush1.bf16.msra.mxu0 0
    %2236 = vmatprep.subr.bf16.mxu0 0
    %2237 = vmatpush1.bf16.msra.mxu0 0
    %2238 = vmatprep.subr.bf16.mxu0 0
    %2239 = vmatpush1.bf16.msra.mxu0 0
    %2240 = vmatprep.subr.bf16.mxu0 0
    %2241 = vmatpush1.bf16.msra.mxu0 0
    %2242 = vmatprep.subr.bf16.mxu0 0
    %2243 = vmatpush1.bf16.msra.mxu0 0
    %2244 = vmatprep.subr.bf16.mxu0 0
    %2245 = vmatpush1.bf16.msra.mxu0 0
    %2246 = vmatprep.subr.bf16.mxu0 0
    %2247 = vmatpush1.bf16.msra.mxu0 0
    %2248 = vmatprep.subr.bf16.mxu0 0
    %2249 = vmatpush1.bf16.msra.mxu0 0
    %2250 = vmatprep.subr.bf16.mxu0 0
    %2251 = vmatpush1.bf16.msra.mxu0 0
    %2252 = vmatprep.mubr.bf16.mxu0 0
    %2253 = vmatmul.mubr.bf16.gmra.mrb[0].mxu0 %v2166
    %v2254 = vpop.f32.mrb[0].mxu0
    %v2255 = vadd.f32 0.0, %v2254
    %v2256 = vpop.f32.mrb[0].mxu0
    %v2257 = vpop.f32.mrb[0].mxu0
    %v2258 = vadd.f32 0.0, %v2257
    %v2259 = vpop.f32.mrb[0].mxu0
    %2260 = vmatprep.mubr.bf16.mxu0 0
    %2261 = vmatmul.mubr.bf16.gmra.mrb[0].mxu0 %v2169
    %v2262 = vpop.f32.mrb[0].mxu0
    %v2263 = vadd.f32 0.0, %v2262
    %v2264 = vpop.f32.mrb[0].mxu0
    %v2265 = vpop.f32.mrb[0].mxu0
    %v2266 = vadd.f32 0.0, %v2265
    %v2267 = vpop.f32.mrb[0].mxu0
    %2268 = vdwg.mxu0
    %v2269 = vadd.f32 %v2206, %v2255
    %v2270 = vadd.f32 %v2209, %v2258
    %v2271 = vadd.f32 %v2214, %v2263
    %v2272 = vadd.f32 %v2217, %v2266
    %v2273 = vld [vmem:[#allocation2 + $0x68] sm:$0xff]
    %v2274 = vld [vmem:[#allocation2 + $0x70] sm:$0xff]
    %v2275 = vld [vmem:[#allocation2 + $0x78] sm:$0xff]
    %v2276 = vld [vmem:[#allocation2 + $0x80] sm:$0xff]
    %v2277 = vpack.c.bf16 %v2274, %v2273
    %v2278 = vpack.c.bf16 %v2276, %v2275
    %v2279 = vunpack.c.l.bf16 %v2277
    %v2280 = vunpack.c.h.bf16 %v2277
    %v2281 = vunpack.c.l.bf16 %v2278
    %v2282 = vunpack.c.h.bf16 %v2278
    %v2283 = vsub.f32 %v2273, %v2279
    %v2284 = vsub.f32 %v2274, %v2280
    %v2285 = vsub.f32 %v2275, %v2281
    %v2286 = vsub.f32 %v2276, %v2282
    %v2287 = vpack.c.bf16 %v2284, %v2283
    %v2288 = vpack.c.bf16 %v2286, %v2285
    %vm2293 = vcmask 1045504
    %v2294 = vrot.slane %v2089, 2
    %v2295 = vrot.slane %v2090, 2
    %v2296 = vsel %vm2293, %v2294, %v2295
    %v2297 = vrot.slane %v2091, 2
    %v2298 = vrot.slane %v2092, 2
    %v2299 = vsel %vm2293, %v2297, %v2298
    %v2301 = vsel %vm2109, %v2296, 0
    %v2304 = vsel %vm2109, %v2299, 0
    %2306 = vmatprep.subr.bf16.mxu0 0
    %2307 = vmatpush1.bf16.msra.mxu0 %v2277
    %2308 = vmatprep.subr.bf16.mxu0 0
    %2309 = vmatpush1.bf16.msra.mxu0 %v2278
    %2310 = vmatprep.subr.bf16.mxu0 0
    %2311 = vmatpush1.bf16.msra.mxu0 0
    %2312 = vmatprep.subr.bf16.mxu0 0
    %2313 = vmatpush1.bf16.msra.mxu0 0
    %2314 = vmatprep.subr.bf16.mxu0 0
    %2315 = vmatpush1.bf16.msra.mxu0 0
    %2316 = vmatprep.subr.bf16.mxu0 0
    %2317 = vmatpush1.bf16.msra.mxu0 0
    %2318 = vmatprep.subr.bf16.mxu0 0
    %2319 = vmatpush1.bf16.msra.mxu0 0
    %2320 = vmatprep.subr.bf16.mxu0 0
    %2321 = vmatpush1.bf16.msra.mxu0 0
    %2322 = vmatprep.subr.bf16.mxu0 0
    %2323 = vmatpush1.bf16.msra.mxu0 0
    %2324 = vmatprep.subr.bf16.mxu0 0
    %2325 = vmatpush1.bf16.msra.mxu0 0
    %2326 = vmatprep.subr.bf16.mxu0 0
    %2327 = vmatpush1.bf16.msra.mxu0 0
    %2328 = vmatprep.subr.bf16.mxu0 0
    %2329 = vmatpush1.bf16.msra.mxu0 0
    %2330 = vmatprep.subr.bf16.mxu0 0
    %2331 = vmatpush1.bf16.msra.mxu0 0
    %2332 = vmatprep.subr.bf16.mxu0 0
    %2333 = vmatpush1.bf16.msra.mxu0 0
    %2334 = vmatprep.subr.bf16.mxu0 0
    %2335 = vmatpush1.bf16.msra.mxu0 0
    %2336 = vmatprep.subr.bf16.mxu0 0
    %2337 = vmatpush1.bf16.msra.mxu0 0
    %2338 = vmatprep.mubr.bf16.mxu0 0
    %2339 = vmatmul.mubr.bf16.gmra.mrb[0].mxu0 %v2301
    %v2340 = vpop.f32.mrb[0].mxu0
    %v2341 = vadd.f32 0.0, %v2340
    %v2342 = vpop.f32.mrb[0].mxu0
    %v2343 = vpop.f32.mrb[0].mxu0
    %v2344 = vadd.f32 0.0, %v2343
    %v2345 = vpop.f32.mrb[0].mxu0
    %2346 = vmatprep.mubr.bf16.mxu0 0
    %2347 = vmatmul.mubr.bf16.gmra.mrb[0].mxu0 %v2304
    %v2348 = vpop.f32.mrb[0].mxu0
    %v2349 = vadd.f32 0.0, %v2348
    %v2350 = vpop.f32.mrb[0].mxu0
    %v2351 = vpop.f32.mrb[0].mxu0
    %v2352 = vadd.f32 0.0, %v2351
    %v2353 = vpop.f32.mrb[0].mxu0
    %2354 = vdwg.mxu0
    %v2359 = vrot.slane %v2073, 2
    %v2360 = vrot.slane %v2074, 2
    %v2361 = vsel %vm2293, %v2359, %v2360
    %v2362 = vrot.slane %v2075, 2
    %v2363 = vrot.slane %v2076, 2
    %v2364 = vsel %vm2293, %v2362, %v2363
    %v2366 = vsel %vm2109, %v2361, 0
    %v2369 = vsel %vm2109, %v2364, 0
    %2371 = vmatprep.subr.bf16.mxu0 0
    %2372 = vmatpush1.bf16.msra.mxu0 %v2277
    %2373 = vmatprep.subr.bf16.mxu0 0
    %2374 = vmatpush1.bf16.msra.mxu0 %v2278
    %2375 = vmatprep.subr.bf16.mxu0 0
    %2376 = vmatpush1.bf16.msra.mxu0 0
    %2377 = vmatprep.subr.bf16.mxu0 0
    %2378 = vmatpush1.bf16.msra.mxu0 0
    %2379 = vmatprep.subr.bf16.mxu0 0
    %2380 = vmatpush1.bf16.msra.mxu0 0
    %2381 = vmatprep.subr.bf16.mxu0 0
    %2382 = vmatpush1.bf16.msra.mxu0 0
    %2383 = vmatprep.subr.bf16.mxu0 0
    %2384 = vmatpush1.bf16.msra.mxu0 0
    %2385 = vmatprep.subr.bf16.mxu0 0
    %2386 = vmatpush1.bf16.msra.mxu0 0
    %2387 = vmatprep.subr.bf16.mxu0 0
    %2388 = vmatpush1.bf16.msra.mxu0 0
    %2389 = vmatprep.subr.bf16.mxu0 0
    %2390 = vmatpush1.bf16.msra.mxu0 0
    %2391 = vmatprep.subr.bf16.mxu0 0
    %2392 = vmatpush1.bf16.msra.mxu0 0
    %2393 = vmatprep.subr.bf16.mxu0 0
    %2394 = vmatpush1.bf16.msra.mxu0 0
    %2395 = vmatprep.subr.bf16.mxu0 0
    %2396 = vmatpush1.bf16.msra.mxu0 0
    %2397 = vmatprep.subr.bf16.mxu0 0
    %2398 = vmatpush1.bf16.msra.mxu0 0
    %2399 = vmatprep.subr.bf16.mxu0 0
    %2400 = vmatpush1.bf16.msra.mxu0 0
    %2401 = vmatprep.subr.bf16.mxu0 0
    %2402 = vmatpush1.bf16.msra.mxu0 0
    %2403 = vmatprep.mubr.bf16.mxu0 0
    %2404 = vmatmul.mubr.bf16.gmra.mrb[0].mxu0 %v2366
    %v2405 = vpop.f32.mrb[0].mxu0
    %v2406 = vadd.f32 %v2341, %v2405
    %v2407 = vpop.f32.mrb[0].mxu0
    %v2408 = vpop.f32.mrb[0].mxu0
    %v2409 = vadd.f32 %v2344, %v2408
    %v2410 = vpop.f32.mrb[0].mxu0
    %2411 = vmatprep.mubr.bf16.mxu0 0
    %2412 = vmatmul.mubr.bf16.gmra.mrb[0].mxu0 %v2369
    %v2413 = vpop.f32.mrb[0].mxu0
    %v2414 = vadd.f32 %v2349, %v2413
    %v2415 = vpop.f32.mrb[0].mxu0
    %v2416 = vpop.f32.mrb[0].mxu0
    %v2417 = vadd.f32 %v2352, %v2416
    %v2418 = vpop.f32.mrb[0].mxu0
    %2419 = vdwg.mxu0
    %2420 = vmatprep.subr.bf16.mxu0 0
    %2421 = vmatpush1.bf16.msra.mxu0 %v2287
    %2422 = vmatprep.subr.bf16.mxu0 0
    %2423 = vmatpush1.bf16.msra.mxu0 %v2288
    %2424 = vmatprep.subr.bf16.mxu0 0
    %2425 = vmatpush1.bf16.msra.mxu0 0
    %2426 = vmatprep.subr.bf16.mxu0 0
    %2427 = vmatpush1.bf16.msra.mxu0 0
    %2428 = vmatprep.subr.bf16.mxu0 0
    %2429 = vmatpush1.bf16.msra.mxu0 0
    %2430 = vmatprep.subr.bf16.mxu0 0
    %2431 = vmatpush1.bf16.msra.mxu0 0
    %2432 = vmatprep.subr.bf16.mxu0 0
    %2433 = vmatpush1.bf16.msra.mxu0 0
    %2434 = vmatprep.subr.bf16.mxu0 0
    %2435 = vmatpush1.bf16.msra.mxu0 0
    %2436 = vmatprep.subr.bf16.mxu0 0
    %2437 = vmatpush1.bf16.msra.mxu0 0
    %2438 = vmatprep.subr.bf16.mxu0 0
    %2439 = vmatpush1.bf16.msra.mxu0 0
    %2440 = vmatprep.subr.bf16.mxu0 0
    %2441 = vmatpush1.bf16.msra.mxu0 0
    %2442 = vmatprep.subr.bf16.mxu0 0
    %2443 = vmatpush1.bf16.msra.mxu0 0
    %2444 = vmatprep.subr.bf16.mxu0 0
    %2445 = vmatpush1.bf16.msra.mxu0 0
    %2446 = vmatprep.subr.bf16.mxu0 0
    %2447 = vmatpush1.bf16.msra.mxu0 0
    %2448 = vmatprep.subr.bf16.mxu0 0
    %2449 = vmatpush1.bf16.msra.mxu0 0
    %2450 = vmatprep.subr.bf16.mxu0 0
    %2451 = vmatpush1.bf16.msra.mxu0 0
    %2452 = vmatprep.mubr.bf16.mxu0 0
    %2453 = vmatmul.mubr.bf16.gmra.mrb[0].mxu0 %v2366
    %v2454 = vpop.f32.mrb[0].mxu0
    %v2455 = vadd.f32 0.0, %v2454
    %v2456 = vpop.f32.mrb[0].mxu0
    %v2457 = vpop.f32.mrb[0].mxu0
    %v2458 = vadd.f32 0.0, %v2457
    %v2459 = vpop.f32.mrb[0].mxu0
    %2460 = vmatprep.mubr.bf16.mxu0 0
    %2461 = vmatmul.mubr.bf16.gmra.mrb[0].mxu0 %v2369
    %v2462 = vpop.f32.mrb[0].mxu0
    %v2463 = vadd.f32 0.0, %v2462
    %v2464 = vpop.f32.mrb[0].mxu0
    %v2465 = vpop.f32.mrb[0].mxu0
    %v2466 = vadd.f32 0.0, %v2465
    %v2467 = vpop.f32.mrb[0].mxu0
    %2468 = vdwg.mxu0
    %v2469 = vadd.f32 %v2406, %v2455
    %v2470 = vadd.f32 %v2409, %v2458
    %v2471 = vadd.f32 %v2414, %v2463
    %v2472 = vadd.f32 %v2417, %v2466
    %v2473 = vadd.f32 %v2269, %v2469
    %v2474 = vadd.f32 %v2270, %v2470
    %v2475 = vadd.f32 %v2271, %v2471
    %v2476 = vadd.f32 %v2272, %v2472
    %v2477 = vld [vmem:[#allocation2 + $0x88] sm:$0xff]
    %v2478 = vld [vmem:[#allocation2 + $0x90] sm:$0xff]
    %v2479 = vld [vmem:[#allocation2 + $0x98] sm:$0xff]
    %v2480 = vld [vmem:[#allocation2 + $0xa0] sm:$0xff]
    %v2481 = vpack.c.bf16 %v2478, %v2477
    %v2482 = vpack.c.bf16 %v2480, %v2479
    %v2483 = vunpack.c.l.bf16 %v2481
    %v2484 = vunpack.c.h.bf16 %v2481
    %v2485 = vunpack.c.l.bf16 %v2482
    %v2486 = vunpack.c.h.bf16 %v2482
    %v2487 = vsub.f32 %v2477, %v2483
    %v2488 = vsub.f32 %v2478, %v2484
    %v2489 = vsub.f32 %v2479, %v2485
    %v2490 = vsub.f32 %v2480, %v2486
    %v2491 = vpack.c.bf16 %v2488, %v2487
    %v2492 = vpack.c.bf16 %v2490, %v2489
    %vm2493 = vcmask 1043456
    %v2494 = vrot.slane %v2089, 4
    %v2495 = vrot.slane %v2090, 4
    %v2496 = vsel %vm2493, %v2494, %v2495
    %v2497 = vrot.slane %v2091, 4
    %v2498 = vrot.slane %v2092, 4
    %v2499 = vsel %vm2493, %v2497, %v2498
    %v2501 = vsel %vm2109, %v2496, 0
    %v2504 = vsel %vm2109, %v2499, 0
    %2506 = vmatprep.subr.bf16.mxu0 0
    %2507 = vmatpush1.bf16.msra.mxu0 %v2481
    %2508 = vmatprep.subr.bf16.mxu0 0
    %2509 = vmatpush1.bf16.msra.mxu0 %v2482
    %2510 = vmatprep.subr.bf16.mxu0 0
    %2511 = vmatpush1.bf16.msra.mxu0 0
    %2512 = vmatprep.subr.bf16.mxu0 0
    %2513 = vmatpush1.bf16.msra.mxu0 0
    %2514 = vmatprep.subr.bf16.mxu0 0
    %2515 = vmatpush1.bf16.msra.mxu0 0
    %2516 = vmatprep.subr.bf16.mxu0 0
    %2517 = vmatpush1.bf16.msra.mxu0 0
    %2518 = vmatprep.subr.bf16.mxu0 0
    %2519 = vmatpush1.bf16.msra.mxu0 0
    %2520 = vmatprep.subr.bf16.mxu0 0
    %2521 = vmatpush1.bf16.msra.mxu0 0
    %2522 = vmatprep.subr.bf16.mxu0 0
    %2523 = vmatpush1.bf16.msra.mxu0 0
    %2524 = vmatprep.subr.bf16.mxu0 0
    %2525 = vmatpush1.bf16.msra.mxu0 0
    %2526 = vmatprep.subr.bf16.mxu0 0
    %2527 = vmatpush1.bf16.msra.mxu0 0
    %2528 = vmatprep.subr.bf16.mxu0 0
    %2529 = vmatpush1.bf16.msra.mxu0 0
    %2530 = vmatprep.subr.bf16.mxu0 0
    %2531 = vmatpush1.bf16.msra.mxu0 0
    %2532 = vmatprep.subr.bf16.mxu0 0
    %2533 = vmatpush1.bf16.msra.mxu0 0
    %2534 = vmatprep.subr.bf16.mxu0 0
    %2535 = vmatpush1.bf16.msra.mxu0 0
    %2536 = vmatprep.subr.bf16.mxu0 0
    %2537 = vmatpush1.bf16.msra.mxu0 0
    %2538 = vmatprep.mubr.bf16.mxu0 0
    %2539 = vmatmul.mubr.bf16.gmra.mrb[0].mxu0 %v2501
    %v2540 = vpop.f32.mrb[0].mxu0
    %v2541 = vadd.f32 0.0, %v2540
    %v2542 = vpop.f32.mrb[0].mxu0
    %v2543 = vpop.f32.mrb[0].mxu0
    %v2544 = vadd.f32 0.0, %v2543
    %v2545 = vpop.f32.mrb[0].mxu0
    %2546 = vmatprep.mubr.bf16.mxu0 0
    %2547 = vmatmul.mubr.bf16.gmra.mrb[0].mxu0 %v2504
    %v2548 = vpop.f32.mrb[0].mxu0
    %v2549 = vadd.f32 0.0, %v2548
    %v2550 = vpop.f32.mrb[0].mxu0
    %v2551 = vpop.f32.mrb[0].mxu0
    %v2552 = vadd.f32 0.0, %v2551
    %v2553 = vpop.f32.mrb[0].mxu0
    %2554 = vdwg.mxu0
    %v2555 = vrot.slane %v2073, 4
    %v2556 = vrot.slane %v2074, 4
    %v2557 = vsel %vm2493, %v2555, %v2556
    %v2558 = vrot.slane %v2075, 4
    %v2559 = vrot.slane %v2076, 4
    %v2560 = vsel %vm2493, %v2558, %v2559
    %v2562 = vsel %vm2109, %v2557, 0
    %v2565 = vsel %vm2109, %v2560, 0
    %2567 = vmatprep.subr.bf16.mxu0 0
    %2568 = vmatpush1.bf16.msra.mxu0 %v2481
    %2569 = vmatprep.subr.bf16.mxu0 0
    %2570 = vmatpush1.bf16.msra.mxu0 %v2482
    %2571 = vmatprep.subr.bf16.mxu0 0
    %2572 = vmatpush1.bf16.msra.mxu0 0
    %2573 = vmatprep.subr.bf16.mxu0 0
    %2574 = vmatpush1.bf16.msra.mxu0 0
    %2575 = vmatprep.subr.bf16.mxu0 0
    %2576 = vmatpush1.bf16.msra.mxu0 0
    %2577 = vmatprep.subr.bf16.mxu0 0
    %2578 = vmatpush1.bf16.msra.mxu0 0
    %2579 = vmatprep.subr.bf16.mxu0 0
    %2580 = vmatpush1.bf16.msra.mxu0 0
    %2581 = vmatprep.subr.bf16.mxu0 0
    %2582 = vmatpush1.bf16.msra.mxu0 0
    %2583 = vmatprep.subr.bf16.mxu0 0
    %2584 = vmatpush1.bf16.msra.mxu0 0
    %2585 = vmatprep.subr.bf16.mxu0 0
    %2586 = vmatpush1.bf16.msra.mxu0 0
    %2587 = vmatprep.subr.bf16.mxu0 0
    %2588 = vmatpush1.bf16.msra.mxu0 0
    %2589 = vmatprep.subr.bf16.mxu0 0
    %2590 = vmatpush1.bf16.msra.mxu0 0
    %2591 = vmatprep.subr.bf16.mxu0 0
    %2592 = vmatpush1.bf16.msra.mxu0 0
    %2593 = vmatprep.subr.bf16.mxu0 0
    %2594 = vmatpush1.bf16.msra.mxu0 0
    %2595 = vmatprep.subr.bf16.mxu0 0
    %2596 = vmatpush1.bf16.msra.mxu0 0
    %2597 = vmatprep.subr.bf16.mxu0 0
    %2598 = vmatpush1.bf16.msra.mxu0 0
    %2599 = vmatprep.mubr.bf16.mxu0 0
    %2600 = vmatmul.mubr.bf16.gmra.mrb[0].mxu0 %v2562
    %v2601 = vpop.f32.mrb[0].mxu0
    %v2602 = vadd.f32 %v2541, %v2601
    %v2603 = vpop.f32.mrb[0].mxu0
    %v2604 = vpop.f32.mrb[0].mxu0
    %v2605 = vadd.f32 %v2544, %v2604
    %v2606 = vpop.f32.mrb[0].mxu0
    %2607 = vmatprep.mubr.bf16.mxu0 0
    %2608 = vmatmul.mubr.bf16.gmra.mrb[0].mxu0 %v2565
    %v2609 = vpop.f32.mrb[0].mxu0
    %v2610 = vadd.f32 %v2549, %v2609
    %v2611 = vpop.f32.mrb[0].mxu0
    %v2612 = vpop.f32.mrb[0].mxu0
    %v2613 = vadd.f32 %v2552, %v2612
    %v2614 = vpop.f32.mrb[0].mxu0
    %2615 = vdwg.mxu0
    %2616 = vmatprep.subr.bf16.mxu0 0
    %2617 = vmatpush1.bf16.msra.mxu0 %v2491
    %2618 = vmatprep.subr.bf16.mxu0 0
    %2619 = vmatpush1.bf16.msra.mxu0 %v2492
    %2620 = vmatprep.subr.bf16.mxu0 0
    %2621 = vmatpush1.bf16.msra.mxu0 0
    %2622 = vmatprep.subr.bf16.mxu0 0
    %2623 = vmatpush1.bf16.msra.mxu0 0
    %2624 = vmatprep.subr.bf16.mxu0 0
    %2625 = vmatpush1.bf16.msra.mxu0 0
    %2626 = vmatprep.subr.bf16.mxu0 0
    %2627 = vmatpush1.bf16.msra.mxu0 0
    %2628 = vmatprep.subr.bf16.mxu0 0
    %2629 = vmatpush1.bf16.msra.mxu0 0
    %2630 = vmatprep.subr.bf16.mxu0 0
    %2631 = vmatpush1.bf16.msra.mxu0 0
    %2632 = vmatprep.subr.bf16.mxu0 0
    %2633 = vmatpush1.bf16.msra.mxu0 0
    %2634 = vmatprep.subr.bf16.mxu0 0
    %2635 = vmatpush1.bf16.msra.mxu0 0
    %2636 = vmatprep.subr.bf16.mxu0 0
    %2637 = vmatpush1.bf16.msra.mxu0 0
    %2638 = vmatprep.subr.bf16.mxu0 0
    %2639 = vmatpush1.bf16.msra.mxu0 0
    %2640 = vmatprep.subr.bf16.mxu0 0
    %2641 = vmatpush1.bf16.msra.mxu0 0
    %2642 = vmatprep.subr.bf16.mxu0 0
    %2643 = vmatpush1.bf16.msra.mxu0 0
    %2644 = vmatprep.subr.bf16.mxu0 0
    %2645 = vmatpush1.bf16.msra.mxu0 0
    %2646 = vmatprep.subr.bf16.mxu0 0
    %2647 = vmatpush1.bf16.msra.mxu0 0
    %2648 = vmatprep.mubr.bf16.mxu0 0
    %2649 = vmatmul.mubr.bf16.gmra.mrb[0].mxu0 %v2562
    %v2650 = vpop.f32.mrb[0].mxu0
    %v2651 = vadd.f32 0.0, %v2650
    %v2652 = vpop.f32.mrb[0].mxu0
    %v2653 = vpop.f32.mrb[0].mxu0
    %v2654 = vadd.f32 0.0, %v2653
    %v2655 = vpop.f32.mrb[0].mxu0
    %2656 = vmatprep.mubr.bf16.mxu0 0
    %2657 = vmatmul.mubr.bf16.gmra.mrb[0].mxu0 %v2565
    %v2658 = vpop.f32.mrb[0].mxu0
    %v2659 = vadd.f32 0.0, %v2658
    %v2660 = vpop.f32.mrb[0].mxu0
    %v2661 = vpop.f32.mrb[0].mxu0
    %v2662 = vadd.f32 0.0, %v2661
    %v2663 = vpop.f32.mrb[0].mxu0
    %2664 = vdwg.mxu0
    %v2665 = vadd.f32 %v2602, %v2651
    %v2666 = vadd.f32 %v2605, %v2654
    %v2667 = vadd.f32 %v2610, %v2659
    %v2668 = vadd.f32 %v2613, %v2662
    %v2669 = vadd.f32 %v2473, %v2665
    %v2670 = vadd.f32 %v2474, %v2666
    %v2671 = vadd.f32 %v2475, %v2667
    %v2672 = vadd.f32 %v2476, %v2668
    %v2673 = vlaneseq
    %v2674 = vshrl.u32 %v2673, 7
    %v2675 = vsub.s32 0, %v2674
    %v2676 = vrot.slane %v28, %v2675
    %v2677 = vadd.f32 %v2669, %v2676
    %v2678 = vadd.f32 %v2670, %v2676
    %v2679 = vadd.f32 %v2671, %v2676
    %v2680 = vadd.f32 %v2672, %v2676
    %v2681 = vmul.f32 %v2677, 0.5
    %v2682 = vmul.f32 %v2678, 0.5
    %v2683 = vmul.f32 %v2679, 0.5
    %v2684 = vmul.f32 %v2680, 0.5
    %v2685 = vmul.f32 %v2677, 0.70710677
    %v2686 = vmul.f32 %v2678, 0.70710677
    %v2687 = vmul.f32 %v2679, 0.70710677
    %v2688 = vmul.f32 %v2680, 0.70710677
    %vm2689 = vcmp.lt.f32.partialorder %v2685, 0.0
    %vm2690 = vcmp.lt.f32.partialorder %v2686, 0.0
    %vm2691 = vcmp.lt.f32.partialorder %v2687, 0.0
    %vm2692 = vcmp.lt.f32.partialorder %v2688, 0.0
    %v2693 = vsel %vm2689, -1.0, 1.0
    %v2694 = vsel %vm2690, -1.0, 1.0
    %v2695 = vsel %vm2691, -1.0, 1.0
    %v2696 = vsel %vm2692, -1.0, 1.0
    %v2697 = vand.u32 2147483647, %v2685
    %v2698 = vand.u32 2147483647, %v2686
    %v2699 = vand.u32 2147483647, %v2687
    %v2700 = vand.u32 2147483647, %v2688
    %v2701 = vmul.f32 %v2697, 0.3275911
    %v2702 = vmul.f32 %v2698, 0.3275911
    %v2703 = vmul.f32 %v2699, 0.3275911
    %v2704 = vmul.f32 %v2700, 0.3275911
    %v2705 = vadd.f32 %v2701, 1.0
    %v2706 = vadd.f32 %v2702, 1.0
    %v2707 = vadd.f32 %v2703, 1.0
    %v2708 = vadd.f32 %v2704, 1.0
    %v2709 = vrcp.pop %v2705
    %v2710 = vmul.f32 1.0, %v2709
    %v2711 = vrcp.pop %v2706
    %v2712 = vmul.f32 1.0, %v2711
    %v2713 = vrcp.pop %v2707
    %v2714 = vmul.f32 1.0, %v2713
    %v2715 = vrcp.pop %v2708
    %v2716 = vmul.f32 1.0, %v2715
    %v2717 = vmul.f32 %v2710, 1.0614054
    %v2718 = vmul.f32 %v2712, 1.0614054
    %v2719 = vmul.f32 %v2714, 1.0614054
    %v2720 = vmul.f32 %v2716, 1.0614054
    %v2721 = vadd.f32 %v2717, -1.4531521
    %v2722 = vadd.f32 %v2718, -1.4531521
    %v2723 = vadd.f32 %v2719, -1.4531521
    %v2724 = vadd.f32 %v2720, -1.4531521
    %v2725 = vmul.f32 %v2721, %v2710
    %v2726 = vmul.f32 %v2722, %v2712
    %v2727 = vmul.f32 %v2723, %v2714
    %v2728 = vmul.f32 %v2724, %v2716
    %v2729 = vadd.f32 %v2725, 1.4214138
    %v2730 = vadd.f32 %v2726, 1.4214138
    %v2731 = vadd.f32 %v2727, 1.4214138
    %v2732 = vadd.f32 %v2728, 1.4214138
    %v2733 = vmul.f32 %v2729, %v2710
    %v2734 = vmul.f32 %v2730, %v2712
    %v2735 = vmul.f32 %v2731, %v2714
    %v2736 = vmul.f32 %v2732, %v2716
    %v2737 = vadd.f32 %v2733, -0.28449672
    %v2738 = vadd.f32 %v2734, -0.28449672
    %v2739 = vadd.f32 %v2735, -0.28449672
    %v2740 = vadd.f32 %v2736, -0.28449672
    %v2741 = vmul.f32 %v2737, %v2710
    %v2742 = vmul.f32 %v2738, %v2712
    %v2743 = vmul.f32 %v2739, %v2714
    %v2744 = vmul.f32 %v2740, %v2716
    %v2745 = vadd.f32 %v2741, 0.2548296
    %v2746 = vadd.f32 %v2742, 0.2548296
    %v2747 = vadd.f32 %v2743, 0.2548296
    %v2748 = vadd.f32 %v2744, 0.2548296
    %v2749 = vmul.f32 %v2745, %v2710
    %v2750 = vmul.f32 %v2746, %v2712
    %v2751 = vmul.f32 %v2747, %v2714
    %v2752 = vmul.f32 %v2748, %v2716
    %v2753 = vsub.f32 0.0, %v2697
    %v2754 = vsub.f32 0.0, %v2698
    %v2755 = vsub.f32 0.0, %v2699
    %v2756 = vsub.f32 0.0, %v2700
    %v2757 = vmul.f32 %v2753, %v2697
    %v2758 = vmul.f32 %v2754, %v2698
    %v2759 = vmul.f32 %v2755, %v2699
    %v2760 = vmul.f32 %v2756, %v2700
    %v2761 = vmul.f32 %v2757, 1.442695
    %v2762 = vpow.pop %v2761
    %v2763 = vmul.f32 %v2758, 1.442695
    %v2764 = vpow.pop %v2763
    %v2765 = vmul.f32 %v2759, 1.442695
    %v2766 = vpow.pop %v2765
    %v2767 = vmul.f32 %v2760, 1.442695
    %v2768 = vpow.pop %v2767
    %v2769 = vmul.f32 %v2749, %v2762
    %v2770 = vmul.f32 %v2750, %v2764
    %v2771 = vmul.f32 %v2751, %v2766
    %v2772 = vmul.f32 %v2752, %v2768
    %v2773 = vsub.f32 1.0, %v2769
    %v2774 = vsub.f32 1.0, %v2770
    %v2775 = vsub.f32 1.0, %v2771
    %v2776 = vsub.f32 1.0, %v2772
    %v2777 = vmul.f32 %v2693, %v2773
    %v2778 = vmul.f32 %v2694, %v2774
    %v2779 = vmul.f32 %v2695, %v2775
    %v2780 = vmul.f32 %v2696, %v2776
    %v2781 = vadd.f32 %v2777, 1.0
    %v2782 = vadd.f32 %v2778, 1.0
    %v2783 = vadd.f32 %v2779, 1.0
    %v2784 = vadd.f32 %v2780, 1.0
    %v2785 = vmul.f32 %v2681, %v2781
    %v2786 = vmul.f32 %v2682, %v2782
    %v2787 = vmul.f32 %v2683, %v2783
    %v2788 = vmul.f32 %v2684, %v2784
    %v2789 = vpack.c.bf16 %v2786, %v2785
    %v2790 = vpack.c.bf16 %v2788, %v2787
    %v2791 = vunpack.c.l.bf16 %v2789
    %v2792 = vunpack.c.h.bf16 %v2789
    %v2793 = vunpack.c.l.bf16 %v2790
    %v2794 = vunpack.c.h.bf16 %v2790
    %v2795 = vsub.f32 %v2785, %v2791
    %v2796 = vsub.f32 %v2786, %v2792
    %v2797 = vsub.f32 %v2787, %v2793
    %v2798 = vsub.f32 %v2788, %v2794
    %v2799 = vpack.c.bf16 %v2796, %v2795
    %v2800 = vpack.c.bf16 %v2798, %v2797
    %v2801 = vld [vmem:[#allocation2 + $0xa8] sm:$0xff]
    %v2802 = vld [vmem:[#allocation2 + $0xb0] sm:$0xff]
    %v2803 = vld [vmem:[#allocation2 + $0xb8] sm:$0xff]
    %v2804 = vld [vmem:[#allocation2 + $0xc0] sm:$0xff]
    %v2805 = vld [vmem:[#allocation2 + $0xc8] sm:$0xff]
    %v2806 = vld [vmem:[#allocation2 + $0xd0] sm:$0xff]
    %v2807 = vld [vmem:[#allocation2 + $0xd8] sm:$0xff]
    %v2808 = vld [vmem:[#allocation2 + $0xe0] sm:$0xff]
    %v2809 = vpack.c.bf16 %v2802, %v2801
    %v2810 = vpack.c.bf16 %v2804, %v2803
    %v2811 = vpack.c.bf16 %v2806, %v2805
    %v2812 = vpack.c.bf16 %v2808, %v2807
    %v2813 = vunpack.c.l.bf16 %v2809
    %v2814 = vunpack.c.h.bf16 %v2809
    %v2815 = vunpack.c.l.bf16 %v2810
    %v2816 = vunpack.c.h.bf16 %v2810
    %v2817 = vunpack.c.l.bf16 %v2811
    %v2818 = vunpack.c.h.bf16 %v2811
    %v2819 = vunpack.c.l.bf16 %v2812
    %v2820 = vunpack.c.h.bf16 %v2812
    %v2821 = vsub.f32 %v2801, %v2813
    %v2822 = vsub.f32 %v2802, %v2814
    %v2823 = vsub.f32 %v2803, %v2815
    %v2824 = vsub.f32 %v2804, %v2816
    %v2825 = vsub.f32 %v2805, %v2817
    %v2826 = vsub.f32 %v2806, %v2818
    %v2827 = vsub.f32 %v2807, %v2819
    %v2828 = vsub.f32 %v2808, %v2820
    %v2829 = vpack.c.bf16 %v2822, %v2821
    %v2830 = vpack.c.bf16 %v2824, %v2823
    %v2831 = vpack.c.bf16 %v2826, %v2825
    %v2832 = vpack.c.bf16 %v2828, %v2827
    %vm2833 = vcmask 523264
    %v2835 = vsel %vm2833, %v2799, 0
    %v2838 = vsel %vm2833, %v2800, 0
    %2840 = vmatprep.subr.bf16.mxu0 0
    %2841 = vmatpush1.bf16.msra.mxu0 %v2809
    %2842 = vmatprep.subr.bf16.mxu0 0
    %2843 = vmatpush1.bf16.msra.mxu0 %v2810
    %2844 = vmatprep.subr.bf16.mxu0 0
    %2845 = vmatpush1.bf16.msra.mxu0 %v2811
    %2846 = vmatprep.subr.bf16.mxu0 0
    %2847 = vmatpush1.bf16.msra.mxu0 %v2812
    %2848 = vmatprep.subr.bf16.mxu0 0
    %2849 = vmatpush1.bf16.msra.mxu0 0
    %2850 = vmatprep.subr.bf16.mxu0 0
    %2851 = vmatpush1.bf16.msra.mxu0 0
    %2852 = vmatprep.subr.bf16.mxu0 0
    %2853 = vmatpush1.bf16.msra.mxu0 0
    %2854 = vmatprep.subr.bf16.mxu0 0
    %2855 = vmatpush1.bf16.msra.mxu0 0
    %2856 = vmatprep.subr.bf16.mxu0 0
    %2857 = vmatpush1.bf16.msra.mxu0 0
    %2858 = vmatprep.subr.bf16.mxu0 0
    %2859 = vmatpush1.bf16.msra.mxu0 0
    %2860 = vmatprep.subr.bf16.mxu0 0
    %2861 = vmatpush1.bf16.msra.mxu0 0
    %2862 = vmatprep.subr.bf16.mxu0 0
    %2863 = vmatpush1.bf16.msra.mxu0 0
    %2864 = vmatprep.subr.bf16.mxu0 0
    %2865 = vmatpush1.bf16.msra.mxu0 0
    %2866 = vmatprep.subr.bf16.mxu0 0
    %2867 = vmatpush1.bf16.msra.mxu0 0
    %2868 = vmatprep.subr.bf16.mxu0 0
    %2869 = vmatpush1.bf16.msra.mxu0 0
    %2870 = vmatprep.subr.bf16.mxu0 0
    %2871 = vmatpush1.bf16.msra.mxu0 0
    %2872 = vmatprep.mubr.bf16.mxu0 0
    %2873 = vmatmul.mubr.bf16.gmra.mrb[0].mxu0 %v2835
    %v2874 = vpop.f32.mrb[0].mxu0
    %v2875 = vadd.f32 0.0, %v2874
    %v2876 = vpop.f32.mrb[0].mxu0
    %v2877 = vpop.f32.mrb[0].mxu0
    %v2878 = vadd.f32 0.0, %v2877
    %v2879 = vpop.f32.mrb[0].mxu0
    %2880 = vmatprep.mubr.bf16.mxu0 0
    %2881 = vmatmul.mubr.bf16.gmra.mrb[0].mxu0 %v2838
    %v2882 = vpop.f32.mrb[0].mxu0
    %v2883 = vadd.f32 0.0, %v2882
    %v2884 = vpop.f32.mrb[0].mxu0
    %v2885 = vpop.f32.mrb[0].mxu0
    %v2886 = vadd.f32 0.0, %v2885
    %v2887 = vpop.f32.mrb[0].mxu0
    %2888 = vdwg.mxu0
    %v2890 = vsel %vm2833, %v2789, 0
    %v2893 = vsel %vm2833, %v2790, 0
    %2895 = vmatprep.subr.bf16.mxu0 0
    %2896 = vmatpush1.bf16.msra.mxu0 %v2809
    %2897 = vmatprep.subr.bf16.mxu0 0
    %2898 = vmatpush1.bf16.msra.mxu0 %v2810
    %2899 = vmatprep.subr.bf16.mxu0 0
    %2900 = vmatpush1.bf16.msra.mxu0 %v2811
    %2901 = vmatprep.subr.bf16.mxu0 0
    %2902 = vmatpush1.bf16.msra.mxu0 %v2812
    %2903 = vmatprep.subr.bf16.mxu0 0
    %2904 = vmatpush1.bf16.msra.mxu0 0
    %2905 = vmatprep.subr.bf16.mxu0 0
    %2906 = vmatpush1.bf16.msra.mxu0 0
    %2907 = vmatprep.subr.bf16.mxu0 0
    %2908 = vmatpush1.bf16.msra.mxu0 0
    %2909 = vmatprep.subr.bf16.mxu0 0
    %2910 = vmatpush1.bf16.msra.mxu0 0
    %2911 = vmatprep.subr.bf16.mxu0 0
    %2912 = vmatpush1.bf16.msra.mxu0 0
    %2913 = vmatprep.subr.bf16.mxu0 0
    %2914 = vmatpush1.bf16.msra.mxu0 0
    %2915 = vmatprep.subr.bf16.mxu0 0
    %2916 = vmatpush1.bf16.msra.mxu0 0
    %2917 = vmatprep.subr.bf16.mxu0 0
    %2918 = vmatpush1.bf16.msra.mxu0 0
    %2919 = vmatprep.subr.bf16.mxu0 0
    %2920 = vmatpush1.bf16.msra.mxu0 0
    %2921 = vmatprep.subr.bf16.mxu0 0
    %2922 = vmatpush1.bf16.msra.mxu0 0
    %2923 = vmatprep.subr.bf16.mxu0 0
    %2924 = vmatpush1.bf16.msra.mxu0 0
    %2925 = vmatprep.subr.bf16.mxu0 0
    %2926 = vmatpush1.bf16.msra.mxu0 0
    %2927 = vmatprep.mubr.bf16.mxu0 0
    %2928 = vmatmul.mubr.bf16.gmra.mrb[0].mxu0 %v2890
    %v2929 = vpop.f32.mrb[0].mxu0
    %v2930 = vadd.f32 %v2875, %v2929
    %v2931 = vpop.f32.mrb[0].mxu0
    %v2932 = vpop.f32.mrb[0].mxu0
    %v2933 = vadd.f32 %v2878, %v2932
    %v2934 = vpop.f32.mrb[0].mxu0
    %2935 = vmatprep.mubr.bf16.mxu0 0
    %2936 = vmatmul.mubr.bf16.gmra.mrb[0].mxu0 %v2893
    %v2937 = vpop.f32.mrb[0].mxu0
    %v2938 = vadd.f32 %v2883, %v2937
    %v2939 = vpop.f32.mrb[0].mxu0
    %v2940 = vpop.f32.mrb[0].mxu0
    %v2941 = vadd.f32 %v2886, %v2940
    %v2942 = vpop.f32.mrb[0].mxu0
    %2943 = vdwg.mxu0
    %2944 = vmatprep.subr.bf16.mxu0 0
    %2945 = vmatpush1.bf16.msra.mxu0 %v2829
    %2946 = vmatprep.subr.bf16.mxu0 0
    %2947 = vmatpush1.bf16.msra.mxu0 %v2830
    %2948 = vmatprep.subr.bf16.mxu0 0
    %2949 = vmatpush1.bf16.msra.mxu0 %v2831
    %2950 = vmatprep.subr.bf16.mxu0 0
    %2951 = vmatpush1.bf16.msra.mxu0 %v2832
    %2952 = vmatprep.subr.bf16.mxu0 0
    %2953 = vmatpush1.bf16.msra.mxu0 0
    %2954 = vmatprep.subr.bf16.mxu0 0
    %2955 = vmatpush1.bf16.msra.mxu0 0
    %2956 = vmatprep.subr.bf16.mxu0 0
    %2957 = vmatpush1.bf16.msra.mxu0 0
    %2958 = vmatprep.subr.bf16.mxu0 0
    %2959 = vmatpush1.bf16.msra.mxu0 0
    %2960 = vmatprep.subr.bf16.mxu0 0
    %2961 = vmatpush1.bf16.msra.mxu0 0
    %2962 = vmatprep.subr.bf16.mxu0 0
    %2963 = vmatpush1.bf16.msra.mxu0 0
    %2964 = vmatprep.subr.bf16.mxu0 0
    %2965 = vmatpush1.bf16.msra.mxu0 0
    %2966 = vmatprep.subr.bf16.mxu0 0
    %2967 = vmatpush1.bf16.msra.mxu0 0
    %2968 = vmatprep.subr.bf16.mxu0 0
    %2969 = vmatpush1.bf16.msra.mxu0 0
    %2970 = vmatprep.subr.bf16.mxu0 0
    %2971 = vmatpush1.bf16.msra.mxu0 0
    %2972 = vmatprep.subr.bf16.mxu0 0
    %2973 = vmatpush1.bf16.msra.mxu0 0
    %2974 = vmatprep.subr.bf16.mxu0 0
    %2975 = vmatpush1.bf16.msra.mxu0 0
    %2976 = vmatprep.mubr.bf16.mxu0 0
    %2977 = vmatmul.mubr.bf16.gmra.mrb[0].mxu0 %v2890
    %v2978 = vpop.f32.mrb[0].mxu0
    %v2979 = vadd.f32 0.0, %v2978
    %v2980 = vpop.f32.mrb[0].mxu0
    %v2981 = vpop.f32.mrb[0].mxu0
    %v2982 = vadd.f32 0.0, %v2981
    %v2983 = vpop.f32.mrb[0].mxu0
    %2984 = vmatprep.mubr.bf16.mxu0 0
    %2985 = vmatmul.mubr.bf16.gmra.mrb[0].mxu0 %v2893
    %v2986 = vpop.f32.mrb[0].mxu0
    %v2987 = vadd.f32 0.0, %v2986
    %v2988 = vpop.f32.mrb[0].mxu0
    %v2989 = vpop.f32.mrb[0].mxu0
    %v2990 = vadd.f32 0.0, %v2989
    %v2991 = vpop.f32.mrb[0].mxu0
    %2992 = vdwg.mxu0
    %v2993 = vadd.f32 %v2930, %v2979
    %v2994 = vadd.f32 %v2933, %v2982
    %v2995 = vadd.f32 %v2938, %v2987
    %v2996 = vadd.f32 %v2941, %v2990
    %v2997 = vlaneseq
    %v2998 = vshrl.u32 %v2997, 7
    %v2999 = vsub.s32 0, %v2998
    %v3000 = vrot.slane %v29, %v2999
    %v3001 = vadd.f32 %v2993, %v3000
    %v3002 = vadd.f32 %v2994, %v3000
    %v3003 = vadd.f32 %v2995, %v3000
    %v3004 = vadd.f32 %v2996, %v3000
    %v3005 = vtanh.pop %v3001
    %v3006 = vtanh.pop %v3002
    %v3007 = vtanh.pop %v3003
    %v3008 = vtanh.pop %v3004
    %v3009 = vmul.f32 %v3005, 3.0
    %v3010 = vmul.f32 %v3006, 3.0
    %v3011 = vmul.f32 %v3007, 3.0
    %v3012 = vmul.f32 %v3008, 3.0
    %v3013 = vlaneseq
    %v3014 = vshrl.u32 %v3013, 7
    %v3015 = vsub.s32 0, %v3014
    %v3016 = vrot.slane %v31, %v3015
    %v3017 = vmul.f32 %v3016, %v3009
    %v3018 = vmul.f32 %v3016, %v3010
    %v3019 = vmul.f32 %v3016, %v3011
    %v3020 = vmul.f32 %v3016, %v3012
    %v3021 = vmul.f32 %v3017, 1.442695
    %v3022 = vpow.pop %v3021
    %v3023 = vmul.f32 %v3018, 1.442695
    %v3024 = vpow.pop %v3023
    %v3025 = vmul.f32 %v3019, 1.442695
    %v3026 = vpow.pop %v3025
    %v3027 = vmul.f32 %v3020, 1.442695
    %v3028 = vpow.pop %v3027
    %v3029 = vlaneseq
    %v3030 = vshrl.u32 %v3029, 7
    %v3031 = vsub.s32 0, %v3030
    %v3032 = vrot.slane %v30, %v3031
    %v3033 = vmul.f32 %v3032, %v3022
    %v3034 = vmul.f32 %v3032, %v3024
    %v3035 = vmul.f32 %v3032, %v3026
    %v3036 = vmul.f32 %v3032, %v3028
    %v3037 = vlaneseq
    %v3038 = vshrl.u32 %v3037, 7
    %v3039 = vsub.s32 0, %v3038
    %v3040 = vrot.slane %v32, %v3039
    %v3041 = vmul.f32 %v3040, %v3009
    %v3042 = vmul.f32 %v3040, %v3010
    %v3043 = vmul.f32 %v3040, %v3011
    %v3044 = vmul.f32 %v3040, %v3012
    %v3045 = vadd.f32 %v3033, %v3041
    %v3046 = vadd.f32 %v3034, %v3042
    %v3047 = vadd.f32 %v3035, %v3043
    %v3048 = vadd.f32 %v3036, %v3044
    %vm3049 = vcmask 113664
    %3050 = vst.msk [vmem:[%s2] sm:$0xff] %vm3049, %v3045
    %3051 = vst.msk [vmem:[%s2 + $0x8] sm:$0xff] %vm3049, %v3046
    %3052 = vst.msk [vmem:[%s2 + $0x10] sm:$0xff] %vm3049, %v3047
    %3053 = vst.msk [vmem:[%s2 + $0x18] sm:$0xff] %vm3049, %v3048
    // Predicated region
    $region14: #{tpu_custom_call.1} parent=1 // pred_check
      _
    $region15: #{tpu_custom_call.1} parent=1 // pred_check_branch
      %3055 = sbr.rel (0) target = $region17
    $region16: #{tpu_custom_call.1} parent=1 // pred_region
      _
    $region17: #{tpu_custom_call.1} parent=1 // pred_fallthru
      _
    // Predicated region
    $region18: #{tpu_custom_call.1} parent=1 // pred_check
      _
    $region19: #{tpu_custom_call.1} parent=1 // pred_check_branch
      %3057 = sbr.rel (0) target = $region21
    $region20: #{tpu_custom_call.1} parent=1 // pred_region
      _
    $region21: #{tpu_custom_call.1} parent=1 // pred_fallthru
      _
    %3058 = vsyncpa [#allocation3], 1

</llo_original>
